<compile_context>
chip_gen: v7x
topology: tpu7x:2x2x1
jax: 0.10.0
libtpu: 0.0.40
codegen_flags: <defaults>
</compile_context>

<pallas_src>
import functools

import jax
import jax.numpy as jnp
from jax.experimental import pallas as pl
from jax.experimental.pallas import tpu as pltpu

INPUT_DIM = 784
HIDDEN_DIM = 400
LATENT_DIM = 20
LATENT_PAD = 128  # lane-friendly padded latent width (fc2 output lanes / fc3 input rows)


def _vae_kernel(x_ref, eps_ref,
                w1_ref, b1_ref, w2_ref, b2_ref,
                w3_ref, b3_ref, w4_ref, b4_ref,
                recon_ref, mulogvar_ref):
    # ---- encode: fc1 + relu (bf16 MXU inputs, f32 accumulate) ----
    h1 = jnp.dot(x_ref[...], w1_ref[...],
                 preferred_element_type=jnp.float32) + b1_ref[...]
    h1 = jnp.maximum(h1, 0.0)

    # ---- fused fc21|fc22: one (TB,400)x(400,128) matmul.
    # lanes 0..19 = mu, lanes 20..39 = logvar, lanes 40..127 = zero pad.
    ml = jnp.dot(h1.astype(jnp.bfloat16), w2_ref[...],
                 preferred_element_type=jnp.float32) + b2_ref[...]
    mu = ml[:, :LATENT_DIM]
    logvar = ml[:, LATENT_DIM:2 * LATENT_DIM]

    # Single fused, lane-contiguous (TB, 40) store for [mu | logvar].
    mulogvar_ref[...] = ml[:, :2 * LATENT_DIM]

    # ---- reparameterize (f32 VPU/EUP, 20 lanes) ----
    z = mu + eps_ref[...] * jnp.exp(0.5 * logvar)
    # Zero-pad z to 128 lanes in-register (padded rows of w3 are zero anyway).
    z_pad = jnp.concatenate(
        [z, jnp.zeros((z.shape[0], LATENT_PAD - LATENT_DIM), jnp.float32)], axis=1)

    # ---- decode: fc3 + relu ----
    h3 = jnp.dot(z_pad.astype(jnp.bfloat16), w3_ref[...],
                 preferred_element_type=jnp.float32) + b3_ref[...]
    h3 = jnp.maximum(h3, 0.0)

    # ---- fc4 + sigmoid (f32 exp on EUP + approx reciprocal on EUP) ----
    logits = jnp.dot(h3.astype(jnp.bfloat16), w4_ref[...],
                     preferred_element_type=jnp.float32) + b4_ref[...]
    recon = pl.reciprocal(1.0 + jnp.exp(-logits), approx=True)
    recon_ref[...] = recon.astype(recon_ref.dtype)


def _choose_tiling(B, tb):
    """Adaptive batch tile: minimal zero-row padding; prefer an even tile count
    (so the 'parallel' grid axis shards across both v7x TensorCores) when each
    tile would still hold >= 64 real rows."""
    n_tiles = max(1, pl.cdiv(B, tb))
    if n_tiles % 2 == 1 and B // (n_tiles + 1) >= 64:
        n_tiles += 1
    TB = ((pl.cdiv(B, n_tiles)) + 7) // 8 * 8
    return TB, n_tiles * TB


def _nbytes(a):
    return a.size * a.dtype.itemsize


@functools.partial(jax.jit, static_argnames=("tb", "recon_dtype"))
def vae_forward(x_img, eps, packed_params, *, tb=512, recon_dtype=jnp.bfloat16):
    """x_img: (B, 1, 28, 28), eps: (B, LATENT_DIM) f32 noise, packed bf16 weights.

    Returns (recon[B,784] in `recon_dtype`, mu[B,20] f32, logvar[B,20] f32).
    """
    B = x_img.shape[0]
    # Glue for torch's x.view(-1, 784); cast folded into the reshape (x feeds the
    # bf16 MXU anyway, halving the dominant input HBM stream).
    x = x_img.reshape(B, INPUT_DIM).astype(jnp.bfloat16)
    eps = eps.astype(jnp.float32)

    TB, B_pad = _choose_tiling(B, tb)
    if B_pad != B:  # skip the pad round-trip entirely when B is already a multiple
        x = jnp.pad(x, ((0, B_pad - B), (0, 0)))
        eps = jnp.pad(eps, ((0, B_pad - B), (0, 0)))

    (w1, b1, w2, b2, w3, b3, w4, b4) = packed_params
    inputs = (x, eps, w1, b1, w2, b2, w3, b3, w4, b4)

    def tiled(shape):            # batch-tiled operands
        return pl.BlockSpec(shape, lambda i: (i, 0))

    def resident(shape):         # weights/biases: constant block index -> DMA'd once
        return pl.BlockSpec(shape, lambda i: (0, 0))

    in_specs = [
        tiled((TB, INPUT_DIM)),
        tiled((TB, LATENT_DIM)),
        resident((INPUT_DIM, HIDDEN_DIM)),
        resident((1, HIDDEN_DIM)),
        resident((HIDDEN_DIM, LATENT_PAD)),
        resident((1, LATENT_PAD)),
        resident((LATENT_PAD, HIDDEN_DIM)),
        resident((1, HIDDEN_DIM)),
        resident((HIDDEN_DIM, INPUT_DIM)),
        resident((1, INPUT_DIM)),
    ]
    out_specs = (
        tiled((TB, INPUT_DIM)),
        tiled((TB, 2 * LATENT_DIM)),
    )
    out_shape = (
        jax.ShapeDtypeStruct((B_pad, INPUT_DIM), recon_dtype),
        jax.ShapeDtypeStruct((B_pad, 2 * LATENT_DIM), jnp.float32),
    )

    flops = 2 * B_pad * (INPUT_DIM * HIDDEN_DIM + HIDDEN_DIM * LATENT_PAD
                         + LATENT_PAD * HIDDEN_DIM + HIDDEN_DIM * INPUT_DIM)
    transcendentals = B_pad * (LATENT_DIM + 2 * INPUT_DIM)
    bytes_accessed = int(sum(_nbytes(a) for a in inputs)
                         + B_pad * INPUT_DIM * jnp.dtype(recon_dtype).itemsize
                         + B_pad * 2 * LATENT_DIM * 4)

    recon, mulogvar = pl.pallas_call(
        _vae_kernel,
        grid=(B_pad // TB,),
        out_shape=out_shape,
        in_specs=in_specs,
        out_specs=out_specs,
        compiler_params=pltpu.CompilerParams(
            dimension_semantics=("parallel",),
            vmem_limit_bytes=48 << 20,
        ),
        cost_estimate=pl.CostEstimate(
            flops=flops,
            transcendentals=transcendentals,
            bytes_accessed=bytes_accessed,
        ),
    )(*inputs)

    return (recon[:B],
            mulogvar[:B, :LATENT_DIM],
            mulogvar[:B, LATENT_DIM:])


def init_params(key):
    """Deterministic synthetic weights, torch-Linear-like init.  (in, out) + (1, out)."""
    ks = jax.random.split(key, 10)

    def lin(k_w, k_b, fan_in, fan_out):
        scale = 1.0 / jnp.sqrt(jnp.float32(fan_in))
        w = jax.random.uniform(k_w, (fan_in, fan_out), jnp.float32, -scale, scale)
        b = jax.random.uniform(k_b, (1, fan_out), jnp.float32, -scale, scale)
        return w, b

    w1, b1 = lin(ks[0], ks[1], INPUT_DIM, HIDDEN_DIM)     # fc1
    w21, b21 = lin(ks[2], ks[3], HIDDEN_DIM, LATENT_DIM)  # fc21 (mu)
    w22, b22 = lin(ks[4], ks[5], HIDDEN_DIM, LATENT_DIM)  # fc22 (logvar)
    w3, b3 = lin(ks[6], ks[7], LATENT_DIM, HIDDEN_DIM)    # fc3
    w4, b4 = lin(ks[8], ks[9], HIDDEN_DIM, INPUT_DIM)     # fc4
    return (w1, b1, w21, b21, w22, b22, w3, b3, w4, b4)


def pack_params(raw_params):
    """Fuse fc21|fc22 into a (400, 128) weight (mu lanes 0..19, logvar lanes 20..39,
    zero pad to 128), zero-pad fc3 rows to 128, cast weights to bf16 (biases f32)."""
    (w1, b1, w21, b21, w22, b22, w3, b3, w4, b4) = raw_params
    lane_pad = LATENT_PAD - 2 * LATENT_DIM
    row_pad = LATENT_PAD - LATENT_DIM

    w2 = jnp.pad(jnp.concatenate([w21, w22], axis=1),
                 ((0, 0), (0, lane_pad))).astype(jnp.bfloat16)        # (400, 128)
    b2 = jnp.pad(jnp.concatenate([b21, b22], axis=1),
                 ((0, 0), (0, lane_pad))).astype(jnp.float32)         # (1, 128)
    w3p = jnp.pad(w3, ((0, row_pad), (0, 0))).astype(jnp.bfloat16)    # (128, 400)

    return (w1.astype(jnp.bfloat16), b1.astype(jnp.float32),
            w2, b2,
            w3p, b3.astype(jnp.float32),
            w4.astype(jnp.bfloat16), b4.astype(jnp.float32))


def _reference_forward(x_img, eps, raw_params):
    """Pure-JAX reference mirroring the kernel numerics (bf16 MXU inputs, f32 accum)."""
    (w1, b1, w21, b21, w22, b22, w3, b3, w4, b4) = raw_params

    def lin(x, w, b):
        return jnp.dot(x.astype(jnp.bfloat16), w.astype(jnp.bfloat16),
                       preferred_element_type=jnp.float32) + b

    x = x_img.reshape(x_img.shape[0], INPUT_DIM)
    h1 = jax.nn.relu(lin(x, w1, b1))
    mu = lin(h1, w21, b21)
    logvar = lin(h1, w22, b22)
    z = mu + eps * jnp.exp(0.5 * logvar)
    h3 = jax.nn.relu(lin(z, w3, b3))
    recon = jax.nn.sigmoid(lin(h3, w4, b4))
    return recon, mu, logvar


def _check(B, raw_params, packed, key):
    k_x, k_eps = jax.random.split(key, 2)
    x_img = jax.random.uniform(k_x, (B, 1, 28, 28), jnp.float32)       # MNIST-like
    # torch.randn_like(std) -> deterministic gaussian noise supplied from outside.
    eps = jax.random.normal(k_eps, (B, LATENT_DIM), jnp.float32)

    recon, mu, logvar = vae_forward(x_img, eps, packed)
    jax.block_until_ready((recon, mu, logvar))

    r_recon, r_mu, r_logvar = _reference_forward(x_img, eps, raw_params)
    assert recon.shape == (B, INPUT_DIM) and mu.shape == (B, LATENT_DIM)
    assert logvar.shape == (B, LATENT_DIM)
    # recon is bf16 + approx-reciprocal sigmoid -> slightly looser tolerance.
    assert jnp.allclose(recon.astype(jnp.float32), r_recon, atol=1e-2, rtol=1e-2)
    assert jnp.allclose(mu, r_mu, atol=5e-3, rtol=5e-3)
    assert jnp.allclose(logvar, r_logvar, atol=5e-3, rtol=5e-3)


if __name__ == "__main__":
    key = jax.random.PRNGKey(0)
    k_params, k_small, k_big = jax.random.split(key, 3)

    raw_params = init_params(k_params)
    packed = pack_params(raw_params)

    _check(8, raw_params, packed, k_small)     # small batch: single 8-row tile
    _check(300, raw_params, packed, k_big)     # 2 tiles of 152 rows (4 pad rows)

    print("KERNEL_OK")
</pallas_src>

<mosaic_0001>
module attributes {stable_mosaic.version = 11 : i64} {
  func.func @_vae_kernel(%arg0: i32, %arg1: memref<8x784xbf16, #tpu.memory_space<vmem>>, %arg2: memref<8x20xf32, #tpu.memory_space<vmem>>, %arg3: memref<784x400xbf16, #tpu.memory_space<vmem>>, %arg4: memref<1x400xf32, #tpu.memory_space<vmem>>, %arg5: memref<400x128xbf16, #tpu.memory_space<vmem>>, %arg6: memref<1x128xf32, #tpu.memory_space<vmem>>, %arg7: memref<128x400xbf16, #tpu.memory_space<vmem>>, %arg8: memref<1x400xf32, #tpu.memory_space<vmem>>, %arg9: memref<400x784xbf16, #tpu.memory_space<vmem>>, %arg10: memref<1x784xf32, #tpu.memory_space<vmem>>, %arg11: memref<8x784xbf16, #tpu.memory_space<vmem>>, %arg12: memref<8x40xf32, #tpu.memory_space<vmem>>) attributes {dimension_semantics = [#tpu.dimension_semantics<parallel>], iteration_bounds = array<i64: 1>, scalar_prefetch = 0 : i64, scratch_operands = 0 : i64, tpu.core_type = #tpu.core_type<tc>, window_params = [{transform_indices = @transform_0, window_bounds = array<i64: 8, 784>}, {transform_indices = @transform_1, window_bounds = array<i64: 8, 20>}, {pipeline_mode = #tpu.pipeline_mode<synchronous>, transform_indices = @transform_2, window_bounds = array<i64: 784, 400>}, {pipeline_mode = #tpu.pipeline_mode<synchronous>, transform_indices = @transform_3, window_bounds = array<i64: 1, 400>}, {pipeline_mode = #tpu.pipeline_mode<synchronous>, transform_indices = @transform_4, window_bounds = array<i64: 400, 128>}, {pipeline_mode = #tpu.pipeline_mode<synchronous>, transform_indices = @transform_5, window_bounds = array<i64: 1, 128>}, {pipeline_mode = #tpu.pipeline_mode<synchronous>, transform_indices = @transform_6, window_bounds = array<i64: 128, 400>}, {pipeline_mode = #tpu.pipeline_mode<synchronous>, transform_indices = @transform_7, window_bounds = array<i64: 1, 400>}, {pipeline_mode = #tpu.pipeline_mode<synchronous>, transform_indices = @transform_8, window_bounds = array<i64: 400, 784>}, {pipeline_mode = #tpu.pipeline_mode<synchronous>, transform_indices = @transform_9, window_bounds = array<i64: 1, 784>}, {transform_indices = @transform_10, window_bounds = array<i64: 8, 784>}, {transform_indices = @transform_11, window_bounds = array<i64: 8, 40>}]} {
    %c0 = arith.constant 0 : index
    %c0_0 = arith.constant 0 : index
    %0 = vector.load %arg1[%c0, %c0_0] : memref<8x784xbf16, #tpu.memory_space<vmem>>, vector<8x784xbf16>
    %c0_1 = arith.constant 0 : index
    %c0_2 = arith.constant 0 : index
    %1 = vector.load %arg3[%c0_1, %c0_2] : memref<784x400xbf16, #tpu.memory_space<vmem>>, vector<784x400xbf16>
    %cst = arith.constant dense<0.000000e+00> : vector<8x400xf32>
    %2 = tpu.matmul %0, %1, %cst {dimension_numbers = #tpu.dot_dimension_numbers<[1], [0], [0], [1], [0, 0, 1, 1], [], []>} : vector<8x784xbf16>, vector<784x400xbf16>, vector<8x400xf32> -> vector<8x400xf32>
    %c0_3 = arith.constant 0 : index
    %c0_4 = arith.constant 0 : index
    %3 = vector.load %arg4[%c0_3, %c0_4] : memref<1x400xf32, #tpu.memory_space<vmem>>, vector<1x400xf32>
    %4 = vector.broadcast %3 : vector<1x400xf32> to vector<8x400xf32>
    %5 = arith.addf %2, %4 : vector<8x400xf32>
    %cst_5 = arith.constant 0.000000e+00 : f32
    %6 = vector.broadcast %cst_5 : f32 to vector<8x400xf32>
    %7 = arith.maximumf %5, %6 : vector<8x400xf32>
    %8 = arith.truncf %7 : vector<8x400xf32> to vector<8x400xbf16>
    %c0_6 = arith.constant 0 : index
    %c0_7 = arith.constant 0 : index
    %9 = vector.load %arg5[%c0_6, %c0_7] : memref<400x128xbf16, #tpu.memory_space<vmem>>, vector<400x128xbf16>
    %cst_8 = arith.constant dense<0.000000e+00> : vector<8x128xf32>
    %10 = tpu.matmul %8, %9, %cst_8 {dimension_numbers = #tpu.dot_dimension_numbers<[1], [0], [0], [1], [0, 0, 1, 1], [], []>} : vector<8x400xbf16>, vector<400x128xbf16>, vector<8x128xf32> -> vector<8x128xf32>
    %c0_9 = arith.constant 0 : index
    %c0_10 = arith.constant 0 : index
    %11 = vector.load %arg6[%c0_9, %c0_10] : memref<1x128xf32, #tpu.memory_space<vmem>>, vector<1x128xf32>
    %12 = vector.broadcast %11 : vector<1x128xf32> to vector<8x128xf32>
    %13 = arith.addf %10, %12 : vector<8x128xf32>
    %14 = vector.extract_strided_slice %13 {offsets = [0, 0], sizes = [8, 20], strides = [1, 1]} : vector<8x128xf32> to vector<8x20xf32>
    %15 = vector.extract_strided_slice %13 {offsets = [0, 20], sizes = [8, 20], strides = [1, 1]} : vector<8x128xf32> to vector<8x20xf32>
    %16 = vector.extract_strided_slice %13 {offsets = [0, 0], sizes = [8, 40], strides = [1, 1]} : vector<8x128xf32> to vector<8x40xf32>
    %c0_11 = arith.constant 0 : index
    %c0_12 = arith.constant 0 : index
    %17 = vector.load %arg12[%c0_11, %c0_12] : memref<8x40xf32, #tpu.memory_space<vmem>>, vector<8x40xf32>
    tpu.vector_store %arg12[%c0_11, %c0_12], %16 {strides = array<i32>} : memref<8x40xf32, #tpu.memory_space<vmem>>, vector<8x40xf32>,
    %c0_13 = arith.constant 0 : index
    %c0_14 = arith.constant 0 : index
    %18 = vector.load %arg2[%c0_13, %c0_14] : memref<8x20xf32, #tpu.memory_space<vmem>>, vector<8x20xf32>
    %cst_15 = arith.constant 5.000000e-01 : f32
    %19 = vector.broadcast %cst_15 : f32 to vector<8x20xf32>
    %20 = arith.mulf %19, %15 : vector<8x20xf32>
    %21 = math.exp %20 : vector<8x20xf32>
    %22 = arith.mulf %18, %21 : vector<8x20xf32>
    %23 = arith.addf %14, %22 : vector<8x20xf32>
    %cst_16 = arith.constant 0.000000e+00 : f32
    %24 = vector.broadcast %cst_16 : f32 to vector<8x108xf32>
    %25 = tpu.concatenate %23, %24 in 1 : vector<8x20xf32>, vector<8x108xf32> -> vector<8x128xf32>
    %26 = arith.truncf %25 : vector<8x128xf32> to vector<8x128xbf16>
    %c0_17 = arith.constant 0 : index
    %c0_18 = arith.constant 0 : index
    %27 = vector.load %arg7[%c0_17, %c0_18] : memref<128x400xbf16, #tpu.memory_space<vmem>>, vector<128x400xbf16>
    %cst_19 = arith.constant dense<0.000000e+00> : vector<8x400xf32>
    %28 = tpu.matmul %26, %27, %cst_19 {dimension_numbers = #tpu.dot_dimension_numbers<[1], [0], [0], [1], [0, 0, 1, 1], [], []>} : vector<8x128xbf16>, vector<128x400xbf16>, vector<8x400xf32> -> vector<8x400xf32>
    %c0_20 = arith.constant 0 : index
    %c0_21 = arith.constant 0 : index
    %29 = vector.load %arg8[%c0_20, %c0_21] : memref<1x400xf32, #tpu.memory_space<vmem>>, vector<1x400xf32>
    %30 = vector.broadcast %29 : vector<1x400xf32> to vector<8x400xf32>
    %31 = arith.addf %28, %30 : vector<8x400xf32>
    %cst_22 = arith.constant 0.000000e+00 : f32
    %32 = vector.broadcast %cst_22 : f32 to vector<8x400xf32>
    %33 = arith.maximumf %31, %32 : vector<8x400xf32>
    %34 = arith.truncf %33 : vector<8x400xf32> to vector<8x400xbf16>
    %c0_23 = arith.constant 0 : index
    %c0_24 = arith.constant 0 : index
    %35 = vector.load %arg9[%c0_23, %c0_24] : memref<400x784xbf16, #tpu.memory_space<vmem>>, vector<400x784xbf16>
    %cst_25 = arith.constant dense<0.000000e+00> : vector<8x784xf32>
    %36 = tpu.matmul %34, %35, %cst_25 {dimension_numbers = #tpu.dot_dimension_numbers<[1], [0], [0], [1], [0, 0, 1, 1], [], []>} : vector<8x400xbf16>, vector<400x784xbf16>, vector<8x784xf32> -> vector<8x784xf32>
    %c0_26 = arith.constant 0 : index
    %c0_27 = arith.constant 0 : index
    %37 = vector.load %arg10[%c0_26, %c0_27] : memref<1x784xf32, #tpu.memory_space<vmem>>, vector<1x784xf32>
    %38 = vector.broadcast %37 : vector<1x784xf32> to vector<8x784xf32>
    %39 = arith.addf %36, %38 : vector<8x784xf32>
    %cst_28 = arith.constant 0.000000e+00 : f32
    %40 = vector.broadcast %cst_28 : f32 to vector<8x784xf32>
    %41 = arith.subf %40, %39 : vector<8x784xf32>
    %42 = math.exp %41 : vector<8x784xf32>
    %cst_29 = arith.constant 1.000000e+00 : f32
    %43 = vector.broadcast %cst_29 : f32 to vector<8x784xf32>
    %44 = arith.addf %43, %42 : vector<8x784xf32>
    %45 = tpu.reciprocal %44 {approx = true} : vector<8x784xf32> -> vector<8x784xf32>
    %46 = arith.truncf %45 : vector<8x784xf32> to vector<8x784xbf16>
    %c0_30 = arith.constant 0 : index
    %c0_31 = arith.constant 0 : index
    %47 = vector.load %arg11[%c0_30, %c0_31] : memref<8x784xbf16, #tpu.memory_space<vmem>>, vector<8x784xbf16>
    tpu.vector_store %arg11[%c0_30, %c0_31], %46 {strides = array<i32>} : memref<8x784xbf16, #tpu.memory_space<vmem>>, vector<8x784xbf16>,
    return
  }
  func.func @transform_0(%arg0: i32) -> (i32, i32) {
    %c0_i32 = arith.constant 0 : i32
    %c0_i32_0 = arith.constant 0 : i32
    return %arg0, %c0_i32 : i32, i32
  }
  func.func @transform_1(%arg0: i32) -> (i32, i32) {
    %c0_i32 = arith.constant 0 : i32
    %c0_i32_0 = arith.constant 0 : i32
    return %arg0, %c0_i32 : i32, i32
  }
  func.func @transform_2(%arg0: i32) -> (i32, i32) {
    %c0_i32 = arith.constant 0 : i32
    %c0_i32_0 = arith.constant 0 : i32
    %c0_i32_1 = arith.constant 0 : i32
    return %c0_i32, %c0_i32_0 : i32, i32
  }
  func.func @transform_3(%arg0: i32) -> (i32, i32) {
    %c0_i32 = arith.constant 0 : i32
    %c0_i32_0 = arith.constant 0 : i32
    %c0_i32_1 = arith.constant 0 : i32
    return %c0_i32, %c0_i32_0 : i32, i32
  }
  func.func @transform_4(%arg0: i32) -> (i32, i32) {
    %c0_i32 = arith.constant 0 : i32
    %c0_i32_0 = arith.constant 0 : i32
    %c0_i32_1 = arith.constant 0 : i32
    return %c0_i32, %c0_i32_0 : i32, i32
  }
  func.func @transform_5(%arg0: i32) -> (i32, i32) {
    %c0_i32 = arith.constant 0 : i32
    %c0_i32_0 = arith.constant 0 : i32
    %c0_i32_1 = arith.constant 0 : i32
    return %c0_i32, %c0_i32_0 : i32, i32
  }
  func.func @transform_6(%arg0: i32) -> (i32, i32) {
    %c0_i32 = arith.constant 0 : i32
    %c0_i32_0 = arith.constant 0 : i32
    %c0_i32_1 = arith.constant 0 : i32
    return %c0_i32, %c0_i32_0 : i32, i32
  }
  func.func @transform_7(%arg0: i32) -> (i32, i32) {
    %c0_i32 = arith.constant 0 : i32
    %c0_i32_0 = arith.constant 0 : i32
    %c0_i32_1 = arith.constant 0 : i32
    return %c0_i32, %c0_i32_0 : i32, i32
  }
  func.func @transform_8(%arg0: i32) -> (i32, i32) {
    %c0_i32 = arith.constant 0 : i32
    %c0_i32_0 = arith.constant 0 : i32
    %c0_i32_1 = arith.constant 0 : i32
    return %c0_i32, %c0_i32_0 : i32, i32
  }
  func.func @transform_9(%arg0: i32) -> (i32, i32) {
    %c0_i32 = arith.constant 0 : i32
    %c0_i32_0 = arith.constant 0 : i32
    %c0_i32_1 = arith.constant 0 : i32
    return %c0_i32, %c0_i32_0 : i32, i32
  }
  func.func @transform_10(%arg0: i32) -> (i32, i32) {
    %c0_i32 = arith.constant 0 : i32
    %c0_i32_0 = arith.constant 0 : i32
    return %arg0, %c0_i32 : i32, i32
  }
  func.func @transform_11(%arg0: i32) -> (i32, i32) {
    %c0_i32 = arith.constant 0 : i32
    %c0_i32_0 = arith.constant 0 : i32
    return %arg0, %c0_i32 : i32, i32
  }
}

</mosaic_0001>

<llo_original>
// kernel: vae_forward.1
$region0: #{vae_forward.1}
  #allocation0 [shape = 'u32[]', space=smem, size = 0x4, offset = 0x4, fixed_abs, tag = 'smem constant byte address 0x4 - core index']
  #allocation1 [shape = 'u32[144,128]{1,0:T(1,128)}', space=vmem, size = 0x12000, scoped, tag = 'internal scratch']
  %s0 = inlined_call_operand.vmem [shape: bf16[8,784], index: 0, kind: input, shape index: {}]
  %s1 = inlined_call_operand.vmem [shape: f32[8,20], index: 1, kind: input, shape index: {}]
  %s2 = inlined_call_operand.vmem [shape: bf16[784,400], index: 2, kind: input, shape index: {}]
  %s3 = inlined_call_operand.vmem [shape: f32[1,400], index: 3, kind: input, shape index: {}]
  %s4 = inlined_call_operand.vmem [shape: bf16[400,128], index: 4, kind: input, shape index: {}]
  %s5 = inlined_call_operand.vmem [shape: f32[1,128], index: 5, kind: input, shape index: {}]
  %s6 = inlined_call_operand.vmem [shape: bf16[128,400], index: 6, kind: input, shape index: {}]
  %s7 = inlined_call_operand.vmem [shape: f32[1,400], index: 7, kind: input, shape index: {}]
  %s8 = inlined_call_operand.vmem [shape: bf16[400,784], index: 8, kind: input, shape index: {}]
  %s9 = inlined_call_operand.vmem [shape: f32[1,784], index: 9, kind: input, shape index: {}]
  %s10 = inlined_call_operand.hbm [shape: bf16[8,784], index: 10, kind: output, shape index: {0}]
  %s11 = inlined_call_operand.vmem [shape: f32[8,40], index: 11, kind: output, shape index: {1}]
  %12 = xla_tuple %s10, %s11
  %s13 = sld [smem:[#allocation0]]
  $region58: #{vae_forward.1} parent=0
    _
  %s15 = ssub.s32 1, %s13
  %s16 = scalar_select 0, %s15, %s13
  $region1: #{vae_forward.1} parent=0
    #allocation2 [shape = 'u8[14336]{0}', space=vmem, size = 0x3800, scoped, tag = 'output window, operand 0, single buffered']
    #allocation3 [shape = 's32[1]{0}', space=sflag, size = 0x4, scoped, tag = 'scoped memory for vae_forward.1']
    %17 = vsyncpa [#allocation3], 0
    // Predicated region
    $region2: #{vae_forward.1} parent=1 // pred_check
      _
    $region3: #{vae_forward.1} parent=1 // pred_check_branch
      %19 = sbr.rel (0) target = $region5
    $region4: #{vae_forward.1} parent=1 // pred_region
      _
    $region5: #{vae_forward.1} parent=1 // pred_fallthru
      _
    // Predicated region
    $region6: #{vae_forward.1} parent=1 // pred_check
      _
    $region7: #{vae_forward.1} parent=1 // pred_check_branch
      %21 = sbr.rel (0) target = $region9
    $region8: #{vae_forward.1} parent=1 // pred_region
      _
    $region9: #{vae_forward.1} parent=1 // pred_fallthru
      _
    // Predicated region
    $region10: #{vae_forward.1} parent=1 // pred_check
      _
    $region11: #{vae_forward.1} parent=1 // pred_check_branch
      %23 = sbr.rel (0) target = $region13
    $region12: #{vae_forward.1} parent=1 // pred_region
      _
    $region13: #{vae_forward.1} parent=1 // pred_fallthru
      _
    // Predicated region
    $region14: #{vae_forward.1} parent=1 // pred_check
      _
    $region15: #{vae_forward.1} parent=1 // pred_check_branch
      %25 = sbr.rel (0) target = $region17
    $region16: #{vae_forward.1} parent=1 // pred_region
      _
    $region17: #{vae_forward.1} parent=1 // pred_fallthru
      _
    // Predicated region
    $region18: #{vae_forward.1} parent=1 // pred_check
      _
    $region19: #{vae_forward.1} parent=1 // pred_check_branch
      %27 = sbr.rel (0) target = $region21
    $region20: #{vae_forward.1} parent=1 // pred_region
      _
    $region21: #{vae_forward.1} parent=1 // pred_fallthru
      _
    // Predicated region
    $region22: #{vae_forward.1} parent=1 // pred_check
      _
    $region23: #{vae_forward.1} parent=1 // pred_check_branch
      %29 = sbr.rel (0) target = $region25
    $region24: #{vae_forward.1} parent=1 // pred_region
      _
    $region25: #{vae_forward.1} parent=1 // pred_fallthru
      _
    // Predicated region
    $region26: #{vae_forward.1} parent=1 // pred_check
      _
    $region27: #{vae_forward.1} parent=1 // pred_check_branch
      %31 = sbr.rel (0) target = $region29
    $region28: #{vae_forward.1} parent=1 // pred_region
      _
    $region29: #{vae_forward.1} parent=1 // pred_fallthru
      _
    // Predicated region
    $region30: #{vae_forward.1} parent=1 // pred_check
      _
    $region31: #{vae_forward.1} parent=1 // pred_check_branch
      %33 = sbr.rel (0) target = $region33
    $region32: #{vae_forward.1} parent=1 // pred_region
      _
    $region33: #{vae_forward.1} parent=1 // pred_fallthru
      _
    // Predicated region
    $region34: #{vae_forward.1} parent=1 // pred_check
      _
    $region35: #{vae_forward.1} parent=1 // pred_check_branch
      %35 = sbr.rel (0) target = $region37
    $region36: #{vae_forward.1} parent=1 // pred_region
      _
    $region37: #{vae_forward.1} parent=1 // pred_fallthru
      _
    // Predicated region
    $region38: #{vae_forward.1} parent=1 // pred_check
      _
    $region39: #{vae_forward.1} parent=1 // pred_check_branch
      %37 = sbr.rel (0) target = $region41
    $region40: #{vae_forward.1} parent=1 // pred_region
      _
    $region41: #{vae_forward.1} parent=1 // pred_fallthru
      _
    %v39 = vld [vmem:[%s0] sm:$0xff]
    %v40 = vld [vmem:[%s0 + $0x8] sm:$0xff]
    %v41 = vld [vmem:[%s0 + $0x10] sm:$0xff]
    %v42 = vld [vmem:[%s0 + $0x18] sm:$0xf]
    %v43 = vld [vmem:[%s2] sm:$0xff]
    %v44 = vld [vmem:[%s2 + $0x8] sm:$0xff]
    %v45 = vld [vmem:[%s2 + $0x10] sm:$0xff]
    %v46 = vld [vmem:[%s2 + $0x18] sm:$0xff]
    %v47 = vld [vmem:[%s2 + $0x20] sm:$0xff]
    %v48 = vld [vmem:[%s2 + $0x28] sm:$0xff]
    %v49 = vld [vmem:[%s2 + $0x30] sm:$0xff]
    %v50 = vld [vmem:[%s2 + $0x38] sm:$0xff]
    %v51 = vld [vmem:[%s2 + $0x40] sm:$0xff]
    %v52 = vld [vmem:[%s2 + $0x48] sm:$0xff]
    %v53 = vld [vmem:[%s2 + $0x50] sm:$0xff]
    %v54 = vld [vmem:[%s2 + $0x58] sm:$0xff]
    %v55 = vld [vmem:[%s2 + $0x60] sm:$0xff]
    %v56 = vld [vmem:[%s2 + $0x68] sm:$0xff]
    %v57 = vld [vmem:[%s2 + $0x70] sm:$0xff]
    %v58 = vld [vmem:[%s2 + $0x78] sm:$0xff]
    %v59 = vld [vmem:[%s2 + $0x80] sm:$0xff]
    %v60 = vld [vmem:[%s2 + $0x88] sm:$0xff]
    %v61 = vld [vmem:[%s2 + $0x90] sm:$0xff]
    %v62 = vld [vmem:[%s2 + $0x98] sm:$0xff]
    %v63 = vld [vmem:[%s2 + $0xa0] sm:$0xff]
    %v64 = vld [vmem:[%s2 + $0xa8] sm:$0xff]
    %v65 = vld [vmem:[%s2 + $0xb0] sm:$0xff]
    %v66 = vld [vmem:[%s2 + $0xb8] sm:$0xff]
    %v67 = vld [vmem:[%s2 + $0xc0] sm:$0xff]
    %v68 = vld [vmem:[%s2 + $0xc8] sm:$0xff]
    %v69 = vld [vmem:[%s2 + $0xd0] sm:$0xff]
    %v70 = vld [vmem:[%s2 + $0xd8] sm:$0xff]
    %v71 = vld [vmem:[%s2 + $0xe0] sm:$0xff]
    %v72 = vld [vmem:[%s2 + $0xe8] sm:$0xff]
    %v73 = vld [vmem:[%s2 + $0xf0] sm:$0xff]
    %v74 = vld [vmem:[%s2 + $0xf8] sm:$0xff]
    %v75 = vld [vmem:[%s2 + $0x100] sm:$0xff]
    %v76 = vld [vmem:[%s2 + $0x108] sm:$0xff]
    %v77 = vld [vmem:[%s2 + $0x110] sm:$0xff]
    %v78 = vld [vmem:[%s2 + $0x118] sm:$0xff]
    %v79 = vld [vmem:[%s2 + $0x120] sm:$0xff]
    %v80 = vld [vmem:[%s2 + $0x128] sm:$0xff]
    %v81 = vld [vmem:[%s2 + $0x130] sm:$0xff]
    %v82 = vld [vmem:[%s2 + $0x138] sm:$0xff]
    %v83 = vld [vmem:[%s2 + $0x140] sm:$0xff]
    %v84 = vld [vmem:[%s2 + $0x148] sm:$0xff]
    %v85 = vld [vmem:[%s2 + $0x150] sm:$0xff]
    %v86 = vld [vmem:[%s2 + $0x158] sm:$0xff]
    %v87 = vld [vmem:[%s2 + $0x160] sm:$0xff]
    %v88 = vld [vmem:[%s2 + $0x168] sm:$0xff]
    %v89 = vld [vmem:[%s2 + $0x170] sm:$0xff]
    %v90 = vld [vmem:[%s2 + $0x178] sm:$0xff]
    %v91 = vld [vmem:[%s2 + $0x180] sm:$0xff]
    %v92 = vld [vmem:[%s2 + $0x188] sm:$0xff]
    %v93 = vld [vmem:[%s2 + $0x190] sm:$0xff]
    %v94 = vld [vmem:[%s2 + $0x198] sm:$0xff]
    %v95 = vld [vmem:[%s2 + $0x1a0] sm:$0xff]
    %v96 = vld [vmem:[%s2 + $0x1a8] sm:$0xff]
    %v97 = vld [vmem:[%s2 + $0x1b0] sm:$0xff]
    %v98 = vld [vmem:[%s2 + $0x1b8] sm:$0xff]
    %v99 = vld [vmem:[%s2 + $0x1c0] sm:$0xff]
    %v100 = vld [vmem:[%s2 + $0x1c8] sm:$0xff]
    %v101 = vld [vmem:[%s2 + $0x1d0] sm:$0xff]
    %v102 = vld [vmem:[%s2 + $0x1d8] sm:$0xff]
    %v103 = vld [vmem:[%s2 + $0x1e0] sm:$0xff]
    %v104 = vld [vmem:[%s2 + $0x1e8] sm:$0xff]
    %v105 = vld [vmem:[%s2 + $0x1f0] sm:$0xff]
    %v106 = vld [vmem:[%s2 + $0x1f8] sm:$0xff]
    %v107 = vld [vmem:[%s2 + $0x200] sm:$0xff]
    %v108 = vld [vmem:[%s2 + $0x208] sm:$0xff]
    %v109 = vld [vmem:[%s2 + $0x210] sm:$0xff]
    %v110 = vld [vmem:[%s2 + $0x218] sm:$0xff]
    %v111 = vld [vmem:[%s2 + $0x220] sm:$0xff]
    %v112 = vld [vmem:[%s2 + $0x228] sm:$0xff]
    %v113 = vld [vmem:[%s2 + $0x230] sm:$0xff]
    %v114 = vld [vmem:[%s2 + $0x238] sm:$0xff]
    %v115 = vld [vmem:[%s2 + $0x240] sm:$0xff]
    %v116 = vld [vmem:[%s2 + $0x248] sm:$0xff]
    %v117 = vld [vmem:[%s2 + $0x250] sm:$0xff]
    %v118 = vld [vmem:[%s2 + $0x258] sm:$0xff]
    %v119 = vld [vmem:[%s2 + $0x260] sm:$0xff]
    %v120 = vld [vmem:[%s2 + $0x268] sm:$0xff]
    %v121 = vld [vmem:[%s2 + $0x270] sm:$0xff]
    %v122 = vld [vmem:[%s2 + $0x278] sm:$0xff]
    %v123 = vld [vmem:[%s2 + $0x280] sm:$0xff]
    %v124 = vld [vmem:[%s2 + $0x288] sm:$0xff]
    %v125 = vld [vmem:[%s2 + $0x290] sm:$0xff]
    %v126 = vld [vmem:[%s2 + $0x298] sm:$0xff]
    %v127 = vld [vmem:[%s2 + $0x2a0] sm:$0xff]
    %v128 = vld [vmem:[%s2 + $0x2a8] sm:$0xff]
    %v129 = vld [vmem:[%s2 + $0x2b0] sm:$0xff]
    %v130 = vld [vmem:[%s2 + $0x2b8] sm:$0xff]
    %v131 = vld [vmem:[%s2 + $0x2c0] sm:$0xff]
    %v132 = vld [vmem:[%s2 + $0x2c8] sm:$0xff]
    %v133 = vld [vmem:[%s2 + $0x2d0] sm:$0xff]
    %v134 = vld [vmem:[%s2 + $0x2d8] sm:$0xff]
    %v135 = vld [vmem:[%s2 + $0x2e0] sm:$0xff]
    %v136 = vld [vmem:[%s2 + $0x2e8] sm:$0xff]
    %v137 = vld [vmem:[%s2 + $0x2f0] sm:$0xff]
    %v138 = vld [vmem:[%s2 + $0x2f8] sm:$0xff]
    %v139 = vld [vmem:[%s2 + $0x300] sm:$0xff]
    %v140 = vld [vmem:[%s2 + $0x308] sm:$0xff]
    %v141 = vld [vmem:[%s2 + $0x310] sm:$0xff]
    %v142 = vld [vmem:[%s2 + $0x318] sm:$0xff]
    %v143 = vld [vmem:[%s2 + $0x320] sm:$0xff]
    %v144 = vld [vmem:[%s2 + $0x328] sm:$0xff]
    %v145 = vld [vmem:[%s2 + $0x330] sm:$0xff]
    %v146 = vld [vmem:[%s2 + $0x338] sm:$0xff]
    %v147 = vld [vmem:[%s2 + $0x340] sm:$0xff]
    %v148 = vld [vmem:[%s2 + $0x348] sm:$0xff]
    %v149 = vld [vmem:[%s2 + $0x350] sm:$0xff]
    %v150 = vld [vmem:[%s2 + $0x358] sm:$0xff]
    %v151 = vld [vmem:[%s2 + $0x360] sm:$0xff]
    %v152 = vld [vmem:[%s2 + $0x368] sm:$0xff]
    %v153 = vld [vmem:[%s2 + $0x370] sm:$0xff]
    %v154 = vld [vmem:[%s2 + $0x378] sm:$0xff]
    %v155 = vld [vmem:[%s2 + $0x380] sm:$0xff]
    %v156 = vld [vmem:[%s2 + $0x388] sm:$0xff]
    %v157 = vld [vmem:[%s2 + $0x390] sm:$0xff]
    %v158 = vld [vmem:[%s2 + $0x398] sm:$0xff]
    %v159 = vld [vmem:[%s2 + $0x3a0] sm:$0xff]
    %v160 = vld [vmem:[%s2 + $0x3a8] sm:$0xff]
    %v161 = vld [vmem:[%s2 + $0x3b0] sm:$0xff]
    %v162 = vld [vmem:[%s2 + $0x3b8] sm:$0xff]
    %v163 = vld [vmem:[%s2 + $0x3c0] sm:$0xff]
    %v164 = vld [vmem:[%s2 + $0x3c8] sm:$0xff]
    %v165 = vld [vmem:[%s2 + $0x3d0] sm:$0xff]
    %v166 = vld [vmem:[%s2 + $0x3d8] sm:$0xff]
    %v167 = vld [vmem:[%s2 + $0x3e0] sm:$0xff]
    %v168 = vld [vmem:[%s2 + $0x3e8] sm:$0xff]
    %v169 = vld [vmem:[%s2 + $0x3f0] sm:$0xff]
    %v170 = vld [vmem:[%s2 + $0x3f8] sm:$0xff]
    %v171 = vld [vmem:[%s2 + $0x400] sm:$0xff]
    %v172 = vld [vmem:[%s2 + $0x408] sm:$0xff]
    %v173 = vld [vmem:[%s2 + $0x410] sm:$0xff]
    %v174 = vld [vmem:[%s2 + $0x418] sm:$0xff]
    %v175 = vld [vmem:[%s2 + $0x420] sm:$0xff]
    %v176 = vld [vmem:[%s2 + $0x428] sm:$0xff]
    %v177 = vld [vmem:[%s2 + $0x430] sm:$0xff]
    %v178 = vld [vmem:[%s2 + $0x438] sm:$0xff]
    %v179 = vld [vmem:[%s2 + $0x440] sm:$0xff]
    %v180 = vld [vmem:[%s2 + $0x448] sm:$0xff]
    %v181 = vld [vmem:[%s2 + $0x450] sm:$0xff]
    %v182 = vld [vmem:[%s2 + $0x458] sm:$0xff]
    %v183 = vld [vmem:[%s2 + $0x460] sm:$0xff]
    %v184 = vld [vmem:[%s2 + $0x468] sm:$0xff]
    %v185 = vld [vmem:[%s2 + $0x470] sm:$0xff]
    %v186 = vld [vmem:[%s2 + $0x478] sm:$0xff]
    %v187 = vld [vmem:[%s2 + $0x480] sm:$0xff]
    %v188 = vld [vmem:[%s2 + $0x488] sm:$0xff]
    %v189 = vld [vmem:[%s2 + $0x490] sm:$0xff]
    %v190 = vld [vmem:[%s2 + $0x498] sm:$0xff]
    %v191 = vld [vmem:[%s2 + $0x4a0] sm:$0xff]
    %v192 = vld [vmem:[%s2 + $0x4a8] sm:$0xff]
    %v193 = vld [vmem:[%s2 + $0x4b0] sm:$0xff]
    %v194 = vld [vmem:[%s2 + $0x4b8] sm:$0xff]
    %v195 = vld [vmem:[%s2 + $0x4c0] sm:$0xff]
    %v196 = vld [vmem:[%s2 + $0x4c8] sm:$0xff]
    %v197 = vld [vmem:[%s2 + $0x4d0] sm:$0xff]
    %v198 = vld [vmem:[%s2 + $0x4d8] sm:$0xff]
    %v199 = vld [vmem:[%s2 + $0x4e0] sm:$0xff]
    %v200 = vld [vmem:[%s2 + $0x4e8] sm:$0xff]
    %v201 = vld [vmem:[%s2 + $0x4f0] sm:$0xff]
    %v202 = vld [vmem:[%s2 + $0x4f8] sm:$0xff]
    %v203 = vld [vmem:[%s2 + $0x500] sm:$0xff]
    %v204 = vld [vmem:[%s2 + $0x508] sm:$0xff]
    %v205 = vld [vmem:[%s2 + $0x510] sm:$0xff]
    %v206 = vld [vmem:[%s2 + $0x518] sm:$0xff]
    %v207 = vld [vmem:[%s2 + $0x520] sm:$0xff]
    %v208 = vld [vmem:[%s2 + $0x528] sm:$0xff]
    %v209 = vld [vmem:[%s2 + $0x530] sm:$0xff]
    %v210 = vld [vmem:[%s2 + $0x538] sm:$0xff]
    %v211 = vld [vmem:[%s2 + $0x540] sm:$0xff]
    %v212 = vld [vmem:[%s2 + $0x548] sm:$0xff]
    %v213 = vld [vmem:[%s2 + $0x550] sm:$0xff]
    %v214 = vld [vmem:[%s2 + $0x558] sm:$0xff]
    %v215 = vld [vmem:[%s2 + $0x560] sm:$0xff]
    %v216 = vld [vmem:[%s2 + $0x568] sm:$0xff]
    %v217 = vld [vmem:[%s2 + $0x570] sm:$0xff]
    %v218 = vld [vmem:[%s2 + $0x578] sm:$0xff]
    %v219 = vld [vmem:[%s2 + $0x580] sm:$0xff]
    %v220 = vld [vmem:[%s2 + $0x588] sm:$0xff]
    %v221 = vld [vmem:[%s2 + $0x590] sm:$0xff]
    %v222 = vld [vmem:[%s2 + $0x598] sm:$0xff]
    %v223 = vld [vmem:[%s2 + $0x5a0] sm:$0xff]
    %v224 = vld [vmem:[%s2 + $0x5a8] sm:$0xff]
    %v225 = vld [vmem:[%s2 + $0x5b0] sm:$0xff]
    %v226 = vld [vmem:[%s2 + $0x5b8] sm:$0xff]
    %v227 = vld [vmem:[%s2 + $0x5c0] sm:$0xff]
    %v228 = vld [vmem:[%s2 + $0x5c8] sm:$0xff]
    %v229 = vld [vmem:[%s2 + $0x5d0] sm:$0xff]
    %v230 = vld [vmem:[%s2 + $0x5d8] sm:$0xff]
    %v231 = vld [vmem:[%s2 + $0x5e0] sm:$0xff]
    %v232 = vld [vmem:[%s2 + $0x5e8] sm:$0xff]
    %v233 = vld [vmem:[%s2 + $0x5f0] sm:$0xff]
    %v234 = vld [vmem:[%s2 + $0x5f8] sm:$0xff]
    %v235 = vld [vmem:[%s2 + $0x600] sm:$0xff]
    %v236 = vld [vmem:[%s2 + $0x608] sm:$0xff]
    %v237 = vld [vmem:[%s2 + $0x610] sm:$0xff]
    %v238 = vld [vmem:[%s2 + $0x618] sm:$0xff]
    %v239 = vld [vmem:[%s3] sm:$0xf]
    %v241 = vlaneseq
    %v242 = vshrl.u32 %v241, 7
    %v243 = vsub.s32 0, %v242
    %v244 = vrot.slane %v239, %v243
    %v245 = vlaneseq
    %v246 = vshrl.u32 %v245, 7
    %v247 = vsub.s32 1, %v246
    %v248 = vrot.slane %v239, %v247
    %v249 = vlaneseq
    %v250 = vshrl.u32 %v249, 7
    %v251 = vsub.s32 2, %v250
    %v252 = vrot.slane %v239, %v251
    %v253 = vlaneseq
    %v254 = vshrl.u32 %v253, 7
    %v255 = vsub.s32 3, %v254
    %v256 = vrot.slane %v239, %v255
    %v265 = vunpack.c.l.b16 %v39
    %v266 = vunpack.c.h.b16 %v39
    %v267 = vunpack.c.l.b16 %v40
    %v268 = vunpack.c.h.b16 %v40
    %v269 = vunpack.c.l.b16 %v41
    %v270 = vunpack.c.h.b16 %v41
    %v271 = vunpack.c.l.b16 %v42
    %v272 = vpack.c.b16 %v265, %v265
    %v273 = vpack.c.b16 %v266, %v266
    %v274 = vpack.c.b16 %v267, %v267
    %v275 = vpack.c.b16 %v268, %v268
    %v276 = vpack.c.b16 %v269, %v269
    %v277 = vpack.c.b16 %v270, %v270
    %v278 = vpack.c.b16 %v271, %v271
    %v481 = vunpack.c.l.b16 %v43
    %v482 = vunpack.c.h.b16 %v43
    %v483 = vunpack.c.l.b16 %v44
    %v484 = vunpack.c.h.b16 %v44
    %v485 = vunpack.c.l.b16 %v45
    %v486 = vunpack.c.h.b16 %v45
    %v487 = vunpack.c.l.b16 %v46
    %v488 = vunpack.c.h.b16 %v46
    %v489 = vunpack.c.l.b16 %v47
    %v490 = vunpack.c.h.b16 %v47
    %v491 = vunpack.c.l.b16 %v48
    %v492 = vunpack.c.h.b16 %v48
    %v493 = vunpack.c.l.b16 %v49
    %v494 = vunpack.c.h.b16 %v49
    %v495 = vunpack.c.l.b16 %v50
    %v496 = vunpack.c.h.b16 %v50
    %v497 = vunpack.c.l.b16 %v51
    %v498 = vunpack.c.h.b16 %v51
    %v499 = vunpack.c.l.b16 %v52
    %v500 = vunpack.c.h.b16 %v52
    %v501 = vunpack.c.l.b16 %v53
    %v502 = vunpack.c.h.b16 %v53
    %v503 = vunpack.c.l.b16 %v54
    %v504 = vunpack.c.h.b16 %v54
    %v505 = vunpack.c.l.b16 %v55
    %v506 = vunpack.c.h.b16 %v55
    %v507 = vunpack.c.l.b16 %v56
    %v508 = vunpack.c.h.b16 %v56
    %v509 = vunpack.c.l.b16 %v57
    %v510 = vunpack.c.h.b16 %v57
    %v511 = vunpack.c.l.b16 %v58
    %v512 = vunpack.c.h.b16 %v58
    %v513 = vunpack.c.l.b16 %v59
    %v514 = vunpack.c.h.b16 %v59
    %v515 = vunpack.c.l.b16 %v60
    %v516 = vunpack.c.h.b16 %v60
    %v517 = vunpack.c.l.b16 %v61
    %v518 = vunpack.c.h.b16 %v61
    %v519 = vunpack.c.l.b16 %v62
    %v520 = vunpack.c.h.b16 %v62
    %v521 = vunpack.c.l.b16 %v63
    %v522 = vunpack.c.h.b16 %v63
    %v523 = vunpack.c.l.b16 %v64
    %v524 = vunpack.c.h.b16 %v64
    %v525 = vunpack.c.l.b16 %v65
    %v526 = vunpack.c.h.b16 %v65
    %v527 = vunpack.c.l.b16 %v66
    %v528 = vunpack.c.h.b16 %v66
    %v529 = vunpack.c.l.b16 %v67
    %v530 = vunpack.c.h.b16 %v67
    %v531 = vunpack.c.l.b16 %v68
    %v532 = vunpack.c.h.b16 %v68
    %v533 = vunpack.c.l.b16 %v69
    %v534 = vunpack.c.h.b16 %v69
    %v535 = vunpack.c.l.b16 %v70
    %v536 = vunpack.c.h.b16 %v70
    %v537 = vunpack.c.l.b16 %v71
    %v538 = vunpack.c.h.b16 %v71
    %v539 = vunpack.c.l.b16 %v72
    %v540 = vunpack.c.h.b16 %v72
    %v541 = vunpack.c.l.b16 %v73
    %v542 = vunpack.c.h.b16 %v73
    %v543 = vunpack.c.l.b16 %v74
    %v544 = vunpack.c.h.b16 %v74
    %v545 = vunpack.c.l.b16 %v75
    %v546 = vunpack.c.h.b16 %v75
    %v547 = vunpack.c.l.b16 %v76
    %v548 = vunpack.c.h.b16 %v76
    %v549 = vunpack.c.l.b16 %v77
    %v550 = vunpack.c.h.b16 %v77
    %v551 = vunpack.c.l.b16 %v78
    %v552 = vunpack.c.h.b16 %v78
    %v553 = vunpack.c.l.b16 %v79
    %v554 = vunpack.c.h.b16 %v79
    %v555 = vunpack.c.l.b16 %v80
    %v556 = vunpack.c.h.b16 %v80
    %v557 = vunpack.c.l.b16 %v81
    %v558 = vunpack.c.h.b16 %v81
    %v559 = vunpack.c.l.b16 %v82
    %v560 = vunpack.c.h.b16 %v82
    %v561 = vunpack.c.l.b16 %v83
    %v562 = vunpack.c.h.b16 %v83
    %v563 = vunpack.c.l.b16 %v84
    %v564 = vunpack.c.h.b16 %v84
    %v565 = vunpack.c.l.b16 %v85
    %v566 = vunpack.c.h.b16 %v85
    %v567 = vunpack.c.l.b16 %v86
    %v568 = vunpack.c.h.b16 %v86
    %v569 = vunpack.c.l.b16 %v87
    %v570 = vunpack.c.h.b16 %v87
    %v571 = vunpack.c.l.b16 %v88
    %v572 = vunpack.c.h.b16 %v88
    %v573 = vunpack.c.l.b16 %v89
    %v574 = vunpack.c.h.b16 %v89
    %v575 = vunpack.c.l.b16 %v90
    %v576 = vunpack.c.h.b16 %v90
    %v577 = vunpack.c.l.b16 %v91
    %v578 = vunpack.c.h.b16 %v91
    %v579 = vunpack.c.l.b16 %v92
    %v580 = vunpack.c.h.b16 %v92
    %v581 = vunpack.c.l.b16 %v93
    %v582 = vunpack.c.h.b16 %v93
    %v583 = vunpack.c.l.b16 %v94
    %v584 = vunpack.c.h.b16 %v94
    %v585 = vunpack.c.l.b16 %v95
    %v586 = vunpack.c.h.b16 %v95
    %v587 = vunpack.c.l.b16 %v96
    %v588 = vunpack.c.h.b16 %v96
    %v589 = vunpack.c.l.b16 %v97
    %v590 = vunpack.c.h.b16 %v97
    %v591 = vunpack.c.l.b16 %v98
    %v592 = vunpack.c.h.b16 %v98
    %v593 = vunpack.c.l.b16 %v99
    %v594 = vunpack.c.h.b16 %v99
    %v595 = vunpack.c.l.b16 %v100
    %v596 = vunpack.c.h.b16 %v100
    %v597 = vunpack.c.l.b16 %v101
    %v598 = vunpack.c.h.b16 %v101
    %v599 = vunpack.c.l.b16 %v102
    %v600 = vunpack.c.h.b16 %v102
    %v601 = vunpack.c.l.b16 %v103
    %v602 = vunpack.c.h.b16 %v103
    %v603 = vunpack.c.l.b16 %v104
    %v604 = vunpack.c.h.b16 %v104
    %v605 = vunpack.c.l.b16 %v105
    %v606 = vunpack.c.h.b16 %v105
    %v607 = vunpack.c.l.b16 %v106
    %v608 = vunpack.c.h.b16 %v106
    %v609 = vunpack.c.l.b16 %v107
    %v610 = vunpack.c.h.b16 %v107
    %v611 = vunpack.c.l.b16 %v108
    %v612 = vunpack.c.h.b16 %v108
    %v613 = vunpack.c.l.b16 %v109
    %v614 = vunpack.c.h.b16 %v109
    %v615 = vunpack.c.l.b16 %v110
    %v616 = vunpack.c.h.b16 %v110
    %v617 = vunpack.c.l.b16 %v111
    %v618 = vunpack.c.h.b16 %v111
    %v619 = vunpack.c.l.b16 %v112
    %v620 = vunpack.c.h.b16 %v112
    %v621 = vunpack.c.l.b16 %v113
    %v622 = vunpack.c.h.b16 %v113
    %v623 = vunpack.c.l.b16 %v114
    %v624 = vunpack.c.h.b16 %v114
    %v625 = vunpack.c.l.b16 %v115
    %v626 = vunpack.c.h.b16 %v115
    %v627 = vunpack.c.l.b16 %v116
    %v628 = vunpack.c.h.b16 %v116
    %v629 = vunpack.c.l.b16 %v117
    %v630 = vunpack.c.h.b16 %v117
    %v631 = vunpack.c.l.b16 %v118
    %v632 = vunpack.c.h.b16 %v118
    %v633 = vunpack.c.l.b16 %v119
    %v634 = vunpack.c.h.b16 %v119
    %v635 = vunpack.c.l.b16 %v120
    %v636 = vunpack.c.h.b16 %v120
    %v637 = vunpack.c.l.b16 %v121
    %v638 = vunpack.c.h.b16 %v121
    %v639 = vunpack.c.l.b16 %v122
    %v640 = vunpack.c.h.b16 %v122
    %v641 = vunpack.c.l.b16 %v123
    %v642 = vunpack.c.h.b16 %v123
    %v643 = vunpack.c.l.b16 %v124
    %v644 = vunpack.c.h.b16 %v124
    %v645 = vunpack.c.l.b16 %v125
    %v646 = vunpack.c.h.b16 %v125
    %v647 = vunpack.c.l.b16 %v126
    %v648 = vunpack.c.h.b16 %v126
    %v649 = vunpack.c.l.b16 %v127
    %v650 = vunpack.c.h.b16 %v127
    %v651 = vunpack.c.l.b16 %v128
    %v652 = vunpack.c.h.b16 %v128
    %v653 = vunpack.c.l.b16 %v129
    %v654 = vunpack.c.h.b16 %v129
    %v655 = vunpack.c.l.b16 %v130
    %v656 = vunpack.c.h.b16 %v130
    %v657 = vunpack.c.l.b16 %v131
    %v658 = vunpack.c.h.b16 %v131
    %v659 = vunpack.c.l.b16 %v132
    %v660 = vunpack.c.h.b16 %v132
    %v661 = vunpack.c.l.b16 %v133
    %v662 = vunpack.c.h.b16 %v133
    %v663 = vunpack.c.l.b16 %v134
    %v664 = vunpack.c.h.b16 %v134
    %v665 = vunpack.c.l.b16 %v135
    %v666 = vunpack.c.h.b16 %v135
    %v667 = vunpack.c.l.b16 %v136
    %v668 = vunpack.c.h.b16 %v136
    %v669 = vunpack.c.l.b16 %v137
    %v670 = vunpack.c.h.b16 %v137
    %v671 = vunpack.c.l.b16 %v138
    %v672 = vunpack.c.h.b16 %v138
    %v673 = vunpack.c.l.b16 %v139
    %v674 = vunpack.c.h.b16 %v139
    %v675 = vunpack.c.l.b16 %v140
    %v676 = vunpack.c.h.b16 %v140
    %v677 = vunpack.c.l.b16 %v141
    %v678 = vunpack.c.h.b16 %v141
    %v679 = vunpack.c.l.b16 %v142
    %v680 = vunpack.c.h.b16 %v142
    %v681 = vunpack.c.l.b16 %v143
    %v682 = vunpack.c.h.b16 %v143
    %v683 = vunpack.c.l.b16 %v144
    %v684 = vunpack.c.h.b16 %v144
    %v685 = vunpack.c.l.b16 %v145
    %v686 = vunpack.c.h.b16 %v145
    %v687 = vunpack.c.l.b16 %v146
    %v688 = vunpack.c.h.b16 %v146
    %v689 = vunpack.c.l.b16 %v147
    %v690 = vunpack.c.h.b16 %v147
    %v691 = vunpack.c.l.b16 %v148
    %v692 = vunpack.c.h.b16 %v148
    %v693 = vunpack.c.l.b16 %v149
    %v694 = vunpack.c.h.b16 %v149
    %v695 = vunpack.c.l.b16 %v150
    %v696 = vunpack.c.h.b16 %v150
    %v697 = vunpack.c.l.b16 %v151
    %v698 = vunpack.c.h.b16 %v151
    %v699 = vunpack.c.l.b16 %v152
    %v700 = vunpack.c.h.b16 %v152
    %v701 = vunpack.c.l.b16 %v153
    %v702 = vunpack.c.h.b16 %v153
    %v703 = vunpack.c.l.b16 %v154
    %v704 = vunpack.c.h.b16 %v154
    %v705 = vunpack.c.l.b16 %v155
    %v706 = vunpack.c.h.b16 %v155
    %v707 = vunpack.c.l.b16 %v156
    %v708 = vunpack.c.h.b16 %v156
    %v709 = vunpack.c.l.b16 %v157
    %v710 = vunpack.c.h.b16 %v157
    %v711 = vunpack.c.l.b16 %v158
    %v712 = vunpack.c.h.b16 %v158
    %v713 = vunpack.c.l.b16 %v159
    %v714 = vunpack.c.h.b16 %v159
    %v715 = vunpack.c.l.b16 %v160
    %v716 = vunpack.c.h.b16 %v160
    %v717 = vunpack.c.l.b16 %v161
    %v718 = vunpack.c.h.b16 %v161
    %v719 = vunpack.c.l.b16 %v162
    %v720 = vunpack.c.h.b16 %v162
    %v721 = vunpack.c.l.b16 %v163
    %v722 = vunpack.c.h.b16 %v163
    %v723 = vunpack.c.l.b16 %v164
    %v724 = vunpack.c.h.b16 %v164
    %v725 = vunpack.c.l.b16 %v165
    %v726 = vunpack.c.h.b16 %v165
    %v727 = vunpack.c.l.b16 %v166
    %v728 = vunpack.c.h.b16 %v166
    %v729 = vunpack.c.l.b16 %v167
    %v730 = vunpack.c.h.b16 %v167
    %v731 = vunpack.c.l.b16 %v168
    %v732 = vunpack.c.h.b16 %v168
    %v733 = vunpack.c.l.b16 %v169
    %v734 = vunpack.c.h.b16 %v169
    %v735 = vunpack.c.l.b16 %v170
    %v736 = vunpack.c.h.b16 %v170
    %v737 = vunpack.c.l.b16 %v171
    %v738 = vunpack.c.h.b16 %v171
    %v739 = vunpack.c.l.b16 %v172
    %v740 = vunpack.c.h.b16 %v172
    %v741 = vunpack.c.l.b16 %v173
    %v742 = vunpack.c.h.b16 %v173
    %v743 = vunpack.c.l.b16 %v174
    %v744 = vunpack.c.h.b16 %v174
    %v745 = vunpack.c.l.b16 %v175
    %v746 = vunpack.c.h.b16 %v175
    %v747 = vunpack.c.l.b16 %v176
    %v748 = vunpack.c.h.b16 %v176
    %v749 = vunpack.c.l.b16 %v177
    %v750 = vunpack.c.h.b16 %v177
    %v751 = vunpack.c.l.b16 %v178
    %v752 = vunpack.c.h.b16 %v178
    %v753 = vunpack.c.l.b16 %v179
    %v754 = vunpack.c.h.b16 %v179
    %v755 = vunpack.c.l.b16 %v180
    %v756 = vunpack.c.h.b16 %v180
    %v757 = vunpack.c.l.b16 %v181
    %v758 = vunpack.c.h.b16 %v181
    %v759 = vunpack.c.l.b16 %v182
    %v760 = vunpack.c.h.b16 %v182
    %v761 = vunpack.c.l.b16 %v183
    %v762 = vunpack.c.h.b16 %v183
    %v763 = vunpack.c.l.b16 %v184
    %v764 = vunpack.c.h.b16 %v184
    %v765 = vunpack.c.l.b16 %v185
    %v766 = vunpack.c.h.b16 %v185
    %v767 = vunpack.c.l.b16 %v186
    %v768 = vunpack.c.h.b16 %v186
    %v769 = vunpack.c.l.b16 %v187
    %v770 = vunpack.c.h.b16 %v187
    %v771 = vunpack.c.l.b16 %v188
    %v772 = vunpack.c.h.b16 %v188
    %v773 = vunpack.c.l.b16 %v189
    %v774 = vunpack.c.h.b16 %v189
    %v775 = vunpack.c.l.b16 %v190
    %v776 = vunpack.c.h.b16 %v190
    %v777 = vunpack.c.l.b16 %v191
    %v778 = vunpack.c.h.b16 %v191
    %v779 = vunpack.c.l.b16 %v192
    %v780 = vunpack.c.h.b16 %v192
    %v781 = vunpack.c.l.b16 %v193
    %v782 = vunpack.c.h.b16 %v193
    %v783 = vunpack.c.l.b16 %v194
    %v784 = vunpack.c.h.b16 %v194
    %v785 = vunpack.c.l.b16 %v195
    %v786 = vunpack.c.h.b16 %v195
    %v787 = vunpack.c.l.b16 %v196
    %v788 = vunpack.c.h.b16 %v196
    %v789 = vunpack.c.l.b16 %v197
    %v790 = vunpack.c.h.b16 %v197
    %v791 = vunpack.c.l.b16 %v198
    %v792 = vunpack.c.h.b16 %v198
    %v793 = vunpack.c.l.b16 %v199
    %v794 = vunpack.c.h.b16 %v199
    %v795 = vunpack.c.l.b16 %v200
    %v796 = vunpack.c.h.b16 %v200
    %v797 = vunpack.c.l.b16 %v201
    %v798 = vunpack.c.h.b16 %v201
    %v799 = vunpack.c.l.b16 %v202
    %v800 = vunpack.c.h.b16 %v202
    %v801 = vunpack.c.l.b16 %v203
    %v802 = vunpack.c.h.b16 %v203
    %v803 = vunpack.c.l.b16 %v204
    %v804 = vunpack.c.h.b16 %v204
    %v805 = vunpack.c.l.b16 %v205
    %v806 = vunpack.c.h.b16 %v205
    %v807 = vunpack.c.l.b16 %v206
    %v808 = vunpack.c.h.b16 %v206
    %v809 = vunpack.c.l.b16 %v207
    %v810 = vunpack.c.h.b16 %v207
    %v811 = vunpack.c.l.b16 %v208
    %v812 = vunpack.c.h.b16 %v208
    %v813 = vunpack.c.l.b16 %v209
    %v814 = vunpack.c.h.b16 %v209
    %v815 = vunpack.c.l.b16 %v210
    %v816 = vunpack.c.h.b16 %v210
    %v817 = vunpack.c.l.b16 %v211
    %v818 = vunpack.c.h.b16 %v211
    %v819 = vunpack.c.l.b16 %v212
    %v820 = vunpack.c.h.b16 %v212
    %v821 = vunpack.c.l.b16 %v213
    %v822 = vunpack.c.h.b16 %v213
    %v823 = vunpack.c.l.b16 %v214
    %v824 = vunpack.c.h.b16 %v214
    %v825 = vunpack.c.l.b16 %v215
    %v826 = vunpack.c.h.b16 %v215
    %v827 = vunpack.c.l.b16 %v216
    %v828 = vunpack.c.h.b16 %v216
    %v829 = vunpack.c.l.b16 %v217
    %v830 = vunpack.c.h.b16 %v217
    %v831 = vunpack.c.l.b16 %v218
    %v832 = vunpack.c.h.b16 %v218
    %v833 = vunpack.c.l.b16 %v219
    %v834 = vunpack.c.h.b16 %v219
    %v835 = vunpack.c.l.b16 %v220
    %v836 = vunpack.c.h.b16 %v220
    %v837 = vunpack.c.l.b16 %v221
    %v838 = vunpack.c.h.b16 %v221
    %v839 = vunpack.c.l.b16 %v222
    %v840 = vunpack.c.h.b16 %v222
    %v841 = vunpack.c.l.b16 %v223
    %v842 = vunpack.c.h.b16 %v223
    %v843 = vunpack.c.l.b16 %v224
    %v844 = vunpack.c.h.b16 %v224
    %v845 = vunpack.c.l.b16 %v225
    %v846 = vunpack.c.h.b16 %v225
    %v847 = vunpack.c.l.b16 %v226
    %v848 = vunpack.c.h.b16 %v226
    %v849 = vunpack.c.l.b16 %v227
    %v850 = vunpack.c.h.b16 %v227
    %v851 = vunpack.c.l.b16 %v228
    %v852 = vunpack.c.h.b16 %v228
    %v853 = vunpack.c.l.b16 %v229
    %v854 = vunpack.c.h.b16 %v229
    %v855 = vunpack.c.l.b16 %v230
    %v856 = vunpack.c.h.b16 %v230
    %v857 = vunpack.c.l.b16 %v231
    %v858 = vunpack.c.h.b16 %v231
    %v859 = vunpack.c.l.b16 %v232
    %v860 = vunpack.c.h.b16 %v232
    %v861 = vunpack.c.l.b16 %v233
    %v862 = vunpack.c.h.b16 %v233
    %v863 = vunpack.c.l.b16 %v234
    %v864 = vunpack.c.h.b16 %v234
    %v865 = vunpack.c.l.b16 %v235
    %v866 = vunpack.c.h.b16 %v235
    %v867 = vunpack.c.l.b16 %v236
    %v868 = vunpack.c.h.b16 %v236
    %v869 = vunpack.c.l.b16 %v237
    %v870 = vunpack.c.h.b16 %v237
    %v871 = vunpack.c.l.b16 %v238
    %v872 = vunpack.c.h.b16 %v238
    %v873 = vpack.c.b16 %v485, %v481
    %v874 = vpack.c.b16 %v486, %v482
    %v875 = vpack.c.b16 %v487, %v483
    %v876 = vpack.c.b16 %v488, %v484
    %v877 = vpack.c.b16 %v493, %v489
    %v878 = vpack.c.b16 %v494, %v490
    %v879 = vpack.c.b16 %v495, %v491
    %v880 = vpack.c.b16 %v496, %v492
    %v881 = vpack.c.b16 %v501, %v497
    %v882 = vpack.c.b16 %v502, %v498
    %v883 = vpack.c.b16 %v503, %v499
    %v884 = vpack.c.b16 %v504, %v500
    %v885 = vpack.c.b16 %v509, %v505
    %v886 = vpack.c.b16 %v510, %v506
    %v887 = vpack.c.b16 %v511, %v507
    %v888 = vpack.c.b16 %v512, %v508
    %v889 = vpack.c.b16 %v517, %v513
    %v890 = vpack.c.b16 %v518, %v514
    %v891 = vpack.c.b16 %v519, %v515
    %v892 = vpack.c.b16 %v520, %v516
    %v893 = vpack.c.b16 %v525, %v521
    %v894 = vpack.c.b16 %v526, %v522
    %v895 = vpack.c.b16 %v527, %v523
    %v896 = vpack.c.b16 %v528, %v524
    %v897 = vpack.c.b16 %v533, %v529
    %v898 = vpack.c.b16 %v534, %v530
    %v899 = vpack.c.b16 %v535, %v531
    %v900 = vpack.c.b16 %v536, %v532
    %v901 = vpack.c.b16 %v541, %v537
    %v902 = vpack.c.b16 %v542, %v538
    %v903 = vpack.c.b16 %v543, %v539
    %v904 = vpack.c.b16 %v544, %v540
    %v905 = vpack.c.b16 %v549, %v545
    %v906 = vpack.c.b16 %v550, %v546
    %v907 = vpack.c.b16 %v551, %v547
    %v908 = vpack.c.b16 %v552, %v548
    %v909 = vpack.c.b16 %v557, %v553
    %v910 = vpack.c.b16 %v558, %v554
    %v911 = vpack.c.b16 %v559, %v555
    %v912 = vpack.c.b16 %v560, %v556
    %v913 = vpack.c.b16 %v565, %v561
    %v914 = vpack.c.b16 %v566, %v562
    %v915 = vpack.c.b16 %v567, %v563
    %v916 = vpack.c.b16 %v568, %v564
    %v917 = vpack.c.b16 %v573, %v569
    %v918 = vpack.c.b16 %v574, %v570
    %v919 = vpack.c.b16 %v575, %v571
    %v920 = vpack.c.b16 %v576, %v572
    %v921 = vpack.c.b16 %v581, %v577
    %v922 = vpack.c.b16 %v582, %v578
    %v923 = vpack.c.b16 %v583, %v579
    %v924 = vpack.c.b16 %v584, %v580
    %v925 = vpack.c.b16 %v589, %v585
    %v926 = vpack.c.b16 %v590, %v586
    %v927 = vpack.c.b16 %v591, %v587
    %v928 = vpack.c.b16 %v592, %v588
    %v929 = vpack.c.b16 %v597, %v593
    %v930 = vpack.c.b16 %v598, %v594
    %v931 = vpack.c.b16 %v599, %v595
    %v932 = vpack.c.b16 %v600, %v596
    %v933 = vpack.c.b16 %v605, %v601
    %v934 = vpack.c.b16 %v606, %v602
    %v935 = vpack.c.b16 %v607, %v603
    %v936 = vpack.c.b16 %v608, %v604
    %v937 = vpack.c.b16 %v613, %v609
    %v938 = vpack.c.b16 %v614, %v610
    %v939 = vpack.c.b16 %v615, %v611
    %v940 = vpack.c.b16 %v616, %v612
    %v941 = vpack.c.b16 %v621, %v617
    %v942 = vpack.c.b16 %v622, %v618
    %v943 = vpack.c.b16 %v623, %v619
    %v944 = vpack.c.b16 %v624, %v620
    %v945 = vpack.c.b16 %v629, %v625
    %v946 = vpack.c.b16 %v630, %v626
    %v947 = vpack.c.b16 %v631, %v627
    %v948 = vpack.c.b16 %v632, %v628
    %v949 = vpack.c.b16 %v637, %v633
    %v950 = vpack.c.b16 %v638, %v634
    %v951 = vpack.c.b16 %v639, %v635
    %v952 = vpack.c.b16 %v640, %v636
    %v953 = vpack.c.b16 %v645, %v641
    %v954 = vpack.c.b16 %v646, %v642
    %v955 = vpack.c.b16 %v647, %v643
    %v956 = vpack.c.b16 %v648, %v644
    %v957 = vpack.c.b16 %v653, %v649
    %v958 = vpack.c.b16 %v654, %v650
    %v959 = vpack.c.b16 %v655, %v651
    %v960 = vpack.c.b16 %v656, %v652
    %v961 = vpack.c.b16 %v661, %v657
    %v962 = vpack.c.b16 %v662, %v658
    %v963 = vpack.c.b16 %v663, %v659
    %v964 = vpack.c.b16 %v664, %v660
    %v965 = vpack.c.b16 %v669, %v665
    %v966 = vpack.c.b16 %v670, %v666
    %v967 = vpack.c.b16 %v671, %v667
    %v968 = vpack.c.b16 %v672, %v668
    %v969 = vpack.c.b16 %v677, %v673
    %v970 = vpack.c.b16 %v678, %v674
    %v971 = vpack.c.b16 %v679, %v675
    %v972 = vpack.c.b16 %v680, %v676
    %v973 = vpack.c.b16 %v685, %v681
    %v974 = vpack.c.b16 %v686, %v682
    %v975 = vpack.c.b16 %v687, %v683
    %v976 = vpack.c.b16 %v688, %v684
    %v977 = vpack.c.b16 %v693, %v689
    %v978 = vpack.c.b16 %v694, %v690
    %v979 = vpack.c.b16 %v695, %v691
    %v980 = vpack.c.b16 %v696, %v692
    %v981 = vpack.c.b16 %v701, %v697
    %v982 = vpack.c.b16 %v702, %v698
    %v983 = vpack.c.b16 %v703, %v699
    %v984 = vpack.c.b16 %v704, %v700
    %v985 = vpack.c.b16 %v709, %v705
    %v986 = vpack.c.b16 %v710, %v706
    %v987 = vpack.c.b16 %v711, %v707
    %v988 = vpack.c.b16 %v712, %v708
    %v989 = vpack.c.b16 %v717, %v713
    %v990 = vpack.c.b16 %v718, %v714
    %v991 = vpack.c.b16 %v719, %v715
    %v992 = vpack.c.b16 %v720, %v716
    %v993 = vpack.c.b16 %v725, %v721
    %v994 = vpack.c.b16 %v726, %v722
    %v995 = vpack.c.b16 %v727, %v723
    %v996 = vpack.c.b16 %v728, %v724
    %v997 = vpack.c.b16 %v733, %v729
    %v998 = vpack.c.b16 %v734, %v730
    %v999 = vpack.c.b16 %v735, %v731
    %v1000 = vpack.c.b16 %v736, %v732
    %v1001 = vpack.c.b16 %v741, %v737
    %v1002 = vpack.c.b16 %v742, %v738
    %v1003 = vpack.c.b16 %v743, %v739
    %v1004 = vpack.c.b16 %v744, %v740
    %v1005 = vpack.c.b16 %v749, %v745
    %v1006 = vpack.c.b16 %v750, %v746
    %v1007 = vpack.c.b16 %v751, %v747
    %v1008 = vpack.c.b16 %v752, %v748
    %v1009 = vpack.c.b16 %v757, %v753
    %v1010 = vpack.c.b16 %v758, %v754
    %v1011 = vpack.c.b16 %v759, %v755
    %v1012 = vpack.c.b16 %v760, %v756
    %v1013 = vpack.c.b16 %v765, %v761
    %v1014 = vpack.c.b16 %v766, %v762
    %v1015 = vpack.c.b16 %v767, %v763
    %v1016 = vpack.c.b16 %v768, %v764
    %v1017 = vpack.c.b16 %v773, %v769
    %v1018 = vpack.c.b16 %v774, %v770
    %v1019 = vpack.c.b16 %v775, %v771
    %v1020 = vpack.c.b16 %v776, %v772
    %v1021 = vpack.c.b16 %v781, %v777
    %v1022 = vpack.c.b16 %v782, %v778
    %v1023 = vpack.c.b16 %v783, %v779
    %v1024 = vpack.c.b16 %v784, %v780
    %v1025 = vpack.c.b16 %v789, %v785
    %v1026 = vpack.c.b16 %v790, %v786
    %v1027 = vpack.c.b16 %v791, %v787
    %v1028 = vpack.c.b16 %v792, %v788
    %v1029 = vpack.c.b16 %v797, %v793
    %v1030 = vpack.c.b16 %v798, %v794
    %v1031 = vpack.c.b16 %v799, %v795
    %v1032 = vpack.c.b16 %v800, %v796
    %v1033 = vpack.c.b16 %v805, %v801
    %v1034 = vpack.c.b16 %v806, %v802
    %v1035 = vpack.c.b16 %v807, %v803
    %v1036 = vpack.c.b16 %v808, %v804
    %v1037 = vpack.c.b16 %v813, %v809
    %v1038 = vpack.c.b16 %v814, %v810
    %v1039 = vpack.c.b16 %v815, %v811
    %v1040 = vpack.c.b16 %v816, %v812
    %v1041 = vpack.c.b16 %v821, %v817
    %v1042 = vpack.c.b16 %v822, %v818
    %v1043 = vpack.c.b16 %v823, %v819
    %v1044 = vpack.c.b16 %v824, %v820
    %v1045 = vpack.c.b16 %v829, %v825
    %v1046 = vpack.c.b16 %v830, %v826
    %v1047 = vpack.c.b16 %v831, %v827
    %v1048 = vpack.c.b16 %v832, %v828
    %v1049 = vpack.c.b16 %v837, %v833
    %v1050 = vpack.c.b16 %v838, %v834
    %v1051 = vpack.c.b16 %v839, %v835
    %v1052 = vpack.c.b16 %v840, %v836
    %v1053 = vpack.c.b16 %v845, %v841
    %v1054 = vpack.c.b16 %v846, %v842
    %v1055 = vpack.c.b16 %v847, %v843
    %v1056 = vpack.c.b16 %v848, %v844
    %v1057 = vpack.c.b16 %v853, %v849
    %v1058 = vpack.c.b16 %v854, %v850
    %v1059 = vpack.c.b16 %v855, %v851
    %v1060 = vpack.c.b16 %v856, %v852
    %v1061 = vpack.c.b16 %v861, %v857
    %v1062 = vpack.c.b16 %v862, %v858
    %v1063 = vpack.c.b16 %v863, %v859
    %v1064 = vpack.c.b16 %v864, %v860
    %v1065 = vpack.c.b16 %v869, %v865
    %v1066 = vpack.c.b16 %v870, %v866
    %v1067 = vpack.c.b16 %v871, %v867
    %v1068 = vpack.c.b16 %v872, %v868
    %vm1265 = vcmask 130048
    %v1267 = vsel %vm1265, %v278, 0
    %1269 = vmatprep.subr.bf16.mxu0 %v874
    %1270 = vmatpush1.bf16.msra.mxu0 %v873
    %1271 = vmatprep.subr.bf16.mxu0 %v878
    %1272 = vmatpush1.bf16.msra.mxu0 %v877
    %1273 = vmatprep.subr.bf16.mxu0 %v882
    %1274 = vmatpush1.bf16.msra.mxu0 %v881
    %1275 = vmatprep.subr.bf16.mxu0 %v886
    %1276 = vmatpush1.bf16.msra.mxu0 %v885
    %1277 = vmatprep.subr.bf16.mxu0 %v890
    %1278 = vmatpush1.bf16.msra.mxu0 %v889
    %1279 = vmatprep.subr.bf16.mxu0 %v894
    %1280 = vmatpush1.bf16.msra.mxu0 %v893
    %1281 = vmatprep.subr.bf16.mxu0 %v898
    %1282 = vmatpush1.bf16.msra.mxu0 %v897
    %1283 = vmatprep.subr.bf16.mxu0 %v902
    %1284 = vmatpush1.bf16.msra.mxu0 %v901
    %1285 = vmatprep.subr.bf16.mxu0 %v906
    %1286 = vmatpush1.bf16.msra.mxu0 %v905
    %1287 = vmatprep.subr.bf16.mxu0 %v910
    %1288 = vmatpush1.bf16.msra.mxu0 %v909
    %1289 = vmatprep.subr.bf16.mxu0 %v914
    %1290 = vmatpush1.bf16.msra.mxu0 %v913
    %1291 = vmatprep.subr.bf16.mxu0 %v918
    %1292 = vmatpush1.bf16.msra.mxu0 %v917
    %1293 = vmatprep.subr.bf16.mxu0 %v922
    %1294 = vmatpush1.bf16.msra.mxu0 %v921
    %1295 = vmatprep.subr.bf16.mxu0 %v926
    %1296 = vmatpush1.bf16.msra.mxu0 %v925
    %1297 = vmatprep.subr.bf16.mxu0 %v930
    %1298 = vmatpush1.bf16.msra.mxu0 %v929
    %1299 = vmatprep.subr.bf16.mxu0 %v934
    %1300 = vmatpush1.bf16.msra.mxu0 %v933
    %1301 = vmatprep.mubr.bf16.mxu0 %v273
    %1302 = vmatmul.mubr.bf16.gmra.mrb[0].mxu0 %v272
    %v1303 = vpop.f32.mrb[0].mxu0
    %v1304 = vadd.f32 %v244, %v1303
    %v1305 = vpop.f32.mrb[0].mxu0
    %v1306 = vadd.f32 %v248, %v1305
    %v1307 = vpop.f32.mrb[0].mxu0
    %v1308 = vpop.f32.mrb[0].mxu0
    %1309 = vdwg.mxu0
    %1310 = vmatprep.subr.bf16.mxu0 %v938
    %1311 = vmatpush1.bf16.msra.mxu0 %v937
    %1312 = vmatprep.subr.bf16.mxu0 %v942
    %1313 = vmatpush1.bf16.msra.mxu0 %v941
    %1314 = vmatprep.subr.bf16.mxu0 %v946
    %1315 = vmatpush1.bf16.msra.mxu0 %v945
    %1316 = vmatprep.subr.bf16.mxu0 %v950
    %1317 = vmatpush1.bf16.msra.mxu0 %v949
    %1318 = vmatprep.subr.bf16.mxu0 %v954
    %1319 = vmatpush1.bf16.msra.mxu0 %v953
    %1320 = vmatprep.subr.bf16.mxu0 %v958
    %1321 = vmatpush1.bf16.msra.mxu0 %v957
    %1322 = vmatprep.subr.bf16.mxu0 %v962
    %1323 = vmatpush1.bf16.msra.mxu0 %v961
    %1324 = vmatprep.subr.bf16.mxu0 %v966
    %1325 = vmatpush1.bf16.msra.mxu0 %v965
    %1326 = vmatprep.subr.bf16.mxu0 %v970
    %1327 = vmatpush1.bf16.msra.mxu0 %v969
    %1328 = vmatprep.subr.bf16.mxu0 %v974
    %1329 = vmatpush1.bf16.msra.mxu0 %v973
    %1330 = vmatprep.subr.bf16.mxu0 %v978
    %1331 = vmatpush1.bf16.msra.mxu0 %v977
    %1332 = vmatprep.subr.bf16.mxu0 %v982
    %1333 = vmatpush1.bf16.msra.mxu0 %v981
    %1334 = vmatprep.subr.bf16.mxu0 %v986
    %1335 = vmatpush1.bf16.msra.mxu0 %v985
    %1336 = vmatprep.subr.bf16.mxu0 %v990
    %1337 = vmatpush1.bf16.msra.mxu0 %v989
    %1338 = vmatprep.subr.bf16.mxu0 %v994
    %1339 = vmatpush1.bf16.msra.mxu0 %v993
    %1340 = vmatprep.subr.bf16.mxu0 %v998
    %1341 = vmatpush1.bf16.msra.mxu0 %v997
    %1342 = vmatprep.mubr.bf16.mxu0 %v275
    %1343 = vmatmul.mubr.bf16.gmra.mrb[0].mxu0 %v274
    %v1344 = vpop.f32.mrb[0].mxu0
    %v1345 = vadd.f32 %v1304, %v1344
    %v1346 = vpop.f32.mrb[0].mxu0
    %v1347 = vadd.f32 %v1306, %v1346
    %v1348 = vpop.f32.mrb[0].mxu0
    %v1349 = vpop.f32.mrb[0].mxu0
    %1350 = vdwg.mxu0
    %1351 = vmatprep.subr.bf16.mxu0 %v1002
    %1352 = vmatpush1.bf16.msra.mxu0 %v1001
    %1353 = vmatprep.subr.bf16.mxu0 %v1006
    %1354 = vmatpush1.bf16.msra.mxu0 %v1005
    %1355 = vmatprep.subr.bf16.mxu0 %v1010
    %1356 = vmatpush1.bf16.msra.mxu0 %v1009
    %1357 = vmatprep.subr.bf16.mxu0 %v1014
    %1358 = vmatpush1.bf16.msra.mxu0 %v1013
    %1359 = vmatprep.subr.bf16.mxu0 %v1018
    %1360 = vmatpush1.bf16.msra.mxu0 %v1017
    %1361 = vmatprep.subr.bf16.mxu0 %v1022
    %1362 = vmatpush1.bf16.msra.mxu0 %v1021
    %1363 = vmatprep.subr.bf16.mxu0 %v1026
    %1364 = vmatpush1.bf16.msra.mxu0 %v1025
    %1365 = vmatprep.subr.bf16.mxu0 %v1030
    %1366 = vmatpush1.bf16.msra.mxu0 %v1029
    %1367 = vmatprep.subr.bf16.mxu0 %v1034
    %1368 = vmatpush1.bf16.msra.mxu0 %v1033
    %1369 = vmatprep.subr.bf16.mxu0 %v1038
    %1370 = vmatpush1.bf16.msra.mxu0 %v1037
    %1371 = vmatprep.subr.bf16.mxu0 %v1042
    %1372 = vmatpush1.bf16.msra.mxu0 %v1041
    %1373 = vmatprep.subr.bf16.mxu0 %v1046
    %1374 = vmatpush1.bf16.msra.mxu0 %v1045
    %1375 = vmatprep.subr.bf16.mxu0 %v1050
    %1376 = vmatpush1.bf16.msra.mxu0 %v1049
    %1377 = vmatprep.subr.bf16.mxu0 %v1054
    %1378 = vmatpush1.bf16.msra.mxu0 %v1053
    %1379 = vmatprep.subr.bf16.mxu0 %v1058
    %1380 = vmatpush1.bf16.msra.mxu0 %v1057
    %1381 = vmatprep.subr.bf16.mxu0 %v1062
    %1382 = vmatpush1.bf16.msra.mxu0 %v1061
    %1383 = vmatprep.mubr.bf16.mxu0 %v277
    %1384 = vmatmul.mubr.bf16.gmra.mrb[0].mxu0 %v276
    %v1385 = vpop.f32.mrb[0].mxu0
    %v1386 = vadd.f32 %v1345, %v1385
    %v1387 = vpop.f32.mrb[0].mxu0
    %v1388 = vadd.f32 %v1347, %v1387
    %v1389 = vpop.f32.mrb[0].mxu0
    %v1390 = vpop.f32.mrb[0].mxu0
    %1391 = vdwg.mxu0
    %1392 = vmatprep.subr.bf16.mxu0 %v1066
    %1393 = vmatpush1.bf16.msra.mxu0 %v1065
    %1394 = vmatprep.subr.bf16.mxu0 0
    %1395 = vmatpush1.bf16.msra.mxu0 0
    %1396 = vmatprep.subr.bf16.mxu0 0
    %1397 = vmatpush1.bf16.msra.mxu0 0
    %1398 = vmatprep.subr.bf16.mxu0 0
    %1399 = vmatpush1.bf16.msra.mxu0 0
    %1400 = vmatprep.subr.bf16.mxu0 0
    %1401 = vmatpush1.bf16.msra.mxu0 0
    %1402 = vmatprep.subr.bf16.mxu0 0
    %1403 = vmatpush1.bf16.msra.mxu0 0
    %1404 = vmatprep.subr.bf16.mxu0 0
    %1405 = vmatpush1.bf16.msra.mxu0 0
    %1406 = vmatprep.subr.bf16.mxu0 0
    %1407 = vmatpush1.bf16.msra.mxu0 0
    %1408 = vmatprep.subr.bf16.mxu0 0
    %1409 = vmatpush1.bf16.msra.mxu0 0
    %1410 = vmatprep.subr.bf16.mxu0 0
    %1411 = vmatpush1.bf16.msra.mxu0 0
    %1412 = vmatprep.subr.bf16.mxu0 0
    %1413 = vmatpush1.bf16.msra.mxu0 0
    %1414 = vmatprep.subr.bf16.mxu0 0
    %1415 = vmatpush1.bf16.msra.mxu0 0
    %1416 = vmatprep.subr.bf16.mxu0 0
    %1417 = vmatpush1.bf16.msra.mxu0 0
    %1418 = vmatprep.subr.bf16.mxu0 0
    %1419 = vmatpush1.bf16.msra.mxu0 0
    %1420 = vmatprep.subr.bf16.mxu0 0
    %1421 = vmatpush1.bf16.msra.mxu0 0
    %1422 = vmatprep.subr.bf16.mxu0 0
    %1423 = vmatpush1.bf16.msra.mxu0 0
    %1424 = vmatprep.mubr.bf16.mxu0 0
    %1425 = vmatmul.mubr.bf16.gmra.mrb[0].mxu0 %v1267
    %v1426 = vpop.f32.mrb[0].mxu0
    %v1427 = vadd.f32 %v1386, %v1426
    %v1428 = vpop.f32.mrb[0].mxu0
    %v1429 = vadd.f32 %v1388, %v1428
    %v1430 = vpop.f32.mrb[0].mxu0
    %v1431 = vpop.f32.mrb[0].mxu0
    %1432 = vdwg.mxu0
    %1433 = vmatprep.subr.bf16.mxu0 %v876
    %1434 = vmatpush1.bf16.msra.mxu0 %v875
    %1435 = vmatprep.subr.bf16.mxu0 %v880
    %1436 = vmatpush1.bf16.msra.mxu0 %v879
    %1437 = vmatprep.subr.bf16.mxu0 %v884
    %1438 = vmatpush1.bf16.msra.mxu0 %v883
    %1439 = vmatprep.subr.bf16.mxu0 %v888
    %1440 = vmatpush1.bf16.msra.mxu0 %v887
    %1441 = vmatprep.subr.bf16.mxu0 %v892
    %1442 = vmatpush1.bf16.msra.mxu0 %v891
    %1443 = vmatprep.subr.bf16.mxu0 %v896
    %1444 = vmatpush1.bf16.msra.mxu0 %v895
    %1445 = vmatprep.subr.bf16.mxu0 %v900
    %1446 = vmatpush1.bf16.msra.mxu0 %v899
    %1447 = vmatprep.subr.bf16.mxu0 %v904
    %1448 = vmatpush1.bf16.msra.mxu0 %v903
    %1449 = vmatprep.subr.bf16.mxu0 %v908
    %1450 = vmatpush1.bf16.msra.mxu0 %v907
    %1451 = vmatprep.subr.bf16.mxu0 %v912
    %1452 = vmatpush1.bf16.msra.mxu0 %v911
    %1453 = vmatprep.subr.bf16.mxu0 %v916
    %1454 = vmatpush1.bf16.msra.mxu0 %v915
    %1455 = vmatprep.subr.bf16.mxu0 %v920
    %1456 = vmatpush1.bf16.msra.mxu0 %v919
    %1457 = vmatprep.subr.bf16.mxu0 %v924
    %1458 = vmatpush1.bf16.msra.mxu0 %v923
    %1459 = vmatprep.subr.bf16.mxu0 %v928
    %1460 = vmatpush1.bf16.msra.mxu0 %v927
    %1461 = vmatprep.subr.bf16.mxu0 %v932
    %1462 = vmatpush1.bf16.msra.mxu0 %v931
    %1463 = vmatprep.subr.bf16.mxu0 %v936
    %1464 = vmatpush1.bf16.msra.mxu0 %v935
    %1465 = vmatprep.mubr.bf16.mxu0 %v273
    %1466 = vmatmul.mubr.bf16.gmra.mrb[0].mxu0 %v272
    %v1467 = vpop.f32.mrb[0].mxu0
    %v1468 = vadd.f32 %v252, %v1467
    %v1469 = vpop.f32.mrb[0].mxu0
    %v1470 = vadd.f32 %v256, %v1469
    %v1471 = vpop.f32.mrb[0].mxu0
    %v1472 = vpop.f32.mrb[0].mxu0
    %1473 = vdwg.mxu0
    %1474 = vmatprep.subr.bf16.mxu0 %v940
    %1475 = vmatpush1.bf16.msra.mxu0 %v939
    %1476 = vmatprep.subr.bf16.mxu0 %v944
    %1477 = vmatpush1.bf16.msra.mxu0 %v943
    %1478 = vmatprep.subr.bf16.mxu0 %v948
    %1479 = vmatpush1.bf16.msra.mxu0 %v947
    %1480 = vmatprep.subr.bf16.mxu0 %v952
    %1481 = vmatpush1.bf16.msra.mxu0 %v951
    %1482 = vmatprep.subr.bf16.mxu0 %v956
    %1483 = vmatpush1.bf16.msra.mxu0 %v955
    %1484 = vmatprep.subr.bf16.mxu0 %v960
    %1485 = vmatpush1.bf16.msra.mxu0 %v959
    %1486 = vmatprep.subr.bf16.mxu0 %v964
    %1487 = vmatpush1.bf16.msra.mxu0 %v963
    %1488 = vmatprep.subr.bf16.mxu0 %v968
    %1489 = vmatpush1.bf16.msra.mxu0 %v967
    %1490 = vmatprep.subr.bf16.mxu0 %v972
    %1491 = vmatpush1.bf16.msra.mxu0 %v971
    %1492 = vmatprep.subr.bf16.mxu0 %v976
    %1493 = vmatpush1.bf16.msra.mxu0 %v975
    %1494 = vmatprep.subr.bf16.mxu0 %v980
    %1495 = vmatpush1.bf16.msra.mxu0 %v979
    %1496 = vmatprep.subr.bf16.mxu0 %v984
    %1497 = vmatpush1.bf16.msra.mxu0 %v983
    %1498 = vmatprep.subr.bf16.mxu0 %v988
    %1499 = vmatpush1.bf16.msra.mxu0 %v987
    %1500 = vmatprep.subr.bf16.mxu0 %v992
    %1501 = vmatpush1.bf16.msra.mxu0 %v991
    %1502 = vmatprep.subr.bf16.mxu0 %v996
    %1503 = vmatpush1.bf16.msra.mxu0 %v995
    %1504 = vmatprep.subr.bf16.mxu0 %v1000
    %1505 = vmatpush1.bf16.msra.mxu0 %v999
    %1506 = vmatprep.mubr.bf16.mxu0 %v275
    %1507 = vmatmul.mubr.bf16.gmra.mrb[0].mxu0 %v274
    %v1508 = vpop.f32.mrb[0].mxu0
    %v1509 = vadd.f32 %v1468, %v1508
    %v1510 = vpop.f32.mrb[0].mxu0
    %v1511 = vadd.f32 %v1470, %v1510
    %v1512 = vpop.f32.mrb[0].mxu0
    %v1513 = vpop.f32.mrb[0].mxu0
    %1514 = vdwg.mxu0
    %1515 = vmatprep.subr.bf16.mxu0 %v1004
    %1516 = vmatpush1.bf16.msra.mxu0 %v1003
    %1517 = vmatprep.subr.bf16.mxu0 %v1008
    %1518 = vmatpush1.bf16.msra.mxu0 %v1007
    %1519 = vmatprep.subr.bf16.mxu0 %v1012
    %1520 = vmatpush1.bf16.msra.mxu0 %v1011
    %1521 = vmatprep.subr.bf16.mxu0 %v1016
    %1522 = vmatpush1.bf16.msra.mxu0 %v1015
    %1523 = vmatprep.subr.bf16.mxu0 %v1020
    %1524 = vmatpush1.bf16.msra.mxu0 %v1019
    %1525 = vmatprep.subr.bf16.mxu0 %v1024
    %1526 = vmatpush1.bf16.msra.mxu0 %v1023
    %1527 = vmatprep.subr.bf16.mxu0 %v1028
    %1528 = vmatpush1.bf16.msra.mxu0 %v1027
    %1529 = vmatprep.subr.bf16.mxu0 %v1032
    %1530 = vmatpush1.bf16.msra.mxu0 %v1031
    %1531 = vmatprep.subr.bf16.mxu0 %v1036
    %1532 = vmatpush1.bf16.msra.mxu0 %v1035
    %1533 = vmatprep.subr.bf16.mxu0 %v1040
    %1534 = vmatpush1.bf16.msra.mxu0 %v1039
    %1535 = vmatprep.subr.bf16.mxu0 %v1044
    %1536 = vmatpush1.bf16.msra.mxu0 %v1043
    %1537 = vmatprep.subr.bf16.mxu0 %v1048
    %1538 = vmatpush1.bf16.msra.mxu0 %v1047
    %1539 = vmatprep.subr.bf16.mxu0 %v1052
    %1540 = vmatpush1.bf16.msra.mxu0 %v1051
    %1541 = vmatprep.subr.bf16.mxu0 %v1056
    %1542 = vmatpush1.bf16.msra.mxu0 %v1055
    %1543 = vmatprep.subr.bf16.mxu0 %v1060
    %1544 = vmatpush1.bf16.msra.mxu0 %v1059
    %1545 = vmatprep.subr.bf16.mxu0 %v1064
    %1546 = vmatpush1.bf16.msra.mxu0 %v1063
    %1547 = vmatprep.mubr.bf16.mxu0 %v277
    %1548 = vmatmul.mubr.bf16.gmra.mrb[0].mxu0 %v276
    %v1549 = vpop.f32.mrb[0].mxu0
    %v1550 = vadd.f32 %v1509, %v1549
    %v1551 = vpop.f32.mrb[0].mxu0
    %v1552 = vadd.f32 %v1511, %v1551
    %v1553 = vpop.f32.mrb[0].mxu0
    %v1554 = vpop.f32.mrb[0].mxu0
    %1555 = vdwg.mxu0
    %1556 = vmatprep.subr.bf16.mxu0 %v1068
    %1557 = vmatpush1.bf16.msra.mxu0 %v1067
    %1558 = vmatprep.subr.bf16.mxu0 0
    %1559 = vmatpush1.bf16.msra.mxu0 0
    %1560 = vmatprep.subr.bf16.mxu0 0
    %1561 = vmatpush1.bf16.msra.mxu0 0
    %1562 = vmatprep.subr.bf16.mxu0 0
    %1563 = vmatpush1.bf16.msra.mxu0 0
    %1564 = vmatprep.subr.bf16.mxu0 0
    %1565 = vmatpush1.bf16.msra.mxu0 0
    %1566 = vmatprep.subr.bf16.mxu0 0
    %1567 = vmatpush1.bf16.msra.mxu0 0
    %1568 = vmatprep.subr.bf16.mxu0 0
    %1569 = vmatpush1.bf16.msra.mxu0 0
    %1570 = vmatprep.subr.bf16.mxu0 0
    %1571 = vmatpush1.bf16.msra.mxu0 0
    %1572 = vmatprep.subr.bf16.mxu0 0
    %1573 = vmatpush1.bf16.msra.mxu0 0
    %1574 = vmatprep.subr.bf16.mxu0 0
    %1575 = vmatpush1.bf16.msra.mxu0 0
    %1576 = vmatprep.subr.bf16.mxu0 0
    %1577 = vmatpush1.bf16.msra.mxu0 0
    %1578 = vmatprep.subr.bf16.mxu0 0
    %1579 = vmatpush1.bf16.msra.mxu0 0
    %1580 = vmatprep.subr.bf16.mxu0 0
    %1581 = vmatpush1.bf16.msra.mxu0 0
    %1582 = vmatprep.subr.bf16.mxu0 0
    %1583 = vmatpush1.bf16.msra.mxu0 0
    %1584 = vmatprep.subr.bf16.mxu0 0
    %1585 = vmatpush1.bf16.msra.mxu0 0
    %1586 = vmatprep.subr.bf16.mxu0 0
    %1587 = vmatpush1.bf16.msra.mxu0 0
    %1588 = vmatprep.mubr.bf16.mxu0 0
    %1589 = vmatmul.mubr.bf16.gmra.mrb[0].mxu0 %v1267
    %v1590 = vpop.f32.mrb[0].mxu0
    %v1591 = vadd.f32 %v1550, %v1590
    %v1592 = vpop.f32.mrb[0].mxu0
    %v1593 = vadd.f32 %v1552, %v1592
    %v1594 = vpop.f32.mrb[0].mxu0
    %v1595 = vpop.f32.mrb[0].mxu0
    %1596 = vdwg.mxu0
    %v1597 = vmax.f32 %v1427, 0.0
    %v1598 = vmax.f32 %v1429, 0.0
    %v1599 = vmax.f32 %v1591, 0.0
    %v1600 = vmax.f32 %v1593, 0.0
    %v1601 = vpack.c.bf16 %v1597, %v1597
    %v1602 = vpack.c.bf16 %v1598, %v1598
    %v1603 = vpack.c.bf16 %v1599, %v1599
    %v1604 = vpack.c.bf16 %v1600, %v1600
    %v1605 = vld [vmem:[%s4] sm:$0xf]
    %v1606 = vld [vmem:[%s4 + $0x4] sm:$0xf]
    %v1607 = vld [vmem:[%s4 + $0x8] sm:$0xf]
    %v1608 = vld [vmem:[%s4 + $0xc] sm:$0xf]
    %v1609 = vld [vmem:[%s4 + $0x10] sm:$0xf]
    %v1610 = vld [vmem:[%s4 + $0x14] sm:$0xf]
    %v1611 = vld [vmem:[%s4 + $0x18] sm:$0xf]
    %v1612 = vld [vmem:[%s4 + $0x1c] sm:$0xf]
    %v1613 = vld [vmem:[%s4 + $0x20] sm:$0xf]
    %v1614 = vld [vmem:[%s4 + $0x24] sm:$0xf]
    %v1615 = vld [vmem:[%s4 + $0x28] sm:$0xf]
    %v1616 = vld [vmem:[%s4 + $0x2c] sm:$0xf]
    %v1617 = vld [vmem:[%s4 + $0x30] sm:$0xf]
    %v1618 = vld [vmem:[%s4 + $0x34] sm:$0xf]
    %v1619 = vld [vmem:[%s4 + $0x38] sm:$0xf]
    %v1620 = vld [vmem:[%s4 + $0x3c] sm:$0xf]
    %v1621 = vld [vmem:[%s4 + $0x40] sm:$0xf]
    %v1622 = vld [vmem:[%s4 + $0x44] sm:$0xf]
    %v1623 = vld [vmem:[%s4 + $0x48] sm:$0xf]
    %v1624 = vld [vmem:[%s4 + $0x4c] sm:$0xf]
    %v1625 = vld [vmem:[%s4 + $0x50] sm:$0xf]
    %v1626 = vld [vmem:[%s4 + $0x54] sm:$0xf]
    %v1627 = vld [vmem:[%s4 + $0x58] sm:$0xf]
    %v1628 = vld [vmem:[%s4 + $0x5c] sm:$0xf]
    %v1629 = vld [vmem:[%s4 + $0x60] sm:$0xf]
    %v1630 = vld [vmem:[%s4 + $0x64] sm:$0xf]
    %v1631 = vld [vmem:[%s4 + $0x68] sm:$0xf]
    %v1632 = vld [vmem:[%s4 + $0x6c] sm:$0xf]
    %v1633 = vld [vmem:[%s4 + $0x70] sm:$0xf]
    %v1634 = vld [vmem:[%s4 + $0x74] sm:$0xf]
    %v1635 = vld [vmem:[%s4 + $0x78] sm:$0xf]
    %v1636 = vld [vmem:[%s4 + $0x7c] sm:$0xf]
    %v1637 = vld [vmem:[%s4 + $0x80] sm:$0xf]
    %v1638 = vld [vmem:[%s4 + $0x84] sm:$0xf]
    %v1639 = vld [vmem:[%s4 + $0x88] sm:$0xf]
    %v1640 = vld [vmem:[%s4 + $0x8c] sm:$0xf]
    %v1641 = vld [vmem:[%s4 + $0x90] sm:$0xf]
    %v1642 = vld [vmem:[%s4 + $0x94] sm:$0xf]
    %v1643 = vld [vmem:[%s4 + $0x98] sm:$0xf]
    %v1644 = vld [vmem:[%s4 + $0x9c] sm:$0xf]
    %v1645 = vld [vmem:[%s4 + $0xa0] sm:$0xf]
    %v1646 = vld [vmem:[%s4 + $0xa4] sm:$0xf]
    %v1647 = vld [vmem:[%s4 + $0xa8] sm:$0xf]
    %v1648 = vld [vmem:[%s4 + $0xac] sm:$0xf]
    %v1649 = vld [vmem:[%s4 + $0xb0] sm:$0xf]
    %v1650 = vld [vmem:[%s4 + $0xb4] sm:$0xf]
    %v1651 = vld [vmem:[%s4 + $0xb8] sm:$0xf]
    %v1652 = vld [vmem:[%s4 + $0xbc] sm:$0xf]
    %v1653 = vld [vmem:[%s4 + $0xc0] sm:$0xf]
    %v1654 = vld [vmem:[%s4 + $0xc4] sm:$0xf]
    %v1655 = vld [vmem:[%s5] sm:$0x1]
    %v1657 = vlaneseq
    %v1658 = vshrl.u32 %v1657, 7
    %v1659 = vsub.s32 0, %v1658
    %v1660 = vrot.slane %v1655, %v1659
    %v1712 = vunpack.c.l.b16 %v1605
    %v1713 = vunpack.c.l.b16 %v1606
    %v1714 = vunpack.c.l.b16 %v1607
    %v1715 = vunpack.c.l.b16 %v1608
    %v1716 = vunpack.c.l.b16 %v1609
    %v1717 = vunpack.c.l.b16 %v1610
    %v1718 = vunpack.c.l.b16 %v1611
    %v1719 = vunpack.c.l.b16 %v1612
    %v1720 = vunpack.c.l.b16 %v1613
    %v1721 = vunpack.c.l.b16 %v1614
    %v1722 = vunpack.c.l.b16 %v1615
    %v1723 = vunpack.c.l.b16 %v1616
    %v1724 = vunpack.c.l.b16 %v1617
    %v1725 = vunpack.c.l.b16 %v1618
    %v1726 = vunpack.c.l.b16 %v1619
    %v1727 = vunpack.c.l.b16 %v1620
    %v1728 = vunpack.c.l.b16 %v1621
    %v1729 = vunpack.c.l.b16 %v1622
    %v1730 = vunpack.c.l.b16 %v1623
    %v1731 = vunpack.c.l.b16 %v1624
    %v1732 = vunpack.c.l.b16 %v1625
    %v1733 = vunpack.c.l.b16 %v1626
    %v1734 = vunpack.c.l.b16 %v1627
    %v1735 = vunpack.c.l.b16 %v1628
    %v1736 = vunpack.c.l.b16 %v1629
    %v1737 = vunpack.c.l.b16 %v1630
    %v1738 = vunpack.c.l.b16 %v1631
    %v1739 = vunpack.c.l.b16 %v1632
    %v1740 = vunpack.c.l.b16 %v1633
    %v1741 = vunpack.c.l.b16 %v1634
    %v1742 = vunpack.c.l.b16 %v1635
    %v1743 = vunpack.c.l.b16 %v1636
    %v1744 = vunpack.c.l.b16 %v1637
    %v1745 = vunpack.c.l.b16 %v1638
    %v1746 = vunpack.c.l.b16 %v1639
    %v1747 = vunpack.c.l.b16 %v1640
    %v1748 = vunpack.c.l.b16 %v1641
    %v1749 = vunpack.c.l.b16 %v1642
    %v1750 = vunpack.c.l.b16 %v1643
    %v1751 = vunpack.c.l.b16 %v1644
    %v1752 = vunpack.c.l.b16 %v1645
    %v1753 = vunpack.c.l.b16 %v1646
    %v1754 = vunpack.c.l.b16 %v1647
    %v1755 = vunpack.c.l.b16 %v1648
    %v1756 = vunpack.c.l.b16 %v1649
    %v1757 = vunpack.c.l.b16 %v1650
    %v1758 = vunpack.c.l.b16 %v1651
    %v1759 = vunpack.c.l.b16 %v1652
    %v1760 = vunpack.c.l.b16 %v1653
    %v1761 = vunpack.c.l.b16 %v1654
    %v1762 = vpack.c.b16 %v1713, %v1712
    %v1763 = vpack.c.b16 %v1715, %v1714
    %v1764 = vpack.c.b16 %v1717, %v1716
    %v1765 = vpack.c.b16 %v1719, %v1718
    %v1766 = vpack.c.b16 %v1721, %v1720
    %v1767 = vpack.c.b16 %v1723, %v1722
    %v1768 = vpack.c.b16 %v1725, %v1724
    %v1769 = vpack.c.b16 %v1727, %v1726
    %v1770 = vpack.c.b16 %v1729, %v1728
    %v1771 = vpack.c.b16 %v1731, %v1730
    %v1772 = vpack.c.b16 %v1733, %v1732
    %v1773 = vpack.c.b16 %v1735, %v1734
    %v1774 = vpack.c.b16 %v1737, %v1736
    %v1775 = vpack.c.b16 %v1739, %v1738
    %v1776 = vpack.c.b16 %v1741, %v1740
    %v1777 = vpack.c.b16 %v1743, %v1742
    %v1778 = vpack.c.b16 %v1745, %v1744
    %v1779 = vpack.c.b16 %v1747, %v1746
    %v1780 = vpack.c.b16 %v1749, %v1748
    %v1781 = vpack.c.b16 %v1751, %v1750
    %v1782 = vpack.c.b16 %v1753, %v1752
    %v1783 = vpack.c.b16 %v1755, %v1754
    %v1784 = vpack.c.b16 %v1757, %v1756
    %v1785 = vpack.c.b16 %v1759, %v1758
    %v1786 = vpack.c.b16 %v1761, %v1760
    %v1813 = vsel %vm1265, %v1604, 0
    %1815 = vmatprep.subr.bf16.mxu0 0
    %1816 = vmatpush1.bf16.msra.mxu0 %v1762
    %1817 = vmatprep.subr.bf16.mxu0 0
    %1818 = vmatpush1.bf16.msra.mxu0 %v1763
    %1819 = vmatprep.subr.bf16.mxu0 0
    %1820 = vmatpush1.bf16.msra.mxu0 %v1764
    %1821 = vmatprep.subr.bf16.mxu0 0
    %1822 = vmatpush1.bf16.msra.mxu0 %v1765
    %1823 = vmatprep.subr.bf16.mxu0 0
    %1824 = vmatpush1.bf16.msra.mxu0 %v1766
    %1825 = vmatprep.subr.bf16.mxu0 0
    %1826 = vmatpush1.bf16.msra.mxu0 %v1767
    %1827 = vmatprep.subr.bf16.mxu0 0
    %1828 = vmatpush1.bf16.msra.mxu0 %v1768
    %1829 = vmatprep.subr.bf16.mxu0 0
    %1830 = vmatpush1.bf16.msra.mxu0 %v1769
    %1831 = vmatprep.subr.bf16.mxu0 0
    %1832 = vmatpush1.bf16.msra.mxu0 %v1770
    %1833 = vmatprep.subr.bf16.mxu0 0
    %1834 = vmatpush1.bf16.msra.mxu0 %v1771
    %1835 = vmatprep.subr.bf16.mxu0 0
    %1836 = vmatpush1.bf16.msra.mxu0 %v1772
    %1837 = vmatprep.subr.bf16.mxu0 0
    %1838 = vmatpush1.bf16.msra.mxu0 %v1773
    %1839 = vmatprep.subr.bf16.mxu0 0
    %1840 = vmatpush1.bf16.msra.mxu0 %v1774
    %1841 = vmatprep.subr.bf16.mxu0 0
    %1842 = vmatpush1.bf16.msra.mxu0 %v1775
    %1843 = vmatprep.subr.bf16.mxu0 0
    %1844 = vmatpush1.bf16.msra.mxu0 %v1776
    %1845 = vmatprep.subr.bf16.mxu0 0
    %1846 = vmatpush1.bf16.msra.mxu0 %v1777
    %1847 = vmatprep.mubr.bf16.mxu0 %v1602
    %1848 = vmatmul.mubr.bf16.gmra.mrb[0].mxu0 %v1601
    %v1849 = vpop.f32.mrb[0].mxu0
    %v1850 = vadd.f32 %v1660, %v1849
    %v1851 = vpop.f32.mrb[0].mxu0
    %v1852 = vpop.f32.mrb[0].mxu0
    %v1853 = vpop.f32.mrb[0].mxu0
    %1854 = vdwg.mxu0
    %1855 = vmatprep.subr.bf16.mxu0 0
    %1856 = vmatpush1.bf16.msra.mxu0 %v1778
    %1857 = vmatprep.subr.bf16.mxu0 0
    %1858 = vmatpush1.bf16.msra.mxu0 %v1779
    %1859 = vmatprep.subr.bf16.mxu0 0
    %1860 = vmatpush1.bf16.msra.mxu0 %v1780
    %1861 = vmatprep.subr.bf16.mxu0 0
    %1862 = vmatpush1.bf16.msra.mxu0 %v1781
    %1863 = vmatprep.subr.bf16.mxu0 0
    %1864 = vmatpush1.bf16.msra.mxu0 %v1782
    %1865 = vmatprep.subr.bf16.mxu0 0
    %1866 = vmatpush1.bf16.msra.mxu0 %v1783
    %1867 = vmatprep.subr.bf16.mxu0 0
    %1868 = vmatpush1.bf16.msra.mxu0 %v1784
    %1869 = vmatprep.subr.bf16.mxu0 0
    %1870 = vmatpush1.bf16.msra.mxu0 %v1785
    %1871 = vmatprep.subr.bf16.mxu0 0
    %1872 = vmatpush1.bf16.msra.mxu0 %v1786
    %1873 = vmatprep.subr.bf16.mxu0 0
    %1874 = vmatpush1.bf16.msra.mxu0 0
    %1875 = vmatprep.subr.bf16.mxu0 0
    %1876 = vmatpush1.bf16.msra.mxu0 0
    %1877 = vmatprep.subr.bf16.mxu0 0
    %1878 = vmatpush1.bf16.msra.mxu0 0
    %1879 = vmatprep.subr.bf16.mxu0 0
    %1880 = vmatpush1.bf16.msra.mxu0 0
    %1881 = vmatprep.subr.bf16.mxu0 0
    %1882 = vmatpush1.bf16.msra.mxu0 0
    %1883 = vmatprep.subr.bf16.mxu0 0
    %1884 = vmatpush1.bf16.msra.mxu0 0
    %1885 = vmatprep.subr.bf16.mxu0 0
    %1886 = vmatpush1.bf16.msra.mxu0 0
    %1887 = vmatprep.mubr.bf16.mxu0 %v1813
    %1888 = vmatmul.mubr.bf16.gmra.mrb[0].mxu0 %v1603
    %v1889 = vpop.f32.mrb[0].mxu0
    %v1890 = vadd.f32 %v1850, %v1889
    %v1891 = vpop.f32.mrb[0].mxu0
    %v1892 = vpop.f32.mrb[0].mxu0
    %v1893 = vpop.f32.mrb[0].mxu0
    %1894 = vdwg.mxu0
    %vm1895 = vcmask 326656
    %1896 = vst.msk [vmem:[%s11] sm:$0xff] %vm1895, %v1890
    %v1897 = vld [vmem:[%s1] sm:$0xff]
    %v1898 = vmul.f32 %v1890, 0.5
    %v1899 = vmul.f32 %v1898, 1.442695
    %v1900 = vpow.pop %v1899
    %1902 = vrot.lane.b32.xlu0 %v1900, 108
    %v1903 = vpop.permute.xlu0 %1902
    %v1905 = vmul.f32 %v1897, %v1903
    %v1906 = vadd.f32 %v1890, %v1905
    %vm1907 = vcmask 162816
    %v1908 = vsel %vm1907, %v1906, 0.0
    %v1909 = vpack.c.bf16 %v1908, %v1908
    %v1910 = vld [vmem:[%s6] sm:$0xff]
    %v1911 = vld [vmem:[%s6 + $0x8] sm:$0xff]
    %v1912 = vld [vmem:[%s6 + $0x10] sm:$0xff]
    %v1913 = vld [vmem:[%s6 + $0x18] sm:$0xff]
    %v1914 = vld [vmem:[%s6 + $0x20] sm:$0xff]
    %v1915 = vld [vmem:[%s6 + $0x28] sm:$0xff]
    %v1916 = vld [vmem:[%s6 + $0x30] sm:$0xff]
    %v1917 = vld [vmem:[%s6 + $0x38] sm:$0xff]
    %v1918 = vld [vmem:[%s6 + $0x40] sm:$0xff]
    %v1919 = vld [vmem:[%s6 + $0x48] sm:$0xff]
    %v1920 = vld [vmem:[%s6 + $0x50] sm:$0xff]
    %v1921 = vld [vmem:[%s6 + $0x58] sm:$0xff]
    %v1922 = vld [vmem:[%s6 + $0x60] sm:$0xff]
    %v1923 = vld [vmem:[%s6 + $0x68] sm:$0xff]
    %v1924 = vld [vmem:[%s6 + $0x70] sm:$0xff]
    %v1925 = vld [vmem:[%s6 + $0x78] sm:$0xff]
    %v1926 = vld [vmem:[%s6 + $0x80] sm:$0xff]
    %v1927 = vld [vmem:[%s6 + $0x88] sm:$0xff]
    %v1928 = vld [vmem:[%s6 + $0x90] sm:$0xff]
    %v1929 = vld [vmem:[%s6 + $0x98] sm:$0xff]
    %v1930 = vld [vmem:[%s6 + $0xa0] sm:$0xff]
    %v1931 = vld [vmem:[%s6 + $0xa8] sm:$0xff]
    %v1932 = vld [vmem:[%s6 + $0xb0] sm:$0xff]
    %v1933 = vld [vmem:[%s6 + $0xb8] sm:$0xff]
    %v1934 = vld [vmem:[%s6 + $0xc0] sm:$0xff]
    %v1935 = vld [vmem:[%s6 + $0xc8] sm:$0xff]
    %v1936 = vld [vmem:[%s6 + $0xd0] sm:$0xff]
    %v1937 = vld [vmem:[%s6 + $0xd8] sm:$0xff]
    %v1938 = vld [vmem:[%s6 + $0xe0] sm:$0xff]
    %v1939 = vld [vmem:[%s6 + $0xe8] sm:$0xff]
    %v1940 = vld [vmem:[%s6 + $0xf0] sm:$0xff]
    %v1941 = vld [vmem:[%s6 + $0xf8] sm:$0xff]
    %v1942 = vld [vmem:[%s7] sm:$0xf]
    %v1944 = vlaneseq
    %v1945 = vshrl.u32 %v1944, 7
    %v1946 = vsub.s32 0, %v1945
    %v1947 = vrot.slane %v1942, %v1946
    %v1948 = vlaneseq
    %v1949 = vshrl.u32 %v1948, 7
    %v1950 = vsub.s32 1, %v1949
    %v1951 = vrot.slane %v1942, %v1950
    %v1952 = vlaneseq
    %v1953 = vshrl.u32 %v1952, 7
    %v1954 = vsub.s32 2, %v1953
    %v1955 = vrot.slane %v1942, %v1954
    %v1956 = vlaneseq
    %v1957 = vshrl.u32 %v1956, 7
    %v1958 = vsub.s32 3, %v1957
    %v1959 = vrot.slane %v1942, %v1958
    %v1996 = vunpack.c.l.b16 %v1910
    %v1997 = vunpack.c.h.b16 %v1910
    %v1998 = vunpack.c.l.b16 %v1911
    %v1999 = vunpack.c.h.b16 %v1911
    %v2000 = vunpack.c.l.b16 %v1912
    %v2001 = vunpack.c.h.b16 %v1912
    %v2002 = vunpack.c.l.b16 %v1913
    %v2003 = vunpack.c.h.b16 %v1913
    %v2004 = vunpack.c.l.b16 %v1914
    %v2005 = vunpack.c.h.b16 %v1914
    %v2006 = vunpack.c.l.b16 %v1915
    %v2007 = vunpack.c.h.b16 %v1915
    %v2008 = vunpack.c.l.b16 %v1916
    %v2009 = vunpack.c.h.b16 %v1916
    %v2010 = vunpack.c.l.b16 %v1917
    %v2011 = vunpack.c.h.b16 %v1917
    %v2012 = vunpack.c.l.b16 %v1918
    %v2013 = vunpack.c.h.b16 %v1918
    %v2014 = vunpack.c.l.b16 %v1919
    %v2015 = vunpack.c.h.b16 %v1919
    %v2016 = vunpack.c.l.b16 %v1920
    %v2017 = vunpack.c.h.b16 %v1920
    %v2018 = vunpack.c.l.b16 %v1921
    %v2019 = vunpack.c.h.b16 %v1921
    %v2020 = vunpack.c.l.b16 %v1922
    %v2021 = vunpack.c.h.b16 %v1922
    %v2022 = vunpack.c.l.b16 %v1923
    %v2023 = vunpack.c.h.b16 %v1923
    %v2024 = vunpack.c.l.b16 %v1924
    %v2025 = vunpack.c.h.b16 %v1924
    %v2026 = vunpack.c.l.b16 %v1925
    %v2027 = vunpack.c.h.b16 %v1925
    %v2028 = vunpack.c.l.b16 %v1926
    %v2029 = vunpack.c.h.b16 %v1926
    %v2030 = vunpack.c.l.b16 %v1927
    %v2031 = vunpack.c.h.b16 %v1927
    %v2032 = vunpack.c.l.b16 %v1928
    %v2033 = vunpack.c.h.b16 %v1928
    %v2034 = vunpack.c.l.b16 %v1929
    %v2035 = vunpack.c.h.b16 %v1929
    %v2036 = vunpack.c.l.b16 %v1930
    %v2037 = vunpack.c.h.b16 %v1930
    %v2038 = vunpack.c.l.b16 %v1931
    %v2039 = vunpack.c.h.b16 %v1931
    %v2040 = vunpack.c.l.b16 %v1932
    %v2041 = vunpack.c.h.b16 %v1932
    %v2042 = vunpack.c.l.b16 %v1933
    %v2043 = vunpack.c.h.b16 %v1933
    %v2044 = vunpack.c.l.b16 %v1934
    %v2045 = vunpack.c.h.b16 %v1934
    %v2046 = vunpack.c.l.b16 %v1935
    %v2047 = vunpack.c.h.b16 %v1935
    %v2048 = vunpack.c.l.b16 %v1936
    %v2049 = vunpack.c.h.b16 %v1936
    %v2050 = vunpack.c.l.b16 %v1937
    %v2051 = vunpack.c.h.b16 %v1937
    %v2052 = vunpack.c.l.b16 %v1938
    %v2053 = vunpack.c.h.b16 %v1938
    %v2054 = vunpack.c.l.b16 %v1939
    %v2055 = vunpack.c.h.b16 %v1939
    %v2056 = vunpack.c.l.b16 %v1940
    %v2057 = vunpack.c.h.b16 %v1940
    %v2058 = vunpack.c.l.b16 %v1941
    %v2059 = vunpack.c.h.b16 %v1941
    %v2060 = vpack.c.b16 %v2000, %v1996
    %v2061 = vpack.c.b16 %v2001, %v1997
    %v2062 = vpack.c.b16 %v2002, %v1998
    %v2063 = vpack.c.b16 %v2003, %v1999
    %v2064 = vpack.c.b16 %v2008, %v2004
    %v2065 = vpack.c.b16 %v2009, %v2005
    %v2066 = vpack.c.b16 %v2010, %v2006
    %v2067 = vpack.c.b16 %v2011, %v2007
    %v2068 = vpack.c.b16 %v2016, %v2012
    %v2069 = vpack.c.b16 %v2017, %v2013
    %v2070 = vpack.c.b16 %v2018, %v2014
    %v2071 = vpack.c.b16 %v2019, %v2015
    %v2072 = vpack.c.b16 %v2024, %v2020
    %v2073 = vpack.c.b16 %v2025, %v2021
    %v2074 = vpack.c.b16 %v2026, %v2022
    %v2075 = vpack.c.b16 %v2027, %v2023
    %v2076 = vpack.c.b16 %v2032, %v2028
    %v2077 = vpack.c.b16 %v2033, %v2029
    %v2078 = vpack.c.b16 %v2034, %v2030
    %v2079 = vpack.c.b16 %v2035, %v2031
    %v2080 = vpack.c.b16 %v2040, %v2036
    %v2081 = vpack.c.b16 %v2041, %v2037
    %v2082 = vpack.c.b16 %v2042, %v2038
    %v2083 = vpack.c.b16 %v2043, %v2039
    %v2084 = vpack.c.b16 %v2048, %v2044
    %v2085 = vpack.c.b16 %v2049, %v2045
    %v2086 = vpack.c.b16 %v2050, %v2046
    %v2087 = vpack.c.b16 %v2051, %v2047
    %v2088 = vpack.c.b16 %v2056, %v2052
    %v2089 = vpack.c.b16 %v2057, %v2053
    %v2090 = vpack.c.b16 %v2058, %v2054
    %v2091 = vpack.c.b16 %v2059, %v2055
    %2124 = vmatprep.subr.bf16.mxu0 %v2061
    %2125 = vmatpush1.bf16.msra.mxu0 %v2060
    %2126 = vmatprep.subr.bf16.mxu0 %v2065
    %2127 = vmatpush1.bf16.msra.mxu0 %v2064
    %2128 = vmatprep.subr.bf16.mxu0 %v2069
    %2129 = vmatpush1.bf16.msra.mxu0 %v2068
    %2130 = vmatprep.subr.bf16.mxu0 %v2073
    %2131 = vmatpush1.bf16.msra.mxu0 %v2072
    %2132 = vmatprep.subr.bf16.mxu0 %v2077
    %2133 = vmatpush1.bf16.msra.mxu0 %v2076
    %2134 = vmatprep.subr.bf16.mxu0 %v2081
    %2135 = vmatpush1.bf16.msra.mxu0 %v2080
    %2136 = vmatprep.subr.bf16.mxu0 %v2085
    %2137 = vmatpush1.bf16.msra.mxu0 %v2084
    %2138 = vmatprep.subr.bf16.mxu0 %v2089
    %2139 = vmatpush1.bf16.msra.mxu0 %v2088
    %2140 = vmatprep.subr.bf16.mxu0 0
    %2141 = vmatpush1.bf16.msra.mxu0 0
    %2142 = vmatprep.subr.bf16.mxu0 0
    %2143 = vmatpush1.bf16.msra.mxu0 0
    %2144 = vmatprep.subr.bf16.mxu0 0
    %2145 = vmatpush1.bf16.msra.mxu0 0
    %2146 = vmatprep.subr.bf16.mxu0 0
    %2147 = vmatpush1.bf16.msra.mxu0 0
    %2148 = vmatprep.subr.bf16.mxu0 0
    %2149 = vmatpush1.bf16.msra.mxu0 0
    %2150 = vmatprep.subr.bf16.mxu0 0
    %2151 = vmatpush1.bf16.msra.mxu0 0
    %2152 = vmatprep.subr.bf16.mxu0 0
    %2153 = vmatpush1.bf16.msra.mxu0 0
    %2154 = vmatprep.subr.bf16.mxu0 0
    %2155 = vmatpush1.bf16.msra.mxu0 0
    %2156 = vmatprep.mubr.bf16.mxu0 0
    %2157 = vmatmul.mubr.bf16.gmra.mrb[0].mxu0 %v1909
    %v2158 = vpop.f32.mrb[0].mxu0
    %v2159 = vadd.f32 %v1947, %v2158
    %v2160 = vpop.f32.mrb[0].mxu0
    %v2161 = vadd.f32 %v1951, %v2160
    %v2162 = vpop.f32.mrb[0].mxu0
    %v2163 = vpop.f32.mrb[0].mxu0
    %2164 = vdwg.mxu0
    %2165 = vmatprep.subr.bf16.mxu0 %v2063
    %2166 = vmatpush1.bf16.msra.mxu0 %v2062
    %2167 = vmatprep.subr.bf16.mxu0 %v2067
    %2168 = vmatpush1.bf16.msra.mxu0 %v2066
    %2169 = vmatprep.subr.bf16.mxu0 %v2071
    %2170 = vmatpush1.bf16.msra.mxu0 %v2070
    %2171 = vmatprep.subr.bf16.mxu0 %v2075
    %2172 = vmatpush1.bf16.msra.mxu0 %v2074
    %2173 = vmatprep.subr.bf16.mxu0 %v2079
    %2174 = vmatpush1.bf16.msra.mxu0 %v2078
    %2175 = vmatprep.subr.bf16.mxu0 %v2083
    %2176 = vmatpush1.bf16.msra.mxu0 %v2082
    %2177 = vmatprep.subr.bf16.mxu0 %v2087
    %2178 = vmatpush1.bf16.msra.mxu0 %v2086
    %2179 = vmatprep.subr.bf16.mxu0 %v2091
    %2180 = vmatpush1.bf16.msra.mxu0 %v2090
    %2181 = vmatprep.subr.bf16.mxu0 0
    %2182 = vmatpush1.bf16.msra.mxu0 0
    %2183 = vmatprep.subr.bf16.mxu0 0
    %2184 = vmatpush1.bf16.msra.mxu0 0
    %2185 = vmatprep.subr.bf16.mxu0 0
    %2186 = vmatpush1.bf16.msra.mxu0 0
    %2187 = vmatprep.subr.bf16.mxu0 0
    %2188 = vmatpush1.bf16.msra.mxu0 0
    %2189 = vmatprep.subr.bf16.mxu0 0
    %2190 = vmatpush1.bf16.msra.mxu0 0
    %2191 = vmatprep.subr.bf16.mxu0 0
    %2192 = vmatpush1.bf16.msra.mxu0 0
    %2193 = vmatprep.subr.bf16.mxu0 0
    %2194 = vmatpush1.bf16.msra.mxu0 0
    %2195 = vmatprep.subr.bf16.mxu0 0
    %2196 = vmatpush1.bf16.msra.mxu0 0
    %2197 = vmatprep.mubr.bf16.mxu0 0
    %2198 = vmatmul.mubr.bf16.gmra.mrb[0].mxu0 %v1909
    %v2199 = vpop.f32.mrb[0].mxu0
    %v2200 = vadd.f32 %v1955, %v2199
    %v2201 = vpop.f32.mrb[0].mxu0
    %v2202 = vadd.f32 %v1959, %v2201
    %v2203 = vpop.f32.mrb[0].mxu0
    %v2204 = vpop.f32.mrb[0].mxu0
    %2205 = vdwg.mxu0
    %v2206 = vmax.f32 %v2159, 0.0
    %v2207 = vmax.f32 %v2161, 0.0
    %v2208 = vmax.f32 %v2200, 0.0
    %v2209 = vmax.f32 %v2202, 0.0
    %v2210 = vpack.c.bf16 %v2206, %v2206
    %v2211 = vpack.c.bf16 %v2207, %v2207
    %v2212 = vpack.c.bf16 %v2208, %v2208
    %v2213 = vpack.c.bf16 %v2209, %v2209
    %v2214 = vld [vmem:[%s8] sm:$0xff]
    %v2215 = vld [vmem:[%s8 + $0x8] sm:$0xff]
    %v2216 = vld [vmem:[%s8 + $0x10] sm:$0xff]
    %v2217 = vld [vmem:[%s8 + $0x18] sm:$0xf]
    %v2218 = vld [vmem:[%s8 + $0x1c] sm:$0xff]
    %v2219 = vld [vmem:[%s8 + $0x24] sm:$0xff]
    %v2220 = vld [vmem:[%s8 + $0x2c] sm:$0xff]
    %v2221 = vld [vmem:[%s8 + $0x34] sm:$0xf]
    %v2222 = vld [vmem:[%s8 + $0x38] sm:$0xff]
    %v2223 = vld [vmem:[%s8 + $0x40] sm:$0xff]
    %v2224 = vld [vmem:[%s8 + $0x48] sm:$0xff]
    %v2225 = vld [vmem:[%s8 + $0x50] sm:$0xf]
    %v2226 = vld [vmem:[%s8 + $0x54] sm:$0xff]
    %v2227 = vld [vmem:[%s8 + $0x5c] sm:$0xff]
    %v2228 = vld [vmem:[%s8 + $0x64] sm:$0xff]
    %v2229 = vld [vmem:[%s8 + $0x6c] sm:$0xf]
    %v2230 = vld [vmem:[%s8 + $0x70] sm:$0xff]
    %v2231 = vld [vmem:[%s8 + $0x78] sm:$0xff]
    %v2232 = vld [vmem:[%s8 + $0x80] sm:$0xff]
    %v2233 = vld [vmem:[%s8 + $0x88] sm:$0xf]
    %v2234 = vld [vmem:[%s8 + $0x8c] sm:$0xff]
    %v2235 = vld [vmem:[%s8 + $0x94] sm:$0xff]
    %v2236 = vld [vmem:[%s8 + $0x9c] sm:$0xff]
    %v2237 = vld [vmem:[%s8 + $0xa4] sm:$0xf]
    %v2238 = vld [vmem:[%s8 + $0xa8] sm:$0xff]
    %v2239 = vld [vmem:[%s8 + $0xb0] sm:$0xff]
    %v2240 = vld [vmem:[%s8 + $0xb8] sm:$0xff]
    %v2241 = vld [vmem:[%s8 + $0xc0] sm:$0xf]
    %v2242 = vld [vmem:[%s8 + $0xc4] sm:$0xff]
    %v2243 = vld [vmem:[%s8 + $0xcc] sm:$0xff]
    %v2244 = vld [vmem:[%s8 + $0xd4] sm:$0xff]
    %v2245 = vld [vmem:[%s8 + $0xdc] sm:$0xf]
    %v2246 = vld [vmem:[%s8 + $0xe0] sm:$0xff]
    %v2247 = vld [vmem:[%s8 + $0xe8] sm:$0xff]
    %v2248 = vld [vmem:[%s8 + $0xf0] sm:$0xff]
    %v2249 = vld [vmem:[%s8 + $0xf8] sm:$0xf]
    %v2250 = vld [vmem:[%s8 + $0xfc] sm:$0xff]
    %v2251 = vld [vmem:[%s8 + $0x104] sm:$0xff]
    %v2252 = vld [vmem:[%s8 + $0x10c] sm:$0xff]
    %v2253 = vld [vmem:[%s8 + $0x114] sm:$0xf]
    %v2254 = vld [vmem:[%s8 + $0x118] sm:$0xff]
    %v2255 = vld [vmem:[%s8 + $0x120] sm:$0xff]
    %v2256 = vld [vmem:[%s8 + $0x128] sm:$0xff]
    %v2257 = vld [vmem:[%s8 + $0x130] sm:$0xf]
    %v2258 = vld [vmem:[%s8 + $0x134] sm:$0xff]
    %v2259 = vld [vmem:[%s8 + $0x13c] sm:$0xff]
    %v2260 = vld [vmem:[%s8 + $0x144] sm:$0xff]
    %v2261 = vld [vmem:[%s8 + $0x14c] sm:$0xf]
    %v2262 = vld [vmem:[%s8 + $0x150] sm:$0xff]
    %v2263 = vld [vmem:[%s8 + $0x158] sm:$0xff]
    %v2264 = vld [vmem:[%s8 + $0x160] sm:$0xff]
    %v2265 = vld [vmem:[%s8 + $0x168] sm:$0xf]
    %v2266 = vld [vmem:[%s8 + $0x16c] sm:$0xff]
    %v2267 = vld [vmem:[%s8 + $0x174] sm:$0xff]
    %v2268 = vld [vmem:[%s8 + $0x17c] sm:$0xff]
    %v2269 = vld [vmem:[%s8 + $0x184] sm:$0xf]
    %v2270 = vld [vmem:[%s8 + $0x188] sm:$0xff]
    %v2271 = vld [vmem:[%s8 + $0x190] sm:$0xff]
    %v2272 = vld [vmem:[%s8 + $0x198] sm:$0xff]
    %v2273 = vld [vmem:[%s8 + $0x1a0] sm:$0xf]
    %v2274 = vld [vmem:[%s8 + $0x1a4] sm:$0xff]
    %v2275 = vld [vmem:[%s8 + $0x1ac] sm:$0xff]
    %v2276 = vld [vmem:[%s8 + $0x1b4] sm:$0xff]
    %v2277 = vld [vmem:[%s8 + $0x1bc] sm:$0xf]
    %v2278 = vld [vmem:[%s8 + $0x1c0] sm:$0xff]
    %v2279 = vld [vmem:[%s8 + $0x1c8] sm:$0xff]
    %v2280 = vld [vmem:[%s8 + $0x1d0] sm:$0xff]
    %v2281 = vld [vmem:[%s8 + $0x1d8] sm:$0xf]
    %v2282 = vld [vmem:[%s8 + $0x1dc] sm:$0xff]
    %v2283 = vld [vmem:[%s8 + $0x1e4] sm:$0xff]
    %v2284 = vld [vmem:[%s8 + $0x1ec] sm:$0xff]
    %v2285 = vld [vmem:[%s8 + $0x1f4] sm:$0xf]
    %v2286 = vld [vmem:[%s8 + $0x1f8] sm:$0xff]
    %v2287 = vld [vmem:[%s8 + $0x200] sm:$0xff]
    %v2288 = vld [vmem:[%s8 + $0x208] sm:$0xff]
    %v2289 = vld [vmem:[%s8 + $0x210] sm:$0xf]
    %v2290 = vld [vmem:[%s8 + $0x214] sm:$0xff]
    %v2291 = vld [vmem:[%s8 + $0x21c] sm:$0xff]
    %v2292 = vld [vmem:[%s8 + $0x224] sm:$0xff]
    %v2293 = vld [vmem:[%s8 + $0x22c] sm:$0xf]
    %v2294 = vld [vmem:[%s8 + $0x230] sm:$0xff]
    %v2295 = vld [vmem:[%s8 + $0x238] sm:$0xff]
    %v2296 = vld [vmem:[%s8 + $0x240] sm:$0xff]
    %v2297 = vld [vmem:[%s8 + $0x248] sm:$0xf]
    %v2298 = vld [vmem:[%s8 + $0x24c] sm:$0xff]
    %v2299 = vld [vmem:[%s8 + $0x254] sm:$0xff]
    %v2300 = vld [vmem:[%s8 + $0x25c] sm:$0xff]
    %v2301 = vld [vmem:[%s8 + $0x264] sm:$0xf]
    %v2302 = vld [vmem:[%s8 + $0x268] sm:$0xff]
    %v2303 = vld [vmem:[%s8 + $0x270] sm:$0xff]
    %v2304 = vld [vmem:[%s8 + $0x278] sm:$0xff]
    %v2305 = vld [vmem:[%s8 + $0x280] sm:$0xf]
    %v2306 = vld [vmem:[%s8 + $0x284] sm:$0xff]
    %v2307 = vld [vmem:[%s8 + $0x28c] sm:$0xff]
    %v2308 = vld [vmem:[%s8 + $0x294] sm:$0xff]
    %v2309 = vld [vmem:[%s8 + $0x29c] sm:$0xf]
    %v2310 = vld [vmem:[%s8 + $0x2a0] sm:$0xff]
    %v2311 = vld [vmem:[%s8 + $0x2a8] sm:$0xff]
    %v2312 = vld [vmem:[%s8 + $0x2b0] sm:$0xff]
    %v2313 = vld [vmem:[%s8 + $0x2b8] sm:$0xf]
    %v2314 = vld [vmem:[%s8 + $0x2bc] sm:$0xff]
    %v2315 = vld [vmem:[%s8 + $0x2c4] sm:$0xff]
    %v2316 = vld [vmem:[%s8 + $0x2cc] sm:$0xff]
    %v2317 = vld [vmem:[%s8 + $0x2d4] sm:$0xf]
    %v2318 = vld [vmem:[%s8 + $0x2d8] sm:$0xff]
    %v2319 = vld [vmem:[%s8 + $0x2e0] sm:$0xff]
    %v2320 = vld [vmem:[%s8 + $0x2e8] sm:$0xff]
    %v2321 = vld [vmem:[%s8 + $0x2f0] sm:$0xf]
    %v2322 = vld [vmem:[%s8 + $0x2f4] sm:$0xff]
    %v2323 = vld [vmem:[%s8 + $0x2fc] sm:$0xff]
    %v2324 = vld [vmem:[%s8 + $0x304] sm:$0xff]
    %v2325 = vld [vmem:[%s8 + $0x30c] sm:$0xf]
    %v2326 = vld [vmem:[%s8 + $0x310] sm:$0xff]
    %v2327 = vld [vmem:[%s8 + $0x318] sm:$0xff]
    %v2328 = vld [vmem:[%s8 + $0x320] sm:$0xff]
    %v2329 = vld [vmem:[%s8 + $0x328] sm:$0xf]
    %v2330 = vld [vmem:[%s8 + $0x32c] sm:$0xff]
    %v2331 = vld [vmem:[%s8 + $0x334] sm:$0xff]
    %v2332 = vld [vmem:[%s8 + $0x33c] sm:$0xff]
    %v2333 = vld [vmem:[%s8 + $0x344] sm:$0xf]
    %v2334 = vld [vmem:[%s8 + $0x348] sm:$0xff]
    %v2335 = vld [vmem:[%s8 + $0x350] sm:$0xff]
    %v2336 = vld [vmem:[%s8 + $0x358] sm:$0xff]
    %v2337 = vld [vmem:[%s8 + $0x360] sm:$0xf]
    %v2338 = vld [vmem:[%s8 + $0x364] sm:$0xff]
    %v2339 = vld [vmem:[%s8 + $0x36c] sm:$0xff]
    %v2340 = vld [vmem:[%s8 + $0x374] sm:$0xff]
    %v2341 = vld [vmem:[%s8 + $0x37c] sm:$0xf]
    %v2342 = vld [vmem:[%s8 + $0x380] sm:$0xff]
    %v2343 = vld [vmem:[%s8 + $0x388] sm:$0xff]
    %v2344 = vld [vmem:[%s8 + $0x390] sm:$0xff]
    %v2345 = vld [vmem:[%s8 + $0x398] sm:$0xf]
    %v2346 = vld [vmem:[%s8 + $0x39c] sm:$0xff]
    %v2347 = vld [vmem:[%s8 + $0x3a4] sm:$0xff]
    %v2348 = vld [vmem:[%s8 + $0x3ac] sm:$0xff]
    %v2349 = vld [vmem:[%s8 + $0x3b4] sm:$0xf]
    %v2350 = vld [vmem:[%s8 + $0x3b8] sm:$0xff]
    %v2351 = vld [vmem:[%s8 + $0x3c0] sm:$0xff]
    %v2352 = vld [vmem:[%s8 + $0x3c8] sm:$0xff]
    %v2353 = vld [vmem:[%s8 + $0x3d0] sm:$0xf]
    %v2354 = vld [vmem:[%s8 + $0x3d4] sm:$0xff]
    %v2355 = vld [vmem:[%s8 + $0x3dc] sm:$0xff]
    %v2356 = vld [vmem:[%s8 + $0x3e4] sm:$0xff]
    %v2357 = vld [vmem:[%s8 + $0x3ec] sm:$0xf]
    %v2358 = vld [vmem:[%s8 + $0x3f0] sm:$0xff]
    %v2359 = vld [vmem:[%s8 + $0x3f8] sm:$0xff]
    %v2360 = vld [vmem:[%s8 + $0x400] sm:$0xff]
    %v2361 = vld [vmem:[%s8 + $0x408] sm:$0xf]
    %v2362 = vld [vmem:[%s8 + $0x40c] sm:$0xff]
    %v2363 = vld [vmem:[%s8 + $0x414] sm:$0xff]
    %v2364 = vld [vmem:[%s8 + $0x41c] sm:$0xff]
    %v2365 = vld [vmem:[%s8 + $0x424] sm:$0xf]
    %v2366 = vld [vmem:[%s8 + $0x428] sm:$0xff]
    %v2367 = vld [vmem:[%s8 + $0x430] sm:$0xff]
    %v2368 = vld [vmem:[%s8 + $0x438] sm:$0xff]
    %v2369 = vld [vmem:[%s8 + $0x440] sm:$0xf]
    %v2370 = vld [vmem:[%s8 + $0x444] sm:$0xff]
    %v2371 = vld [vmem:[%s8 + $0x44c] sm:$0xff]
    %v2372 = vld [vmem:[%s8 + $0x454] sm:$0xff]
    %v2373 = vld [vmem:[%s8 + $0x45c] sm:$0xf]
    %v2374 = vld [vmem:[%s8 + $0x460] sm:$0xff]
    %v2375 = vld [vmem:[%s8 + $0x468] sm:$0xff]
    %v2376 = vld [vmem:[%s8 + $0x470] sm:$0xff]
    %v2377 = vld [vmem:[%s8 + $0x478] sm:$0xf]
    %v2378 = vld [vmem:[%s8 + $0x47c] sm:$0xff]
    %v2379 = vld [vmem:[%s8 + $0x484] sm:$0xff]
    %v2380 = vld [vmem:[%s8 + $0x48c] sm:$0xff]
    %v2381 = vld [vmem:[%s8 + $0x494] sm:$0xf]
    %v2382 = vld [vmem:[%s8 + $0x498] sm:$0xff]
    %v2383 = vld [vmem:[%s8 + $0x4a0] sm:$0xff]
    %v2384 = vld [vmem:[%s8 + $0x4a8] sm:$0xff]
    %v2385 = vld [vmem:[%s8 + $0x4b0] sm:$0xf]
    %v2386 = vld [vmem:[%s8 + $0x4b4] sm:$0xff]
    %v2387 = vld [vmem:[%s8 + $0x4bc] sm:$0xff]
    %v2388 = vld [vmem:[%s8 + $0x4c4] sm:$0xff]
    %v2389 = vld [vmem:[%s8 + $0x4cc] sm:$0xf]
    %v2390 = vld [vmem:[%s8 + $0x4d0] sm:$0xff]
    %v2391 = vld [vmem:[%s8 + $0x4d8] sm:$0xff]
    %v2392 = vld [vmem:[%s8 + $0x4e0] sm:$0xff]
    %v2393 = vld [vmem:[%s8 + $0x4e8] sm:$0xf]
    %v2394 = vld [vmem:[%s8 + $0x4ec] sm:$0xff]
    %v2395 = vld [vmem:[%s8 + $0x4f4] sm:$0xff]
    %v2396 = vld [vmem:[%s8 + $0x4fc] sm:$0xff]
    %v2397 = vld [vmem:[%s8 + $0x504] sm:$0xf]
    %v2398 = vld [vmem:[%s8 + $0x508] sm:$0xff]
    %v2399 = vld [vmem:[%s8 + $0x510] sm:$0xff]
    %v2400 = vld [vmem:[%s8 + $0x518] sm:$0xff]
    %v2401 = vld [vmem:[%s8 + $0x520] sm:$0xf]
    %v2402 = vld [vmem:[%s8 + $0x524] sm:$0xff]
    %v2403 = vld [vmem:[%s8 + $0x52c] sm:$0xff]
    %v2404 = vld [vmem:[%s8 + $0x534] sm:$0xff]
    %v2405 = vld [vmem:[%s8 + $0x53c] sm:$0xf]
    %v2406 = vld [vmem:[%s8 + $0x540] sm:$0xff]
    %v2407 = vld [vmem:[%s8 + $0x548] sm:$0xff]
    %v2408 = vld [vmem:[%s8 + $0x550] sm:$0xff]
    %v2409 = vld [vmem:[%s8 + $0x558] sm:$0xf]
    %v2410 = vld [vmem:[%s8 + $0x55c] sm:$0xff]
    %v2411 = vld [vmem:[%s8 + $0x564] sm:$0xff]
    %v2412 = vld [vmem:[%s8 + $0x56c] sm:$0xff]
    %v2413 = vld [vmem:[%s8 + $0x574] sm:$0xf]
    %v2414 = vld [vmem:[%s9] sm:$0x7f]
    %v2416 = vlaneseq
    %v2417 = vshrl.u32 %v2416, 7
    %v2418 = vsub.s32 0, %v2417
    %v2419 = vrot.slane %v2414, %v2418
    %v2420 = vlaneseq
    %v2421 = vshrl.u32 %v2420, 7
    %v2422 = vsub.s32 1, %v2421
    %v2423 = vrot.slane %v2414, %v2422
    %v2424 = vlaneseq
    %v2425 = vshrl.u32 %v2424, 7
    %v2426 = vsub.s32 2, %v2425
    %v2427 = vrot.slane %v2414, %v2426
    %v2428 = vlaneseq
    %v2429 = vshrl.u32 %v2428, 7
    %v2430 = vsub.s32 3, %v2429
    %v2431 = vrot.slane %v2414, %v2430
    %v2432 = vlaneseq
    %v2433 = vshrl.u32 %v2432, 7
    %v2434 = vsub.s32 4, %v2433
    %v2435 = vrot.slane %v2414, %v2434
    %v2436 = vlaneseq
    %v2437 = vshrl.u32 %v2436, 7
    %v2438 = vsub.s32 5, %v2437
    %v2439 = vrot.slane %v2414, %v2438
    %v2440 = vlaneseq
    %v2441 = vshrl.u32 %v2440, 7
    %v2442 = vsub.s32 6, %v2441
    %v2443 = vrot.slane %v2414, %v2442
    %v2651 = vunpack.c.l.b16 %v2214
    %v2652 = vunpack.c.h.b16 %v2214
    %v2653 = vunpack.c.l.b16 %v2215
    %v2654 = vunpack.c.h.b16 %v2215
    %v2655 = vunpack.c.l.b16 %v2216
    %v2656 = vunpack.c.h.b16 %v2216
    %v2657 = vunpack.c.l.b16 %v2217
    %v2658 = vunpack.c.l.b16 %v2218
    %v2659 = vunpack.c.h.b16 %v2218
    %v2660 = vunpack.c.l.b16 %v2219
    %v2661 = vunpack.c.h.b16 %v2219
    %v2662 = vunpack.c.l.b16 %v2220
    %v2663 = vunpack.c.h.b16 %v2220
    %v2664 = vunpack.c.l.b16 %v2221
    %v2665 = vunpack.c.l.b16 %v2222
    %v2666 = vunpack.c.h.b16 %v2222
    %v2667 = vunpack.c.l.b16 %v2223
    %v2668 = vunpack.c.h.b16 %v2223
    %v2669 = vunpack.c.l.b16 %v2224
    %v2670 = vunpack.c.h.b16 %v2224
    %v2671 = vunpack.c.l.b16 %v2225
    %v2672 = vunpack.c.l.b16 %v2226
    %v2673 = vunpack.c.h.b16 %v2226
    %v2674 = vunpack.c.l.b16 %v2227
    %v2675 = vunpack.c.h.b16 %v2227
    %v2676 = vunpack.c.l.b16 %v2228
    %v2677 = vunpack.c.h.b16 %v2228
    %v2678 = vunpack.c.l.b16 %v2229
    %v2679 = vunpack.c.l.b16 %v2230
    %v2680 = vunpack.c.h.b16 %v2230
    %v2681 = vunpack.c.l.b16 %v2231
    %v2682 = vunpack.c.h.b16 %v2231
    %v2683 = vunpack.c.l.b16 %v2232
    %v2684 = vunpack.c.h.b16 %v2232
    %v2685 = vunpack.c.l.b16 %v2233
    %v2686 = vunpack.c.l.b16 %v2234
    %v2687 = vunpack.c.h.b16 %v2234
    %v2688 = vunpack.c.l.b16 %v2235
    %v2689 = vunpack.c.h.b16 %v2235
    %v2690 = vunpack.c.l.b16 %v2236
    %v2691 = vunpack.c.h.b16 %v2236
    %v2692 = vunpack.c.l.b16 %v2237
    %v2693 = vunpack.c.l.b16 %v2238
    %v2694 = vunpack.c.h.b16 %v2238
    %v2695 = vunpack.c.l.b16 %v2239
    %v2696 = vunpack.c.h.b16 %v2239
    %v2697 = vunpack.c.l.b16 %v2240
    %v2698 = vunpack.c.h.b16 %v2240
    %v2699 = vunpack.c.l.b16 %v2241
    %v2700 = vunpack.c.l.b16 %v2242
    %v2701 = vunpack.c.h.b16 %v2242
    %v2702 = vunpack.c.l.b16 %v2243
    %v2703 = vunpack.c.h.b16 %v2243
    %v2704 = vunpack.c.l.b16 %v2244
    %v2705 = vunpack.c.h.b16 %v2244
    %v2706 = vunpack.c.l.b16 %v2245
    %v2707 = vunpack.c.l.b16 %v2246
    %v2708 = vunpack.c.h.b16 %v2246
    %v2709 = vunpack.c.l.b16 %v2247
    %v2710 = vunpack.c.h.b16 %v2247
    %v2711 = vunpack.c.l.b16 %v2248
    %v2712 = vunpack.c.h.b16 %v2248
    %v2713 = vunpack.c.l.b16 %v2249
    %v2714 = vunpack.c.l.b16 %v2250
    %v2715 = vunpack.c.h.b16 %v2250
    %v2716 = vunpack.c.l.b16 %v2251
    %v2717 = vunpack.c.h.b16 %v2251
    %v2718 = vunpack.c.l.b16 %v2252
    %v2719 = vunpack.c.h.b16 %v2252
    %v2720 = vunpack.c.l.b16 %v2253
    %v2721 = vunpack.c.l.b16 %v2254
    %v2722 = vunpack.c.h.b16 %v2254
    %v2723 = vunpack.c.l.b16 %v2255
    %v2724 = vunpack.c.h.b16 %v2255
    %v2725 = vunpack.c.l.b16 %v2256
    %v2726 = vunpack.c.h.b16 %v2256
    %v2727 = vunpack.c.l.b16 %v2257
    %v2728 = vunpack.c.l.b16 %v2258
    %v2729 = vunpack.c.h.b16 %v2258
    %v2730 = vunpack.c.l.b16 %v2259
    %v2731 = vunpack.c.h.b16 %v2259
    %v2732 = vunpack.c.l.b16 %v2260
    %v2733 = vunpack.c.h.b16 %v2260
    %v2734 = vunpack.c.l.b16 %v2261
    %v2735 = vunpack.c.l.b16 %v2262
    %v2736 = vunpack.c.h.b16 %v2262
    %v2737 = vunpack.c.l.b16 %v2263
    %v2738 = vunpack.c.h.b16 %v2263
    %v2739 = vunpack.c.l.b16 %v2264
    %v2740 = vunpack.c.h.b16 %v2264
    %v2741 = vunpack.c.l.b16 %v2265
    %v2742 = vunpack.c.l.b16 %v2266
    %v2743 = vunpack.c.h.b16 %v2266
    %v2744 = vunpack.c.l.b16 %v2267
    %v2745 = vunpack.c.h.b16 %v2267
    %v2746 = vunpack.c.l.b16 %v2268
    %v2747 = vunpack.c.h.b16 %v2268
    %v2748 = vunpack.c.l.b16 %v2269
    %v2749 = vunpack.c.l.b16 %v2270
    %v2750 = vunpack.c.h.b16 %v2270
    %v2751 = vunpack.c.l.b16 %v2271
    %v2752 = vunpack.c.h.b16 %v2271
    %v2753 = vunpack.c.l.b16 %v2272
    %v2754 = vunpack.c.h.b16 %v2272
    %v2755 = vunpack.c.l.b16 %v2273
    %v2756 = vunpack.c.l.b16 %v2274
    %v2757 = vunpack.c.h.b16 %v2274
    %v2758 = vunpack.c.l.b16 %v2275
    %v2759 = vunpack.c.h.b16 %v2275
    %v2760 = vunpack.c.l.b16 %v2276
    %v2761 = vunpack.c.h.b16 %v2276
    %v2762 = vunpack.c.l.b16 %v2277
    %v2763 = vunpack.c.l.b16 %v2278
    %v2764 = vunpack.c.h.b16 %v2278
    %v2765 = vunpack.c.l.b16 %v2279
    %v2766 = vunpack.c.h.b16 %v2279
    %v2767 = vunpack.c.l.b16 %v2280
    %v2768 = vunpack.c.h.b16 %v2280
    %v2769 = vunpack.c.l.b16 %v2281
    %v2770 = vunpack.c.l.b16 %v2282
    %v2771 = vunpack.c.h.b16 %v2282
    %v2772 = vunpack.c.l.b16 %v2283
    %v2773 = vunpack.c.h.b16 %v2283
    %v2774 = vunpack.c.l.b16 %v2284
    %v2775 = vunpack.c.h.b16 %v2284
    %v2776 = vunpack.c.l.b16 %v2285
    %v2777 = vunpack.c.l.b16 %v2286
    %v2778 = vunpack.c.h.b16 %v2286
    %v2779 = vunpack.c.l.b16 %v2287
    %v2780 = vunpack.c.h.b16 %v2287
    %v2781 = vunpack.c.l.b16 %v2288
    %v2782 = vunpack.c.h.b16 %v2288
    %v2783 = vunpack.c.l.b16 %v2289
    %v2784 = vunpack.c.l.b16 %v2290
    %v2785 = vunpack.c.h.b16 %v2290
    %v2786 = vunpack.c.l.b16 %v2291
    %v2787 = vunpack.c.h.b16 %v2291
    %v2788 = vunpack.c.l.b16 %v2292
    %v2789 = vunpack.c.h.b16 %v2292
    %v2790 = vunpack.c.l.b16 %v2293
    %v2791 = vunpack.c.l.b16 %v2294
    %v2792 = vunpack.c.h.b16 %v2294
    %v2793 = vunpack.c.l.b16 %v2295
    %v2794 = vunpack.c.h.b16 %v2295
    %v2795 = vunpack.c.l.b16 %v2296
    %v2796 = vunpack.c.h.b16 %v2296
    %v2797 = vunpack.c.l.b16 %v2297
    %v2798 = vunpack.c.l.b16 %v2298
    %v2799 = vunpack.c.h.b16 %v2298
    %v2800 = vunpack.c.l.b16 %v2299
    %v2801 = vunpack.c.h.b16 %v2299
    %v2802 = vunpack.c.l.b16 %v2300
    %v2803 = vunpack.c.h.b16 %v2300
    %v2804 = vunpack.c.l.b16 %v2301
    %v2805 = vunpack.c.l.b16 %v2302
    %v2806 = vunpack.c.h.b16 %v2302
    %v2807 = vunpack.c.l.b16 %v2303
    %v2808 = vunpack.c.h.b16 %v2303
    %v2809 = vunpack.c.l.b16 %v2304
    %v2810 = vunpack.c.h.b16 %v2304
    %v2811 = vunpack.c.l.b16 %v2305
    %v2812 = vunpack.c.l.b16 %v2306
    %v2813 = vunpack.c.h.b16 %v2306
    %v2814 = vunpack.c.l.b16 %v2307
    %v2815 = vunpack.c.h.b16 %v2307
    %v2816 = vunpack.c.l.b16 %v2308
    %v2817 = vunpack.c.h.b16 %v2308
    %v2818 = vunpack.c.l.b16 %v2309
    %v2819 = vunpack.c.l.b16 %v2310
    %v2820 = vunpack.c.h.b16 %v2310
    %v2821 = vunpack.c.l.b16 %v2311
    %v2822 = vunpack.c.h.b16 %v2311
    %v2823 = vunpack.c.l.b16 %v2312
    %v2824 = vunpack.c.h.b16 %v2312
    %v2825 = vunpack.c.l.b16 %v2313
    %v2826 = vunpack.c.l.b16 %v2314
    %v2827 = vunpack.c.h.b16 %v2314
    %v2828 = vunpack.c.l.b16 %v2315
    %v2829 = vunpack.c.h.b16 %v2315
    %v2830 = vunpack.c.l.b16 %v2316
    %v2831 = vunpack.c.h.b16 %v2316
    %v2832 = vunpack.c.l.b16 %v2317
    %v2833 = vunpack.c.l.b16 %v2318
    %v2834 = vunpack.c.h.b16 %v2318
    %v2835 = vunpack.c.l.b16 %v2319
    %v2836 = vunpack.c.h.b16 %v2319
    %v2837 = vunpack.c.l.b16 %v2320
    %v2838 = vunpack.c.h.b16 %v2320
    %v2839 = vunpack.c.l.b16 %v2321
    %v2840 = vunpack.c.l.b16 %v2322
    %v2841 = vunpack.c.h.b16 %v2322
    %v2842 = vunpack.c.l.b16 %v2323
    %v2843 = vunpack.c.h.b16 %v2323
    %v2844 = vunpack.c.l.b16 %v2324
    %v2845 = vunpack.c.h.b16 %v2324
    %v2846 = vunpack.c.l.b16 %v2325
    %v2847 = vunpack.c.l.b16 %v2326
    %v2848 = vunpack.c.h.b16 %v2326
    %v2849 = vunpack.c.l.b16 %v2327
    %v2850 = vunpack.c.h.b16 %v2327
    %v2851 = vunpack.c.l.b16 %v2328
    %v2852 = vunpack.c.h.b16 %v2328
    %v2853 = vunpack.c.l.b16 %v2329
    %v2854 = vunpack.c.l.b16 %v2330
    %v2855 = vunpack.c.h.b16 %v2330
    %v2856 = vunpack.c.l.b16 %v2331
    %v2857 = vunpack.c.h.b16 %v2331
    %v2858 = vunpack.c.l.b16 %v2332
    %v2859 = vunpack.c.h.b16 %v2332
    %v2860 = vunpack.c.l.b16 %v2333
    %v2861 = vunpack.c.l.b16 %v2334
    %v2862 = vunpack.c.h.b16 %v2334
    %v2863 = vunpack.c.l.b16 %v2335
    %v2864 = vunpack.c.h.b16 %v2335
    %v2865 = vunpack.c.l.b16 %v2336
    %v2866 = vunpack.c.h.b16 %v2336
    %v2867 = vunpack.c.l.b16 %v2337
    %v2868 = vunpack.c.l.b16 %v2338
    %v2869 = vunpack.c.h.b16 %v2338
    %v2870 = vunpack.c.l.b16 %v2339
    %v2871 = vunpack.c.h.b16 %v2339
    %v2872 = vunpack.c.l.b16 %v2340
    %v2873 = vunpack.c.h.b16 %v2340
    %v2874 = vunpack.c.l.b16 %v2341
    %v2875 = vunpack.c.l.b16 %v2342
    %v2876 = vunpack.c.h.b16 %v2342
    %v2877 = vunpack.c.l.b16 %v2343
    %v2878 = vunpack.c.h.b16 %v2343
    %v2879 = vunpack.c.l.b16 %v2344
    %v2880 = vunpack.c.h.b16 %v2344
    %v2881 = vunpack.c.l.b16 %v2345
    %v2882 = vunpack.c.l.b16 %v2346
    %v2883 = vunpack.c.h.b16 %v2346
    %v2884 = vunpack.c.l.b16 %v2347
    %v2885 = vunpack.c.h.b16 %v2347
    %v2886 = vunpack.c.l.b16 %v2348
    %v2887 = vunpack.c.h.b16 %v2348
    %v2888 = vunpack.c.l.b16 %v2349
    %v2889 = vunpack.c.l.b16 %v2350
    %v2890 = vunpack.c.h.b16 %v2350
    %v2891 = vunpack.c.l.b16 %v2351
    %v2892 = vunpack.c.h.b16 %v2351
    %v2893 = vunpack.c.l.b16 %v2352
    %v2894 = vunpack.c.h.b16 %v2352
    %v2895 = vunpack.c.l.b16 %v2353
    %v2896 = vunpack.c.l.b16 %v2354
    %v2897 = vunpack.c.h.b16 %v2354
    %v2898 = vunpack.c.l.b16 %v2355
    %v2899 = vunpack.c.h.b16 %v2355
    %v2900 = vunpack.c.l.b16 %v2356
    %v2901 = vunpack.c.h.b16 %v2356
    %v2902 = vunpack.c.l.b16 %v2357
    %v2903 = vunpack.c.l.b16 %v2358
    %v2904 = vunpack.c.h.b16 %v2358
    %v2905 = vunpack.c.l.b16 %v2359
    %v2906 = vunpack.c.h.b16 %v2359
    %v2907 = vunpack.c.l.b16 %v2360
    %v2908 = vunpack.c.h.b16 %v2360
    %v2909 = vunpack.c.l.b16 %v2361
    %v2910 = vunpack.c.l.b16 %v2362
    %v2911 = vunpack.c.h.b16 %v2362
    %v2912 = vunpack.c.l.b16 %v2363
    %v2913 = vunpack.c.h.b16 %v2363
    %v2914 = vunpack.c.l.b16 %v2364
    %v2915 = vunpack.c.h.b16 %v2364
    %v2916 = vunpack.c.l.b16 %v2365
    %v2917 = vunpack.c.l.b16 %v2366
    %v2918 = vunpack.c.h.b16 %v2366
    %v2919 = vunpack.c.l.b16 %v2367
    %v2920 = vunpack.c.h.b16 %v2367
    %v2921 = vunpack.c.l.b16 %v2368
    %v2922 = vunpack.c.h.b16 %v2368
    %v2923 = vunpack.c.l.b16 %v2369
    %v2924 = vunpack.c.l.b16 %v2370
    %v2925 = vunpack.c.h.b16 %v2370
    %v2926 = vunpack.c.l.b16 %v2371
    %v2927 = vunpack.c.h.b16 %v2371
    %v2928 = vunpack.c.l.b16 %v2372
    %v2929 = vunpack.c.h.b16 %v2372
    %v2930 = vunpack.c.l.b16 %v2373
    %v2931 = vunpack.c.l.b16 %v2374
    %v2932 = vunpack.c.h.b16 %v2374
    %v2933 = vunpack.c.l.b16 %v2375
    %v2934 = vunpack.c.h.b16 %v2375
    %v2935 = vunpack.c.l.b16 %v2376
    %v2936 = vunpack.c.h.b16 %v2376
    %v2937 = vunpack.c.l.b16 %v2377
    %v2938 = vunpack.c.l.b16 %v2378
    %v2939 = vunpack.c.h.b16 %v2378
    %v2940 = vunpack.c.l.b16 %v2379
    %v2941 = vunpack.c.h.b16 %v2379
    %v2942 = vunpack.c.l.b16 %v2380
    %v2943 = vunpack.c.h.b16 %v2380
    %v2944 = vunpack.c.l.b16 %v2381
    %v2945 = vunpack.c.l.b16 %v2382
    %v2946 = vunpack.c.h.b16 %v2382
    %v2947 = vunpack.c.l.b16 %v2383
    %v2948 = vunpack.c.h.b16 %v2383
    %v2949 = vunpack.c.l.b16 %v2384
    %v2950 = vunpack.c.h.b16 %v2384
    %v2951 = vunpack.c.l.b16 %v2385
    %v2952 = vunpack.c.l.b16 %v2386
    %v2953 = vunpack.c.h.b16 %v2386
    %v2954 = vunpack.c.l.b16 %v2387
    %v2955 = vunpack.c.h.b16 %v2387
    %v2956 = vunpack.c.l.b16 %v2388
    %v2957 = vunpack.c.h.b16 %v2388
    %v2958 = vunpack.c.l.b16 %v2389
    %v2959 = vunpack.c.l.b16 %v2390
    %v2960 = vunpack.c.h.b16 %v2390
    %v2961 = vunpack.c.l.b16 %v2391
    %v2962 = vunpack.c.h.b16 %v2391
    %v2963 = vunpack.c.l.b16 %v2392
    %v2964 = vunpack.c.h.b16 %v2392
    %v2965 = vunpack.c.l.b16 %v2393
    %v2966 = vunpack.c.l.b16 %v2394
    %v2967 = vunpack.c.h.b16 %v2394
    %v2968 = vunpack.c.l.b16 %v2395
    %v2969 = vunpack.c.h.b16 %v2395
    %v2970 = vunpack.c.l.b16 %v2396
    %v2971 = vunpack.c.h.b16 %v2396
    %v2972 = vunpack.c.l.b16 %v2397
    %v2973 = vunpack.c.l.b16 %v2398
    %v2974 = vunpack.c.h.b16 %v2398
    %v2975 = vunpack.c.l.b16 %v2399
    %v2976 = vunpack.c.h.b16 %v2399
    %v2977 = vunpack.c.l.b16 %v2400
    %v2978 = vunpack.c.h.b16 %v2400
    %v2979 = vunpack.c.l.b16 %v2401
    %v2980 = vunpack.c.l.b16 %v2402
    %v2981 = vunpack.c.h.b16 %v2402
    %v2982 = vunpack.c.l.b16 %v2403
    %v2983 = vunpack.c.h.b16 %v2403
    %v2984 = vunpack.c.l.b16 %v2404
    %v2985 = vunpack.c.h.b16 %v2404
    %v2986 = vunpack.c.l.b16 %v2405
    %v2987 = vunpack.c.l.b16 %v2406
    %v2988 = vunpack.c.h.b16 %v2406
    %v2989 = vunpack.c.l.b16 %v2407
    %v2990 = vunpack.c.h.b16 %v2407
    %v2991 = vunpack.c.l.b16 %v2408
    %v2992 = vunpack.c.h.b16 %v2408
    %v2993 = vunpack.c.l.b16 %v2409
    %v2994 = vunpack.c.l.b16 %v2410
    %v2995 = vunpack.c.h.b16 %v2410
    %v2996 = vunpack.c.l.b16 %v2411
    %v2997 = vunpack.c.h.b16 %v2411
    %v2998 = vunpack.c.l.b16 %v2412
    %v2999 = vunpack.c.h.b16 %v2412
    %v3000 = vunpack.c.l.b16 %v2413
    %v3001 = vpack.c.b16 %v2658, %v2651
    %v3002 = vpack.c.b16 %v2659, %v2652
    %v3003 = vpack.c.b16 %v2660, %v2653
    %v3004 = vpack.c.b16 %v2661, %v2654
    %v3005 = vpack.c.b16 %v2662, %v2655
    %v3006 = vpack.c.b16 %v2663, %v2656
    %v3007 = vpack.c.b16 %v2664, %v2657
    %v3008 = vpack.c.b16 %v2672, %v2665
    %v3009 = vpack.c.b16 %v2673, %v2666
    %v3010 = vpack.c.b16 %v2674, %v2667
    %v3011 = vpack.c.b16 %v2675, %v2668
    %v3012 = vpack.c.b16 %v2676, %v2669
    %v3013 = vpack.c.b16 %v2677, %v2670
    %v3014 = vpack.c.b16 %v2678, %v2671
    %v3015 = vpack.c.b16 %v2686, %v2679
    %v3016 = vpack.c.b16 %v2687, %v2680
    %v3017 = vpack.c.b16 %v2688, %v2681
    %v3018 = vpack.c.b16 %v2689, %v2682
    %v3019 = vpack.c.b16 %v2690, %v2683
    %v3020 = vpack.c.b16 %v2691, %v2684
    %v3021 = vpack.c.b16 %v2692, %v2685
    %v3022 = vpack.c.b16 %v2700, %v2693
    %v3023 = vpack.c.b16 %v2701, %v2694
    %v3024 = vpack.c.b16 %v2702, %v2695
    %v3025 = vpack.c.b16 %v2703, %v2696
    %v3026 = vpack.c.b16 %v2704, %v2697
    %v3027 = vpack.c.b16 %v2705, %v2698
    %v3028 = vpack.c.b16 %v2706, %v2699
    %v3029 = vpack.c.b16 %v2714, %v2707
    %v3030 = vpack.c.b16 %v2715, %v2708
    %v3031 = vpack.c.b16 %v2716, %v2709
    %v3032 = vpack.c.b16 %v2717, %v2710
    %v3033 = vpack.c.b16 %v2718, %v2711
    %v3034 = vpack.c.b16 %v2719, %v2712
    %v3035 = vpack.c.b16 %v2720, %v2713
    %v3036 = vpack.c.b16 %v2728, %v2721
    %v3037 = vpack.c.b16 %v2729, %v2722
    %v3038 = vpack.c.b16 %v2730, %v2723
    %v3039 = vpack.c.b16 %v2731, %v2724
    %v3040 = vpack.c.b16 %v2732, %v2725
    %v3041 = vpack.c.b16 %v2733, %v2726
    %v3042 = vpack.c.b16 %v2734, %v2727
    %v3043 = vpack.c.b16 %v2742, %v2735
    %v3044 = vpack.c.b16 %v2743, %v2736
    %v3045 = vpack.c.b16 %v2744, %v2737
    %v3046 = vpack.c.b16 %v2745, %v2738
    %v3047 = vpack.c.b16 %v2746, %v2739
    %v3048 = vpack.c.b16 %v2747, %v2740
    %v3049 = vpack.c.b16 %v2748, %v2741
    %v3050 = vpack.c.b16 %v2756, %v2749
    %v3051 = vpack.c.b16 %v2757, %v2750
    %v3052 = vpack.c.b16 %v2758, %v2751
    %v3053 = vpack.c.b16 %v2759, %v2752
    %v3054 = vpack.c.b16 %v2760, %v2753
    %v3055 = vpack.c.b16 %v2761, %v2754
    %v3056 = vpack.c.b16 %v2762, %v2755
    %v3057 = vpack.c.b16 %v2770, %v2763
    %v3058 = vpack.c.b16 %v2771, %v2764
    %v3059 = vpack.c.b16 %v2772, %v2765
    %v3060 = vpack.c.b16 %v2773, %v2766
    %v3061 = vpack.c.b16 %v2774, %v2767
    %v3062 = vpack.c.b16 %v2775, %v2768
    %v3063 = vpack.c.b16 %v2776, %v2769
    %v3064 = vpack.c.b16 %v2784, %v2777
    %v3065 = vpack.c.b16 %v2785, %v2778
    %v3066 = vpack.c.b16 %v2786, %v2779
    %v3067 = vpack.c.b16 %v2787, %v2780
    %v3068 = vpack.c.b16 %v2788, %v2781
    %v3069 = vpack.c.b16 %v2789, %v2782
    %v3070 = vpack.c.b16 %v2790, %v2783
    %v3071 = vpack.c.b16 %v2798, %v2791
    %v3072 = vpack.c.b16 %v2799, %v2792
    %v3073 = vpack.c.b16 %v2800, %v2793
    %v3074 = vpack.c.b16 %v2801, %v2794
    %v3075 = vpack.c.b16 %v2802, %v2795
    %v3076 = vpack.c.b16 %v2803, %v2796
    %v3077 = vpack.c.b16 %v2804, %v2797
    %v3078 = vpack.c.b16 %v2812, %v2805
    %v3079 = vpack.c.b16 %v2813, %v2806
    %v3080 = vpack.c.b16 %v2814, %v2807
    %v3081 = vpack.c.b16 %v2815, %v2808
    %v3082 = vpack.c.b16 %v2816, %v2809
    %v3083 = vpack.c.b16 %v2817, %v2810
    %v3084 = vpack.c.b16 %v2818, %v2811
    %v3085 = vpack.c.b16 %v2826, %v2819
    %v3086 = vpack.c.b16 %v2827, %v2820
    %v3087 = vpack.c.b16 %v2828, %v2821
    %v3088 = vpack.c.b16 %v2829, %v2822
    %v3089 = vpack.c.b16 %v2830, %v2823
    %v3090 = vpack.c.b16 %v2831, %v2824
    %v3091 = vpack.c.b16 %v2832, %v2825
    %v3092 = vpack.c.b16 %v2840, %v2833
    %v3093 = vpack.c.b16 %v2841, %v2834
    %v3094 = vpack.c.b16 %v2842, %v2835
    %v3095 = vpack.c.b16 %v2843, %v2836
    %v3096 = vpack.c.b16 %v2844, %v2837
    %v3097 = vpack.c.b16 %v2845, %v2838
    %v3098 = vpack.c.b16 %v2846, %v2839
    %v3099 = vpack.c.b16 %v2854, %v2847
    %v3100 = vpack.c.b16 %v2855, %v2848
    %v3101 = vpack.c.b16 %v2856, %v2849
    %v3102 = vpack.c.b16 %v2857, %v2850
    %v3103 = vpack.c.b16 %v2858, %v2851
    %v3104 = vpack.c.b16 %v2859, %v2852
    %v3105 = vpack.c.b16 %v2860, %v2853
    %v3106 = vpack.c.b16 %v2868, %v2861
    %v3107 = vpack.c.b16 %v2869, %v2862
    %v3108 = vpack.c.b16 %v2870, %v2863
    %v3109 = vpack.c.b16 %v2871, %v2864
    %v3110 = vpack.c.b16 %v2872, %v2865
    %v3111 = vpack.c.b16 %v2873, %v2866
    %v3112 = vpack.c.b16 %v2874, %v2867
    %v3113 = vpack.c.b16 %v2882, %v2875
    %v3114 = vpack.c.b16 %v2883, %v2876
    %v3115 = vpack.c.b16 %v2884, %v2877
    %v3116 = vpack.c.b16 %v2885, %v2878
    %v3117 = vpack.c.b16 %v2886, %v2879
    %v3118 = vpack.c.b16 %v2887, %v2880
    %v3119 = vpack.c.b16 %v2888, %v2881
    %v3120 = vpack.c.b16 %v2896, %v2889
    %v3121 = vpack.c.b16 %v2897, %v2890
    %v3122 = vpack.c.b16 %v2898, %v2891
    %v3123 = vpack.c.b16 %v2899, %v2892
    %v3124 = vpack.c.b16 %v2900, %v2893
    %v3125 = vpack.c.b16 %v2901, %v2894
    %v3126 = vpack.c.b16 %v2902, %v2895
    %v3127 = vpack.c.b16 %v2910, %v2903
    %v3128 = vpack.c.b16 %v2911, %v2904
    %v3129 = vpack.c.b16 %v2912, %v2905
    %v3130 = vpack.c.b16 %v2913, %v2906
    %v3131 = vpack.c.b16 %v2914, %v2907
    %v3132 = vpack.c.b16 %v2915, %v2908
    %v3133 = vpack.c.b16 %v2916, %v2909
    %v3134 = vpack.c.b16 %v2924, %v2917
    %v3135 = vpack.c.b16 %v2925, %v2918
    %v3136 = vpack.c.b16 %v2926, %v2919
    %v3137 = vpack.c.b16 %v2927, %v2920
    %v3138 = vpack.c.b16 %v2928, %v2921
    %v3139 = vpack.c.b16 %v2929, %v2922
    %v3140 = vpack.c.b16 %v2930, %v2923
    %v3141 = vpack.c.b16 %v2938, %v2931
    %v3142 = vpack.c.b16 %v2939, %v2932
    %v3143 = vpack.c.b16 %v2940, %v2933
    %v3144 = vpack.c.b16 %v2941, %v2934
    %v3145 = vpack.c.b16 %v2942, %v2935
    %v3146 = vpack.c.b16 %v2943, %v2936
    %v3147 = vpack.c.b16 %v2944, %v2937
    %v3148 = vpack.c.b16 %v2952, %v2945
    %v3149 = vpack.c.b16 %v2953, %v2946
    %v3150 = vpack.c.b16 %v2954, %v2947
    %v3151 = vpack.c.b16 %v2955, %v2948
    %v3152 = vpack.c.b16 %v2956, %v2949
    %v3153 = vpack.c.b16 %v2957, %v2950
    %v3154 = vpack.c.b16 %v2958, %v2951
    %v3155 = vpack.c.b16 %v2966, %v2959
    %v3156 = vpack.c.b16 %v2967, %v2960
    %v3157 = vpack.c.b16 %v2968, %v2961
    %v3158 = vpack.c.b16 %v2969, %v2962
    %v3159 = vpack.c.b16 %v2970, %v2963
    %v3160 = vpack.c.b16 %v2971, %v2964
    %v3161 = vpack.c.b16 %v2972, %v2965
    %v3162 = vpack.c.b16 %v2980, %v2973
    %v3163 = vpack.c.b16 %v2981, %v2974
    %v3164 = vpack.c.b16 %v2982, %v2975
    %v3165 = vpack.c.b16 %v2983, %v2976
    %v3166 = vpack.c.b16 %v2984, %v2977
    %v3167 = vpack.c.b16 %v2985, %v2978
    %v3168 = vpack.c.b16 %v2986, %v2979
    %v3169 = vpack.c.b16 %v2994, %v2987
    %v3170 = vpack.c.b16 %v2995, %v2988
    %v3171 = vpack.c.b16 %v2996, %v2989
    %v3172 = vpack.c.b16 %v2997, %v2990
    %v3173 = vpack.c.b16 %v2998, %v2991
    %v3174 = vpack.c.b16 %v2999, %v2992
    %v3175 = vpack.c.b16 %v3000, %v2993
    %v3352 = vsel %vm1265, %v2213, 0
    %3354 = vmatprep.subr.bf16.mxu0 %v3002
    %3355 = vmatpush1.bf16.msra.mxu0 %v3001
    %3356 = vmatprep.subr.bf16.mxu0 %v3009
    %3357 = vmatpush1.bf16.msra.mxu0 %v3008
    %3358 = vmatprep.subr.bf16.mxu0 %v3016
    %3359 = vmatpush1.bf16.msra.mxu0 %v3015
    %3360 = vmatprep.subr.bf16.mxu0 %v3023
    %3361 = vmatpush1.bf16.msra.mxu0 %v3022
    %3362 = vmatprep.subr.bf16.mxu0 %v3030
    %3363 = vmatpush1.bf16.msra.mxu0 %v3029
    %3364 = vmatprep.subr.bf16.mxu0 %v3037
    %3365 = vmatpush1.bf16.msra.mxu0 %v3036
    %3366 = vmatprep.subr.bf16.mxu0 %v3044
    %3367 = vmatpush1.bf16.msra.mxu0 %v3043
    %3368 = vmatprep.subr.bf16.mxu0 %v3051
    %3369 = vmatpush1.bf16.msra.mxu0 %v3050
    %3370 = vmatprep.subr.bf16.mxu0 %v3058
    %3371 = vmatpush1.bf16.msra.mxu0 %v3057
    %3372 = vmatprep.subr.bf16.mxu0 %v3065
    %3373 = vmatpush1.bf16.msra.mxu0 %v3064
    %3374 = vmatprep.subr.bf16.mxu0 %v3072
    %3375 = vmatpush1.bf16.msra.mxu0 %v3071
    %3376 = vmatprep.subr.bf16.mxu0 %v3079
    %3377 = vmatpush1.bf16.msra.mxu0 %v3078
    %3378 = vmatprep.subr.bf16.mxu0 %v3086
    %3379 = vmatpush1.bf16.msra.mxu0 %v3085
    %3380 = vmatprep.subr.bf16.mxu0 %v3093
    %3381 = vmatpush1.bf16.msra.mxu0 %v3092
    %3382 = vmatprep.subr.bf16.mxu0 %v3100
    %3383 = vmatpush1.bf16.msra.mxu0 %v3099
    %3384 = vmatprep.subr.bf16.mxu0 %v3107
    %3385 = vmatpush1.bf16.msra.mxu0 %v3106
    %3386 = vmatprep.mubr.bf16.mxu0 %v2211
    %3387 = vmatmul.mubr.bf16.gmra.mrb[0].mxu0 %v2210
    %v3388 = vpop.f32.mrb[0].mxu0
    %v3389 = vadd.f32 %v2419, %v3388
    %v3390 = vpop.f32.mrb[0].mxu0
    %v3391 = vadd.f32 %v2423, %v3390
    %v3392 = vpop.f32.mrb[0].mxu0
    %v3393 = vpop.f32.mrb[0].mxu0
    %3394 = vdwg.mxu0
    %3395 = vmatprep.subr.bf16.mxu0 %v3114
    %3396 = vmatpush1.bf16.msra.mxu0 %v3113
    %3397 = vmatprep.subr.bf16.mxu0 %v3121
    %3398 = vmatpush1.bf16.msra.mxu0 %v3120
    %3399 = vmatprep.subr.bf16.mxu0 %v3128
    %3400 = vmatpush1.bf16.msra.mxu0 %v3127
    %3401 = vmatprep.subr.bf16.mxu0 %v3135
    %3402 = vmatpush1.bf16.msra.mxu0 %v3134
    %3403 = vmatprep.subr.bf16.mxu0 %v3142
    %3404 = vmatpush1.bf16.msra.mxu0 %v3141
    %3405 = vmatprep.subr.bf16.mxu0 %v3149
    %3406 = vmatpush1.bf16.msra.mxu0 %v3148
    %3407 = vmatprep.subr.bf16.mxu0 %v3156
    %3408 = vmatpush1.bf16.msra.mxu0 %v3155
    %3409 = vmatprep.subr.bf16.mxu0 %v3163
    %3410 = vmatpush1.bf16.msra.mxu0 %v3162
    %3411 = vmatprep.subr.bf16.mxu0 %v3170
    %3412 = vmatpush1.bf16.msra.mxu0 %v3169
    %3413 = vmatprep.subr.bf16.mxu0 0
    %3414 = vmatpush1.bf16.msra.mxu0 0
    %3415 = vmatprep.subr.bf16.mxu0 0
    %3416 = vmatpush1.bf16.msra.mxu0 0
    %3417 = vmatprep.subr.bf16.mxu0 0
    %3418 = vmatpush1.bf16.msra.mxu0 0
    %3419 = vmatprep.subr.bf16.mxu0 0
    %3420 = vmatpush1.bf16.msra.mxu0 0
    %3421 = vmatprep.subr.bf16.mxu0 0
    %3422 = vmatpush1.bf16.msra.mxu0 0
    %3423 = vmatprep.subr.bf16.mxu0 0
    %3424 = vmatpush1.bf16.msra.mxu0 0
    %3425 = vmatprep.subr.bf16.mxu0 0
    %3426 = vmatpush1.bf16.msra.mxu0 0
    %3427 = vmatprep.mubr.bf16.mxu0 %v3352
    %3428 = vmatmul.mubr.bf16.gmra.mrb[0].mxu0 %v2212
    %v3429 = vpop.f32.mrb[0].mxu0
    %v3430 = vadd.f32 %v3389, %v3429
    %v3431 = vpop.f32.mrb[0].mxu0
    %v3432 = vadd.f32 %v3391, %v3431
    %v3433 = vpop.f32.mrb[0].mxu0
    %v3434 = vpop.f32.mrb[0].mxu0
    %3435 = vdwg.mxu0
    %3436 = vmatprep.subr.bf16.mxu0 %v3004
    %3437 = vmatpush1.bf16.msra.mxu0 %v3003
    %3438 = vmatprep.subr.bf16.mxu0 %v3011
    %3439 = vmatpush1.bf16.msra.mxu0 %v3010
    %3440 = vmatprep.subr.bf16.mxu0 %v3018
    %3441 = vmatpush1.bf16.msra.mxu0 %v3017
    %3442 = vmatprep.subr.bf16.mxu0 %v3025
    %3443 = vmatpush1.bf16.msra.mxu0 %v3024
    %3444 = vmatprep.subr.bf16.mxu0 %v3032
    %3445 = vmatpush1.bf16.msra.mxu0 %v3031
    %3446 = vmatprep.subr.bf16.mxu0 %v3039
    %3447 = vmatpush1.bf16.msra.mxu0 %v3038
    %3448 = vmatprep.subr.bf16.mxu0 %v3046
    %3449 = vmatpush1.bf16.msra.mxu0 %v3045
    %3450 = vmatprep.subr.bf16.mxu0 %v3053
    %3451 = vmatpush1.bf16.msra.mxu0 %v3052
    %3452 = vmatprep.subr.bf16.mxu0 %v3060
    %3453 = vmatpush1.bf16.msra.mxu0 %v3059
    %3454 = vmatprep.subr.bf16.mxu0 %v3067
    %3455 = vmatpush1.bf16.msra.mxu0 %v3066
    %3456 = vmatprep.subr.bf16.mxu0 %v3074
    %3457 = vmatpush1.bf16.msra.mxu0 %v3073
    %3458 = vmatprep.subr.bf16.mxu0 %v3081
    %3459 = vmatpush1.bf16.msra.mxu0 %v3080
    %3460 = vmatprep.subr.bf16.mxu0 %v3088
    %3461 = vmatpush1.bf16.msra.mxu0 %v3087
    %3462 = vmatprep.subr.bf16.mxu0 %v3095
    %3463 = vmatpush1.bf16.msra.mxu0 %v3094
    %3464 = vmatprep.subr.bf16.mxu0 %v3102
    %3465 = vmatpush1.bf16.msra.mxu0 %v3101
    %3466 = vmatprep.subr.bf16.mxu0 %v3109
    %3467 = vmatpush1.bf16.msra.mxu0 %v3108
    %3468 = vmatprep.mubr.bf16.mxu0 %v2211
    %3469 = vmatmul.mubr.bf16.gmra.mrb[0].mxu0 %v2210
    %v3470 = vpop.f32.mrb[0].mxu0
    %v3471 = vadd.f32 %v2427, %v3470
    %v3472 = vpop.f32.mrb[0].mxu0
    %v3473 = vadd.f32 %v2431, %v3472
    %v3474 = vpop.f32.mrb[0].mxu0
    %v3475 = vpop.f32.mrb[0].mxu0
    %3476 = vdwg.mxu0
    %3477 = vmatprep.subr.bf16.mxu0 %v3116
    %3478 = vmatpush1.bf16.msra.mxu0 %v3115
    %3479 = vmatprep.subr.bf16.mxu0 %v3123
    %3480 = vmatpush1.bf16.msra.mxu0 %v3122
    %3481 = vmatprep.subr.bf16.mxu0 %v3130
    %3482 = vmatpush1.bf16.msra.mxu0 %v3129
    %3483 = vmatprep.subr.bf16.mxu0 %v3137
    %3484 = vmatpush1.bf16.msra.mxu0 %v3136
    %3485 = vmatprep.subr.bf16.mxu0 %v3144
    %3486 = vmatpush1.bf16.msra.mxu0 %v3143
    %3487 = vmatprep.subr.bf16.mxu0 %v3151
    %3488 = vmatpush1.bf16.msra.mxu0 %v3150
    %3489 = vmatprep.subr.bf16.mxu0 %v3158
    %3490 = vmatpush1.bf16.msra.mxu0 %v3157
    %3491 = vmatprep.subr.bf16.mxu0 %v3165
    %3492 = vmatpush1.bf16.msra.mxu0 %v3164
    %3493 = vmatprep.subr.bf16.mxu0 %v3172
    %3494 = vmatpush1.bf16.msra.mxu0 %v3171
    %3495 = vmatprep.subr.bf16.mxu0 0
    %3496 = vmatpush1.bf16.msra.mxu0 0
    %3497 = vmatprep.subr.bf16.mxu0 0
    %3498 = vmatpush1.bf16.msra.mxu0 0
    %3499 = vmatprep.subr.bf16.mxu0 0
    %3500 = vmatpush1.bf16.msra.mxu0 0
    %3501 = vmatprep.subr.bf16.mxu0 0
    %3502 = vmatpush1.bf16.msra.mxu0 0
    %3503 = vmatprep.subr.bf16.mxu0 0
    %3504 = vmatpush1.bf16.msra.mxu0 0
    %3505 = vmatprep.subr.bf16.mxu0 0
    %3506 = vmatpush1.bf16.msra.mxu0 0
    %3507 = vmatprep.subr.bf16.mxu0 0
    %3508 = vmatpush1.bf16.msra.mxu0 0
    %3509 = vmatprep.mubr.bf16.mxu0 %v3352
    %3510 = vmatmul.mubr.bf16.gmra.mrb[0].mxu0 %v2212
    %v3511 = vpop.f32.mrb[0].mxu0
    %v3512 = vadd.f32 %v3471, %v3511
    %v3513 = vpop.f32.mrb[0].mxu0
    %v3514 = vadd.f32 %v3473, %v3513
    %v3515 = vpop.f32.mrb[0].mxu0
    %v3516 = vpop.f32.mrb[0].mxu0
    %3517 = vdwg.mxu0
    %3518 = vmatprep.subr.bf16.mxu0 %v3006
    %3519 = vmatpush1.bf16.msra.mxu0 %v3005
    %3520 = vmatprep.subr.bf16.mxu0 %v3013
    %3521 = vmatpush1.bf16.msra.mxu0 %v3012
    %3522 = vmatprep.subr.bf16.mxu0 %v3020
    %3523 = vmatpush1.bf16.msra.mxu0 %v3019
    %3524 = vmatprep.subr.bf16.mxu0 %v3027
    %3525 = vmatpush1.bf16.msra.mxu0 %v3026
    %3526 = vmatprep.subr.bf16.mxu0 %v3034
    %3527 = vmatpush1.bf16.msra.mxu0 %v3033
    %3528 = vmatprep.subr.bf16.mxu0 %v3041
    %3529 = vmatpush1.bf16.msra.mxu0 %v3040
    %3530 = vmatprep.subr.bf16.mxu0 %v3048
    %3531 = vmatpush1.bf16.msra.mxu0 %v3047
    %3532 = vmatprep.subr.bf16.mxu0 %v3055
    %3533 = vmatpush1.bf16.msra.mxu0 %v3054
    %3534 = vmatprep.subr.bf16.mxu0 %v3062
    %3535 = vmatpush1.bf16.msra.mxu0 %v3061
    %3536 = vmatprep.subr.bf16.mxu0 %v3069
    %3537 = vmatpush1.bf16.msra.mxu0 %v3068
    %3538 = vmatprep.subr.bf16.mxu0 %v3076
    %3539 = vmatpush1.bf16.msra.mxu0 %v3075
    %3540 = vmatprep.subr.bf16.mxu0 %v3083
    %3541 = vmatpush1.bf16.msra.mxu0 %v3082
    %3542 = vmatprep.subr.bf16.mxu0 %v3090
    %3543 = vmatpush1.bf16.msra.mxu0 %v3089
    %3544 = vmatprep.subr.bf16.mxu0 %v3097
    %3545 = vmatpush1.bf16.msra.mxu0 %v3096
    %3546 = vmatprep.subr.bf16.mxu0 %v3104
    %3547 = vmatpush1.bf16.msra.mxu0 %v3103
    %3548 = vmatprep.subr.bf16.mxu0 %v3111
    %3549 = vmatpush1.bf16.msra.mxu0 %v3110
    %3550 = vmatprep.mubr.bf16.mxu0 %v2211
    %3551 = vmatmul.mubr.bf16.gmra.mrb[0].mxu0 %v2210
    %v3552 = vpop.f32.mrb[0].mxu0
    %v3553 = vadd.f32 %v2435, %v3552
    %v3554 = vpop.f32.mrb[0].mxu0
    %v3555 = vadd.f32 %v2439, %v3554
    %v3556 = vpop.f32.mrb[0].mxu0
    %v3557 = vpop.f32.mrb[0].mxu0
    %3558 = vdwg.mxu0
    %3559 = vmatprep.subr.bf16.mxu0 %v3118
    %3560 = vmatpush1.bf16.msra.mxu0 %v3117
    %3561 = vmatprep.subr.bf16.mxu0 %v3125
    %3562 = vmatpush1.bf16.msra.mxu0 %v3124
    %3563 = vmatprep.subr.bf16.mxu0 %v3132
    %3564 = vmatpush1.bf16.msra.mxu0 %v3131
    %3565 = vmatprep.subr.bf16.mxu0 %v3139
    %3566 = vmatpush1.bf16.msra.mxu0 %v3138
    %3567 = vmatprep.subr.bf16.mxu0 %v3146
    %3568 = vmatpush1.bf16.msra.mxu0 %v3145
    %3569 = vmatprep.subr.bf16.mxu0 %v3153
    %3570 = vmatpush1.bf16.msra.mxu0 %v3152
    %3571 = vmatprep.subr.bf16.mxu0 %v3160
    %3572 = vmatpush1.bf16.msra.mxu0 %v3159
    %3573 = vmatprep.subr.bf16.mxu0 %v3167
    %3574 = vmatpush1.bf16.msra.mxu0 %v3166
    %3575 = vmatprep.subr.bf16.mxu0 %v3174
    %3576 = vmatpush1.bf16.msra.mxu0 %v3173
    %3577 = vmatprep.subr.bf16.mxu0 0
    %3578 = vmatpush1.bf16.msra.mxu0 0
    %3579 = vmatprep.subr.bf16.mxu0 0
    %3580 = vmatpush1.bf16.msra.mxu0 0
    %3581 = vmatprep.subr.bf16.mxu0 0
    %3582 = vmatpush1.bf16.msra.mxu0 0
    %3583 = vmatprep.subr.bf16.mxu0 0
    %3584 = vmatpush1.bf16.msra.mxu0 0
    %3585 = vmatprep.subr.bf16.mxu0 0
    %3586 = vmatpush1.bf16.msra.mxu0 0
    %3587 = vmatprep.subr.bf16.mxu0 0
    %3588 = vmatpush1.bf16.msra.mxu0 0
    %3589 = vmatprep.subr.bf16.mxu0 0
    %3590 = vmatpush1.bf16.msra.mxu0 0
    %3591 = vmatprep.mubr.bf16.mxu0 %v3352
    %3592 = vmatmul.mubr.bf16.gmra.mrb[0].mxu0 %v2212
    %v3593 = vpop.f32.mrb[0].mxu0
    %v3594 = vadd.f32 %v3553, %v3593
    %v3595 = vpop.f32.mrb[0].mxu0
    %v3596 = vadd.f32 %v3555, %v3595
    %v3597 = vpop.f32.mrb[0].mxu0
    %v3598 = vpop.f32.mrb[0].mxu0
    %3599 = vdwg.mxu0
    %3600 = vmatprep.subr.bf16.mxu0 0
    %3601 = vmatpush1.bf16.msra.mxu0 %v3007
    %3602 = vmatprep.subr.bf16.mxu0 0
    %3603 = vmatpush1.bf16.msra.mxu0 %v3014
    %3604 = vmatprep.subr.bf16.mxu0 0
    %3605 = vmatpush1.bf16.msra.mxu0 %v3021
    %3606 = vmatprep.subr.bf16.mxu0 0
    %3607 = vmatpush1.bf16.msra.mxu0 %v3028
    %3608 = vmatprep.subr.bf16.mxu0 0
    %3609 = vmatpush1.bf16.msra.mxu0 %v3035
    %3610 = vmatprep.subr.bf16.mxu0 0
    %3611 = vmatpush1.bf16.msra.mxu0 %v3042
    %3612 = vmatprep.subr.bf16.mxu0 0
    %3613 = vmatpush1.bf16.msra.mxu0 %v3049
    %3614 = vmatprep.subr.bf16.mxu0 0
    %3615 = vmatpush1.bf16.msra.mxu0 %v3056
    %3616 = vmatprep.subr.bf16.mxu0 0
    %3617 = vmatpush1.bf16.msra.mxu0 %v3063
    %3618 = vmatprep.subr.bf16.mxu0 0
    %3619 = vmatpush1.bf16.msra.mxu0 %v3070
    %3620 = vmatprep.subr.bf16.mxu0 0
    %3621 = vmatpush1.bf16.msra.mxu0 %v3077
    %3622 = vmatprep.subr.bf16.mxu0 0
    %3623 = vmatpush1.bf16.msra.mxu0 %v3084
    %3624 = vmatprep.subr.bf16.mxu0 0
    %3625 = vmatpush1.bf16.msra.mxu0 %v3091
    %3626 = vmatprep.subr.bf16.mxu0 0
    %3627 = vmatpush1.bf16.msra.mxu0 %v3098
    %3628 = vmatprep.subr.bf16.mxu0 0
    %3629 = vmatpush1.bf16.msra.mxu0 %v3105
    %3630 = vmatprep.subr.bf16.mxu0 0
    %3631 = vmatpush1.bf16.msra.mxu0 %v3112
    %3632 = vmatprep.mubr.bf16.mxu0 %v2211
    %3633 = vmatmul.mubr.bf16.gmra.mrb[0].mxu0 %v2210
    %v3634 = vpop.f32.mrb[0].mxu0
    %v3635 = vadd.f32 %v2443, %v3634
    %v3636 = vpop.f32.mrb[0].mxu0
    %v3637 = vpop.f32.mrb[0].mxu0
    %v3638 = vpop.f32.mrb[0].mxu0
    %3639 = vdwg.mxu0
    %3640 = vmatprep.subr.bf16.mxu0 0
    %3641 = vmatpush1.bf16.msra.mxu0 %v3119
    %3642 = vmatprep.subr.bf16.mxu0 0
    %3643 = vmatpush1.bf16.msra.mxu0 %v3126
    %3644 = vmatprep.subr.bf16.mxu0 0
    %3645 = vmatpush1.bf16.msra.mxu0 %v3133
    %3646 = vmatprep.subr.bf16.mxu0 0
    %3647 = vmatpush1.bf16.msra.mxu0 %v3140
    %3648 = vmatprep.subr.bf16.mxu0 0
    %3649 = vmatpush1.bf16.msra.mxu0 %v3147
    %3650 = vmatprep.subr.bf16.mxu0 0
    %3651 = vmatpush1.bf16.msra.mxu0 %v3154
    %3652 = vmatprep.subr.bf16.mxu0 0
    %3653 = vmatpush1.bf16.msra.mxu0 %v3161
    %3654 = vmatprep.subr.bf16.mxu0 0
    %3655 = vmatpush1.bf16.msra.mxu0 %v3168
    %3656 = vmatprep.subr.bf16.mxu0 0
    %3657 = vmatpush1.bf16.msra.mxu0 %v3175
    %3658 = vmatprep.subr.bf16.mxu0 0
    %3659 = vmatpush1.bf16.msra.mxu0 0
    %3660 = vmatprep.subr.bf16.mxu0 0
    %3661 = vmatpush1.bf16.msra.mxu0 0
    %3662 = vmatprep.subr.bf16.mxu0 0
    %3663 = vmatpush1.bf16.msra.mxu0 0
    %3664 = vmatprep.subr.bf16.mxu0 0
    %3665 = vmatpush1.bf16.msra.mxu0 0
    %3666 = vmatprep.subr.bf16.mxu0 0
    %3667 = vmatpush1.bf16.msra.mxu0 0
    %3668 = vmatprep.subr.bf16.mxu0 0
    %3669 = vmatpush1.bf16.msra.mxu0 0
    %3670 = vmatprep.subr.bf16.mxu0 0
    %3671 = vmatpush1.bf16.msra.mxu0 0
    %3672 = vmatprep.mubr.bf16.mxu0 %v3352
    %3673 = vmatmul.mubr.bf16.gmra.mrb[0].mxu0 %v2212
    %v3674 = vpop.f32.mrb[0].mxu0
    %v3675 = vadd.f32 %v3635, %v3674
    %v3676 = vpop.f32.mrb[0].mxu0
    %v3677 = vpop.f32.mrb[0].mxu0
    %v3678 = vpop.f32.mrb[0].mxu0
    %3679 = vdwg.mxu0
    %v3680 = vsub.f32 0.0, %v3430
    %v3681 = vsub.f32 0.0, %v3432
    %v3682 = vsub.f32 0.0, %v3512
    %v3683 = vsub.f32 0.0, %v3514
    %v3684 = vsub.f32 0.0, %v3594
    %v3685 = vsub.f32 0.0, %v3596
    %v3686 = vsub.f32 0.0, %v3675
    %v3687 = vmul.f32 %v3680, 1.442695
    %v3688 = vpow.pop %v3687
    %v3689 = vmul.f32 %v3681, 1.442695
    %v3690 = vpow.pop %v3689
    %v3691 = vmul.f32 %v3682, 1.442695
    %v3692 = vpow.pop %v3691
    %v3693 = vmul.f32 %v3683, 1.442695
    %v3694 = vpow.pop %v3693
    %v3695 = vmul.f32 %v3684, 1.442695
    %v3696 = vpow.pop %v3695
    %v3697 = vmul.f32 %v3685, 1.442695
    %v3698 = vpow.pop %v3697
    %v3699 = vmul.f32 %v3686, 1.442695
    %v3700 = vpow.pop %v3699
    %v3701 = vadd.f32 %v3688, 1.0
    %v3702 = vadd.f32 %v3690, 1.0
    %v3703 = vadd.f32 %v3692, 1.0
    %v3704 = vadd.f32 %v3694, 1.0
    %v3705 = vadd.f32 %v3696, 1.0
    %v3706 = vadd.f32 %v3698, 1.0
    %v3707 = vadd.f32 %v3700, 1.0
    %v3708 = vrcp.pop %v3701
    %v3709 = vrcp.pop %v3702
    %v3710 = vrcp.pop %v3703
    %v3711 = vrcp.pop %v3704
    %v3712 = vrcp.pop %v3705
    %v3713 = vrcp.pop %v3706
    %v3714 = vrcp.pop %v3707
    %v3715 = vpack.c.bf16 %v3708, %v3708
    %v3716 = vpack.c.bf16 %v3709, %v3709
    %v3717 = vpack.c.bf16 %v3710, %v3710
    %v3718 = vpack.c.bf16 %v3711, %v3711
    %v3719 = vpack.c.bf16 %v3712, %v3712
    %v3720 = vpack.c.bf16 %v3713, %v3713
    %v3721 = vpack.c.bf16 %v3714, %v3714
    %v3729 = vunpack.c.l.b16 %v3715
    %v3730 = vunpack.c.l.b16 %v3716
    %v3731 = vunpack.c.l.b16 %v3717
    %v3732 = vunpack.c.l.b16 %v3718
    %v3733 = vunpack.c.l.b16 %v3719
    %v3734 = vunpack.c.l.b16 %v3720
    %v3735 = vunpack.c.l.b16 %v3721
    %v3736 = vpack.c.b16 %v3730, %v3729
    %v3737 = vpack.c.b16 %v3732, %v3731
    %v3738 = vpack.c.b16 %v3734, %v3733
    %v3739 = vpack.c.b16 %v3735, %v3735
    %3744 = vst [vmem:[#allocation2] sm:$0xff] %v3736
    %3745 = vst [vmem:[#allocation2 + $0x8] sm:$0xff] %v3737
    %3746 = vst [vmem:[#allocation2 + $0x10] sm:$0xff] %v3738
    %vm3747 = vcmask 125952
    %3748 = vst.msk [vmem:[#allocation2 + $0x18] sm:$0xf] %vm3747, %v3739
    // Predicated region
    $region42: #{vae_forward.1} parent=1 // pred_check
      _
    $region43: #{vae_forward.1} parent=1 // pred_check_branch
      %3750 = sbr.rel (0) target = $region45
    $region44: #{vae_forward.1} parent=1 // pred_region
      %s3752 = ssub.s32 448, 448
      %3753 = vsyncadd [#allocation3], %s3752
      %s3755 = sshll.u32 [#allocation2], 4
      %s3756 = int_to_ptr.vmem [resolvable:$true] %s3755
      %3758 = dma.vmem_to_hbm [thread:$0]  %s3756, 448, %s10, [#allocation3]
    $region45: #{vae_forward.1} parent=1 // pred_fallthru
      _
    // Predicated region
    $region46: #{vae_forward.1} parent=1 // pred_check
      _
    $region47: #{vae_forward.1} parent=1 // pred_check_branch
      %3760 = sbr.rel (0) target = $region49
    $region48: #{vae_forward.1} parent=1 // pred_region
      _
    $region49: #{vae_forward.1} parent=1 // pred_fallthru
      _
    // Predicated region
    $region50: #{vae_forward.1} parent=1 // pred_check
      _
    $region51: #{vae_forward.1} parent=1 // pred_check_branch
      %3762 = sbr.rel (0) target = $region53
    $region52: #{vae_forward.1} parent=1 // pred_region
      %3763 = dma.done [#allocation3], 448
    $region53: #{vae_forward.1} parent=1 // pred_fallthru
      _
    // Predicated region
    $region54: #{vae_forward.1} parent=1 // pred_check
      _
    $region55: #{vae_forward.1} parent=1 // pred_check_branch
      %3765 = sbr.rel (0) target = $region57
    $region56: #{vae_forward.1} parent=1 // pred_region
      _
    $region57: #{vae_forward.1} parent=1 // pred_fallthru
      _
    %3766 = vsyncpa [#allocation3], 1

</llo_original>
